<compile_context>
chip_gen: v5e
topology: v5e:2x2
jax: 0.10.0
libtpu: 0.0.40
codegen_flags: <defaults>
</compile_context>

<pallas_src>
import functools

import numpy as np
import jax
import jax.numpy as jnp
from jax.experimental import pallas as pl
from jax.experimental.pallas import tpu as pltpu


# ------------------------------ Pallas kernel -------------------------------

_NEG_BIG = -1e30  # finite "minus infinity" for the masked softmax


def _discriminator_kernel(x_ref, g1_ref, g2_ref, g3_ref, g4_ref,
                          wh_ref, bh_ref, out_ref, *, num_class):
    """Fused forward: conv1..conv4 (dense bf16 operators) + both FC heads.

    x_ref  : (B, Cin*H*W) f32   CHW-flattened input image(s)
    gN_ref : bf16 dense conv operators on CHW-flattened activations
    wh_ref : (feat, 128) bf16   fc_gan (col 0) and fc_aux (cols 1..num_class)
    bh_ref : (1, 128) f32       matching biases (zero padded)
    out_ref: (B, 128) f32       col 0 = sigmoid(gan), cols 1.. = softmax(aux)
    """
    def leaky(v):
        # nn.LeakyReLU(inplace=True) default negative_slope = 0.01
        return jnp.where(v >= 0.0, v, 0.01 * v)

    def mm(a_f32, w_ref):
        # bf16 x bf16 MXU matmul with f32 accumulation; epilogues stay f32.
        return jnp.dot(a_f32.astype(jnp.bfloat16), w_ref[...],
                       preferred_element_type=jnp.float32)

    x = x_ref[...]                                   # (B, 1024) f32
    h = leaky(mm(x, g1_ref))                         # (B, 1024)
    h = leaky(mm(h, g2_ref))                         # (B, 512)
    h = leaky(mm(h, g3_ref))                         # (B, 256)
    feat = jnp.tanh(mm(h, g4_ref))                   # (B, 512)
    # `feat` already equals x.view(B, dfdim*8*dsize**2) (CHW flatten baked in).

    logits = mm(feat, wh_ref) + bh_ref[...]          # (B, 128) lane-dense
    col = jax.lax.broadcasted_iota(jnp.int32, logits.shape, 1)

    sig = 1.0 / (1.0 + jnp.exp(-logits))             # sigmoid (only col 0 used)

    aux_mask = (col >= 1) & (col < 1 + num_class)
    masked = jnp.where(aux_mask, logits, _NEG_BIG)
    m = jnp.max(masked, axis=-1, keepdims=True)
    e = jnp.exp(masked - m)                          # masked-out lanes -> 0
    sm = e / jnp.sum(e, axis=-1, keepdims=True)      # softmax over aux lanes

    # One unmasked, lane-dense 128-wide store.
    out_ref[...] = jnp.where(col == 0, sig, sm)


def discriminator_forward(x_nchw, prep):
    """Single fused pallas_call for the whole Discriminator forward pass."""
    b = x_nchw.shape[0]
    # NOTE: per-image cost drops ~linearly with batch (weight DMA is fixed);
    # the kernel handles arbitrary B since B only appears as the matmul M dim.
    x_flat = x_nchw.reshape(b, -1).astype(jnp.float32)   # contiguous NCHW flatten
    g1, g2, g3, g4 = prep["g1"], prep["g2"], prep["g3"], prep["g4"]
    wh, bh = prep["w_heads"], prep["b_heads"]
    num_class = prep["num_class"]
    n_pad = wh.shape[1]

    operands = (x_flat, g1, g2, g3, g4, wh, bh)
    operand_bytes = sum(int(np.prod(a.shape)) * a.dtype.itemsize for a in operands)
    out_bytes = b * n_pad * 4
    # No grid => no double buffering: footprint is just operands + output.
    footprint = operand_bytes + out_bytes
    assert footprint < 48 * 2**20, (
        "dense conv operators too large for v7x VMEM (64 MiB physical); "
        "switch to the per-tap formulation for this configuration")
    vmem_limit = int(footprint) + (12 << 20)          # compiler scratch headroom

    vmem = pltpu.MemorySpace.VMEM
    kern = functools.partial(_discriminator_kernel, num_class=num_class)
    out = pl.pallas_call(
        kern,
        out_shape=jax.ShapeDtypeStruct((b, n_pad), jnp.float32),
        in_specs=[pl.BlockSpec(memory_space=vmem) for _ in operands],
        out_specs=pl.BlockSpec(memory_space=vmem),
        compiler_params=pltpu.CompilerParams(vmem_limit_bytes=vmem_limit),
    )(*operands)

    gan = out[:, 0:1]
    aux = out[:, 1:1 + num_class]
    return gan, aux


# ------------------- one-time host-side parameter preparation ----------------

def _conv_to_dense(w_oihw, h_in, w_in, stride, pad):
    """Lower Conv2d(bias=False) to a dense matrix on CHW-flattened activations.

    out_flat[b, co*Ho*Wo + oh*Wo + ow] = (x_flat @ G)[b, ...] where
    x_flat[b, ci*H*W + r*W + c] is the CHW flatten of the (unpadded) input and
    pad = (top, bottom, left, right) zero padding is folded into G.
    """
    w = np.asarray(w_oihw).astype(np.float32)          # (Cout, Cin, K, K)
    cout, cin, k, _ = w.shape
    top, bot, left, right = pad
    ho = (h_in + top + bot - k) // stride + 1
    wo = (w_in + left + right - k) // stride + 1
    g = np.zeros((cin, h_in, w_in, cout, ho, wo), np.float32)
    for i in range(k):
        for j in range(k):
            wt = w[:, :, i, j].T                       # (Cin, Cout)
            for oh in range(ho):
                r = stride * oh + i - top
                if r < 0 or r >= h_in:
                    continue
                for ow in range(wo):
                    c = stride * ow + j - left
                    if c < 0 or c >= w_in:
                        continue
                    g[:, r, c, :, oh, ow] = wt
    # Stored in bf16: halves the dominant HBM->VMEM weight DMA.
    return jnp.asarray(g.reshape(cin * h_in * w_in, cout * ho * wo),
                       dtype=jnp.bfloat16)


def prepare_params(params, out_dim, dfdim, imsize, num_class):
    """Hoisted weight preprocessing (conv -> dense bf16 operators, fused heads)."""
    del out_dim
    g1 = _conv_to_dense(params["conv1"], imsize, imsize, 2, (1, 1, 1, 1))
    g2 = _conv_to_dense(params["conv2"], imsize // 2, imsize // 2, 2, (1, 1, 1, 1))
    g3 = _conv_to_dense(params["conv3"], imsize // 4, imsize // 4, 2, (1, 1, 1, 1))
    # ZeroPad2d((1,0,1,0)) + Conv2d(k=4, s=1, p=1) => (top,bot,left,right)=(2,1,2,1)
    g4 = _conv_to_dense(params["conv4"], imsize // 8, imsize // 8, 1, (2, 1, 2, 1))

    feat_dim = dfdim * 8 * (imsize // 8) ** 2
    n_heads = 1 + num_class
    assert n_heads <= 128, "padded single-slab head matmul assumes 1+num_class <= 128"
    n_pad = -(-n_heads // 128) * 128                   # lane-dense head matmul
    wg = np.asarray(params["fc_gan_w"])                # (1, feat)
    wa = np.asarray(params["fc_aux_w"])                # (num_class, feat)
    w_heads = np.zeros((feat_dim, n_pad), np.float32)
    w_heads[:, 0] = wg[0]
    w_heads[:, 1:n_heads] = wa.T
    b_heads = np.zeros((1, n_pad), np.float32)
    b_heads[0, 0] = np.asarray(params["fc_gan_b"])[0]
    b_heads[0, 1:n_heads] = np.asarray(params["fc_aux_b"])
    return {"g1": g1, "g2": g2, "g3": g3, "g4": g4,
            "w_heads": jnp.asarray(w_heads, dtype=jnp.bfloat16),
            "b_heads": jnp.asarray(b_heads),           # bias stays f32
            "num_class": num_class}


# --------------------------- parameter initialisation ------------------------

def spectral_normalize(w_oihw, iters=20):
    # TODO(synk): PyTorch's spectral_norm keeps a stateful, randomly-initialized
    # power-iteration vector (1 step per forward); here we use a deterministic
    # multi-step power iteration to estimate sigma.
    o = w_oihw.shape[0]
    mat = w_oihw.reshape(o, -1)
    u = jnp.ones((o,), jnp.float32) / jnp.sqrt(float(o))
    v = None
    for _ in range(iters):
        v = mat.T @ u
        v = v / (jnp.linalg.norm(v) + 1e-12)
        u = mat @ v
        u = u / (jnp.linalg.norm(u) + 1e-12)
    sigma = u @ (mat @ v)
    return w_oihw / sigma


def init_params(key, out_dim, dfdim, imsize, num_class):
    ks = jax.random.split(key, 8)
    dsize = imsize // 8
    feat_dim = dfdim * 8 * dsize ** 2

    def conv_w(k, cout, cin, kk):
        scale = 1.0 / jnp.sqrt(float(cin * kk * kk))
        return jax.random.normal(k, (cout, cin, kk, kk), jnp.float32) * scale

    params = {
        "conv1": spectral_normalize(conv_w(ks[0], dfdim, out_dim, 3)),
        "conv2": spectral_normalize(conv_w(ks[1], dfdim * 2, dfdim, 3)),
        "conv3": spectral_normalize(conv_w(ks[2], dfdim * 4, dfdim * 2, 3)),
        "conv4": spectral_normalize(conv_w(ks[3], dfdim * 8, dfdim * 4, 4)),
        "fc_gan_w": jax.random.normal(ks[4], (1, feat_dim), jnp.float32)
                    / jnp.sqrt(float(feat_dim)),
        "fc_gan_b": jax.random.normal(ks[5], (1,), jnp.float32) * 0.01,
        "fc_aux_w": jax.random.normal(ks[6], (num_class, feat_dim), jnp.float32)
                    / jnp.sqrt(float(feat_dim)),
        "fc_aux_b": jax.random.normal(ks[7], (num_class,), jnp.float32) * 0.01,
    }
    # NOTE: fc_aux1 / fc_aux2 from __init__ are never used in forward(); omitted.
    return params


# --------------------------- pure-JAX reference ------------------------------

def reference_forward(x_nchw, params):
    def conv(x, w, stride, pad):
        return jax.lax.conv_general_dilated(
            x, w, (stride, stride), pad,
            dimension_numbers=("NCHW", "OIHW", "NCHW"))

    lrelu = lambda v: jnp.where(v >= 0, v, 0.01 * v)   # nn.LeakyReLU default
    h = lrelu(conv(x_nchw, params["conv1"], 2, ((1, 1), (1, 1))))
    h = lrelu(conv(h, params["conv2"], 2, ((1, 1), (1, 1))))
    h = lrelu(conv(h, params["conv3"], 2, ((1, 1), (1, 1))))
    h = jnp.tanh(conv(h, params["conv4"], 1, ((2, 1), (2, 1))))
    feat = h.reshape(h.shape[0], -1)
    gan = jax.nn.sigmoid(feat @ params["fc_gan_w"].T + params["fc_gan_b"])
    aux = jax.nn.softmax(feat @ params["fc_aux_w"].T + params["fc_aux_b"], axis=-1)
    return gan, aux


# ----------------------------------- main ------------------------------------

if __name__ == "__main__":
    # args: out_dim=4, dfdim=16, imsize=16, num_class=10, sn=True
    B, out_dim, dfdim, imsize, num_class = 2, 4, 16, 16, 10

    key = jax.random.PRNGKey(0)
    kx, kp = jax.random.split(key)
    x = jax.random.normal(kx, (B, out_dim, imsize, imsize), jnp.float32)
    params = init_params(kp, out_dim, dfdim, imsize, num_class)
    prep = prepare_params(params, out_dim, dfdim, imsize, num_class)

    gan_out, aux_out = discriminator_forward(x, prep)
    jax.block_until_ready((gan_out, aux_out))

    assert gan_out.shape == (B, 1)
    assert aux_out.shape == (B, num_class)

    gan_ref, aux_ref = reference_forward(x, params)
    # bf16 weights / bf16 matmul operands => relaxed tolerance vs. f32 reference.
    assert jnp.allclose(gan_out, gan_ref, rtol=2e-2, atol=2e-2)
    assert jnp.allclose(aux_out, aux_ref, rtol=2e-2, atol=2e-2)
    assert jnp.allclose(jnp.sum(aux_out, axis=-1), 1.0, atol=1e-5)

    print("KERNEL_OK")
</pallas_src>

<mosaic_0001>
module attributes {stable_mosaic.version = 11 : i64} {
  func.func @_discriminator_kernel(%arg0: memref<2x1024xf32, #tpu.memory_space<vmem>>, %arg1: memref<1024x1024xbf16, #tpu.memory_space<vmem>>, %arg2: memref<1024x512xbf16, #tpu.memory_space<vmem>>, %arg3: memref<512x256xbf16, #tpu.memory_space<vmem>>, %arg4: memref<256x512xbf16, #tpu.memory_space<vmem>>, %arg5: memref<512x128xbf16, #tpu.memory_space<vmem>>, %arg6: memref<1x128xf32, #tpu.memory_space<vmem>>, %arg7: memref<2x128xf32, #tpu.memory_space<vmem>>) attributes {dimension_semantics = [], scalar_prefetch = 0 : i64, scratch_operands = 0 : i64, tpu.core_type = #tpu.core_type<tc>} {
    %c0 = arith.constant 0 : index
    %c0_0 = arith.constant 0 : index
    %0 = vector.load %arg0[%c0, %c0_0] : memref<2x1024xf32, #tpu.memory_space<vmem>>, vector<2x1024xf32>
    %1 = arith.truncf %0 : vector<2x1024xf32> to vector<2x1024xbf16>
    %c0_1 = arith.constant 0 : index
    %c0_2 = arith.constant 0 : index
    %2 = vector.load %arg1[%c0_1, %c0_2] : memref<1024x1024xbf16, #tpu.memory_space<vmem>>, vector<1024x1024xbf16>
    %cst = arith.constant dense<0.000000e+00> : vector<2x1024xf32>
    %3 = tpu.matmul %1, %2, %cst {dimension_numbers = #tpu.dot_dimension_numbers<[1], [0], [0], [1], [0, 0, 1, 1], [], []>} : vector<2x1024xbf16>, vector<1024x1024xbf16>, vector<2x1024xf32> -> vector<2x1024xf32>
    %cst_3 = arith.constant 0.000000e+00 : f32
    %4 = vector.broadcast %cst_3 : f32 to vector<2x1024xf32>
    %5 = arith.cmpf oge, %3, %4 : vector<2x1024xf32>
    %cst_4 = arith.constant 0.00999999977 : f32
    %6 = vector.broadcast %cst_4 : f32 to vector<2x1024xf32>
    %7 = arith.mulf %6, %3 : vector<2x1024xf32>
    %8 = arith.select %5, %3, %7 : vector<2x1024xi1>, vector<2x1024xf32>
    %9 = arith.truncf %8 : vector<2x1024xf32> to vector<2x1024xbf16>
    %c0_5 = arith.constant 0 : index
    %c0_6 = arith.constant 0 : index
    %10 = vector.load %arg2[%c0_5, %c0_6] : memref<1024x512xbf16, #tpu.memory_space<vmem>>, vector<1024x512xbf16>
    %cst_7 = arith.constant dense<0.000000e+00> : vector<2x512xf32>
    %11 = tpu.matmul %9, %10, %cst_7 {dimension_numbers = #tpu.dot_dimension_numbers<[1], [0], [0], [1], [0, 0, 1, 1], [], []>} : vector<2x1024xbf16>, vector<1024x512xbf16>, vector<2x512xf32> -> vector<2x512xf32>
    %cst_8 = arith.constant 0.000000e+00 : f32
    %12 = vector.broadcast %cst_8 : f32 to vector<2x512xf32>
    %13 = arith.cmpf oge, %11, %12 : vector<2x512xf32>
    %cst_9 = arith.constant 0.00999999977 : f32
    %14 = vector.broadcast %cst_9 : f32 to vector<2x512xf32>
    %15 = arith.mulf %14, %11 : vector<2x512xf32>
    %16 = arith.select %13, %11, %15 : vector<2x512xi1>, vector<2x512xf32>
    %17 = arith.truncf %16 : vector<2x512xf32> to vector<2x512xbf16>
    %c0_10 = arith.constant 0 : index
    %c0_11 = arith.constant 0 : index
    %18 = vector.load %arg3[%c0_10, %c0_11] : memref<512x256xbf16, #tpu.memory_space<vmem>>, vector<512x256xbf16>
    %cst_12 = arith.constant dense<0.000000e+00> : vector<2x256xf32>
    %19 = tpu.matmul %17, %18, %cst_12 {dimension_numbers = #tpu.dot_dimension_numbers<[1], [0], [0], [1], [0, 0, 1, 1], [], []>} : vector<2x512xbf16>, vector<512x256xbf16>, vector<2x256xf32> -> vector<2x256xf32>
    %cst_13 = arith.constant 0.000000e+00 : f32
    %20 = vector.broadcast %cst_13 : f32 to vector<2x256xf32>
    %21 = arith.cmpf oge, %19, %20 : vector<2x256xf32>
    %cst_14 = arith.constant 0.00999999977 : f32
    %22 = vector.broadcast %cst_14 : f32 to vector<2x256xf32>
    %23 = arith.mulf %22, %19 : vector<2x256xf32>
    %24 = arith.select %21, %19, %23 : vector<2x256xi1>, vector<2x256xf32>
    %25 = arith.truncf %24 : vector<2x256xf32> to vector<2x256xbf16>
    %c0_15 = arith.constant 0 : index
    %c0_16 = arith.constant 0 : index
    %26 = vector.load %arg4[%c0_15, %c0_16] : memref<256x512xbf16, #tpu.memory_space<vmem>>, vector<256x512xbf16>
    %cst_17 = arith.constant dense<0.000000e+00> : vector<2x512xf32>
    %27 = tpu.matmul %25, %26, %cst_17 {dimension_numbers = #tpu.dot_dimension_numbers<[1], [0], [0], [1], [0, 0, 1, 1], [], []>} : vector<2x256xbf16>, vector<256x512xbf16>, vector<2x512xf32> -> vector<2x512xf32>
    %28 = math.tanh %27 : vector<2x512xf32>
    %29 = arith.truncf %28 : vector<2x512xf32> to vector<2x512xbf16>
    %c0_18 = arith.constant 0 : index
    %c0_19 = arith.constant 0 : index
    %30 = vector.load %arg5[%c0_18, %c0_19] : memref<512x128xbf16, #tpu.memory_space<vmem>>, vector<512x128xbf16>
    %cst_20 = arith.constant dense<0.000000e+00> : vector<2x128xf32>
    %31 = tpu.matmul %29, %30, %cst_20 {dimension_numbers = #tpu.dot_dimension_numbers<[1], [0], [0], [1], [0, 0, 1, 1], [], []>} : vector<2x512xbf16>, vector<512x128xbf16>, vector<2x128xf32> -> vector<2x128xf32>
    %c0_21 = arith.constant 0 : index
    %c0_22 = arith.constant 0 : index
    %32 = vector.load %arg6[%c0_21, %c0_22] : memref<1x128xf32, #tpu.memory_space<vmem>>, vector<1x128xf32>
    %33 = vector.broadcast %32 : vector<1x128xf32> to vector<2x128xf32>
    %34 = arith.addf %31, %33 : vector<2x128xf32>
    %35 = tpu.iota {dimensions = array<i32: 1>} : vector<2x128xi32>
    %cst_23 = arith.constant 0.000000e+00 : f32
    %36 = vector.broadcast %cst_23 : f32 to vector<2x128xf32>
    %37 = arith.subf %36, %34 : vector<2x128xf32>
    %38 = math.exp %37 : vector<2x128xf32>
    %cst_24 = arith.constant 1.000000e+00 : f32
    %39 = vector.broadcast %cst_24 : f32 to vector<2x128xf32>
    %40 = arith.addf %39, %38 : vector<2x128xf32>
    %cst_25 = arith.constant 1.000000e+00 : f32
    %41 = vector.broadcast %cst_25 : f32 to vector<2x128xf32>
    %42 = arith.divf %41, %40 : vector<2x128xf32>
    %c1_i32 = arith.constant 1 : i32
    %43 = vector.broadcast %c1_i32 : i32 to vector<2x128xi32>
    %44 = arith.cmpi sge, %35, %43 : vector<2x128xi32>
    %c11_i32 = arith.constant 11 : i32
    %45 = vector.broadcast %c11_i32 : i32 to vector<2x128xi32>
    %46 = arith.cmpi slt, %35, %45 : vector<2x128xi32>
    %47 = arith.andi %44, %46 : vector<2x128xi1>
    %cst_26 = arith.constant -1.000000e+30 : f32
    %48 = vector.broadcast %cst_26 : f32 to vector<2x128xf32>
    %49 = arith.select %47, %34, %48 : vector<2x128xi1>, vector<2x128xf32>
    %cst_27 = arith.constant dense<0xFF800000> : vector<2xf32>
    %50 = vector.multi_reduction <maximumf>, %49, %cst_27 [1] : vector<2x128xf32> to vector<2xf32>
    %51 = vector.shape_cast %50 : vector<2xf32> to vector<2x1xf32>
    %52 = vector.broadcast %51 : vector<2x1xf32> to vector<2x128xf32>
    %53 = arith.subf %49, %52 : vector<2x128xf32>
    %54 = math.exp %53 : vector<2x128xf32>
    %cst_28 = arith.constant dense<0.000000e+00> : vector<2xf32>
    %55 = vector.multi_reduction <add>, %54, %cst_28 [1] : vector<2x128xf32> to vector<2xf32>
    %56 = vector.shape_cast %55 : vector<2xf32> to vector<2x1xf32>
    %57 = vector.broadcast %56 : vector<2x1xf32> to vector<2x128xf32>
    %58 = arith.divf %54, %57 : vector<2x128xf32>
    %c0_i32 = arith.constant 0 : i32
    %59 = vector.broadcast %c0_i32 : i32 to vector<2x128xi32>
    %60 = arith.cmpi eq, %35, %59 : vector<2x128xi32>
    %61 = arith.select %60, %42, %58 : vector<2x128xi1>, vector<2x128xf32>
    %c0_29 = arith.constant 0 : index
    %c0_30 = arith.constant 0 : index
    %62 = vector.load %arg7[%c0_29, %c0_30] : memref<2x128xf32, #tpu.memory_space<vmem>>, vector<2x128xf32>
    tpu.vector_store %arg7[%c0_29, %c0_30], %61 {strides = array<i32>} : memref<2x128xf32, #tpu.memory_space<vmem>>, vector<2x128xf32>,
    return
  }
}

</mosaic_0001>

<llo_original>
// kernel: tpu_custom_call.1
$region0: #{tpu_custom_call.1}
  #allocation0 [shape = 'u32[]', space=smem, size = 0x4, offset = 0x4, fixed_abs, tag = 'smem constant byte address 0x4 - core index']
  #allocation1 [shape = 'u32[72,128]{1,0:T(1,128)}', space=vmem, size = 0x9000, scoped, tag = 'internal scratch']
  %s0 = inlined_call_operand.hbm [shape: f32[2,1024], index: 0, kind: input, shape index: {}]
  %s1 = inlined_call_operand.hbm [shape: bf16[1024,1024], index: 1, kind: input, shape index: {}]
  %s2 = inlined_call_operand.hbm [shape: bf16[1024,512], index: 2, kind: input, shape index: {}]
  %s3 = inlined_call_operand.hbm [shape: bf16[512,256], index: 3, kind: input, shape index: {}]
  %s4 = inlined_call_operand.hbm [shape: bf16[256,512], index: 4, kind: input, shape index: {}]
  %s5 = inlined_call_operand.hbm [shape: bf16[512,128], index: 5, kind: input, shape index: {}]
  %s6 = inlined_call_operand.hbm [shape: f32[1,128], index: 6, kind: input, shape index: {}]
  %s7 = inlined_call_operand.hbm [shape: f32[2,128], index: 7, kind: output, shape index: {}]
  %s8 = sld [smem:[#allocation0]]
  $region66: #{tpu_custom_call.1} parent=0
    _
  %s10 = ssub.s32 1, %s8
  %s11 = scalar_select 0, %s10, %s8
  $region1: #{tpu_custom_call.1} parent=0
    #allocation2 [shape = 'u8[8192]{0}', space=vmem, size = 0x2000, scoped, tag = 'input window, operand 0, single buffered']
    #allocation3 [shape = 's32[1]{0}', space=sflag, size = 0x4, scoped, tag = 'scoped memory for tpu_custom_call.1']
    #allocation4 [shape = 's32[1]{0}', space=sflag, size = 0x4, scoped, tag = 'scoped memory for tpu_custom_call.1']
    #allocation5 [shape = 'u8[2097152]{0}', space=vmem, size = 0x200000, scoped, tag = 'input window, operand 1, single buffered']
    #allocation6 [shape = 's32[1]{0}', space=sflag, size = 0x4, scoped, tag = 'scoped memory for tpu_custom_call.1']
    #allocation7 [shape = 'u8[1048576]{0}', space=vmem, size = 0x100000, scoped, tag = 'input window, operand 2, single buffered']
    #allocation8 [shape = 'u8[262144]{0}', space=vmem, size = 0x40000, scoped, tag = 'input window, operand 3, single buffered']
    #allocation9 [shape = 's32[1]{0}', space=sflag, size = 0x4, scoped, tag = 'scoped memory for tpu_custom_call.1']
    #allocation10 [shape = 'u8[262144]{0}', space=vmem, size = 0x40000, scoped, tag = 'input window, operand 4, single buffered']
    #allocation11 [shape = 'u8[131072]{0}', space=vmem, size = 0x20000, scoped, tag = 'input window, operand 5, single buffered']
    #allocation12 [shape = 's32[1]{0}', space=sflag, size = 0x4, scoped, tag = 'scoped memory for tpu_custom_call.1']
    #allocation13 [shape = 'u8[512]{0}', space=vmem, size = 0x400, scoped, tag = 'input window, operand 6, single buffered']
    #allocation14 [shape = 'u8[1024]{0}', space=vmem, size = 0x400, scoped, tag = 'output window, operand 0, single buffered']
    %12 = vsyncpa [#allocation3], 0
    %13 = vsyncpa [#allocation6], 0
    %14 = vsyncpa [#allocation9], 0
    %15 = vsyncpa [#allocation12], 0
    %16 = vsyncpa [#allocation4], 0
    // Predicated region
    $region2: #{tpu_custom_call.1} parent=1 // pred_check
      _
    $region3: #{tpu_custom_call.1} parent=1 // pred_check_branch
      %18 = sbr.rel (0) target = $region5
    $region4: #{tpu_custom_call.1} parent=1 // pred_region
      %20 = vsyncadd [#allocation3], 0
      %s22 = sshll.u32 %s0, 4
      %s23 = int_to_ptr.hbm [resolvable:$true] %s22
      %s24 = sshll.u32 [#allocation2], 4
      %s25 = int_to_ptr.vmem [resolvable:$true] %s24
      %27 = dma.hbm_to_vmem [thread:$0]  %s23, 256, %s25, [#allocation3]
    $region5: #{tpu_custom_call.1} parent=1 // pred_fallthru
      _
    // Predicated region
    $region6: #{tpu_custom_call.1} parent=1 // pred_check
      _
    $region7: #{tpu_custom_call.1} parent=1 // pred_check_branch
      %29 = sbr.rel (0) target = $region9
    $region8: #{tpu_custom_call.1} parent=1 // pred_region
      %31 = vsyncadd [#allocation6], 0
      %s32 = sshll.u32 %s1, 4
      %s33 = int_to_ptr.hbm [resolvable:$true] %s32
      %s34 = sshll.u32 [#allocation5], 4
      %s35 = int_to_ptr.vmem [resolvable:$true] %s34
      %40 = dma.hbm_to_vmem [thread:$0]  %s33, 65536, %s35, [#allocation6], 512, 512, 32
    $region9: #{tpu_custom_call.1} parent=1 // pred_fallthru
      _
    // Predicated region
    $region10: #{tpu_custom_call.1} parent=1 // pred_check
      _
    $region11: #{tpu_custom_call.1} parent=1 // pred_check_branch
      %42 = sbr.rel (0) target = $region13
    $region12: #{tpu_custom_call.1} parent=1 // pred_region
      %44 = vsyncadd [#allocation6], 0
      %s45 = sshll.u32 %s2, 4
      %s46 = int_to_ptr.hbm [resolvable:$true] %s45
      %s47 = sshll.u32 [#allocation7], 4
      %s48 = int_to_ptr.vmem [resolvable:$true] %s47
      %53 = dma.hbm_to_vmem [thread:$0]  %s46, 32768, %s48, [#allocation6], 256, 256, 16
    $region13: #{tpu_custom_call.1} parent=1 // pred_fallthru
      _
    // Predicated region
    $region14: #{tpu_custom_call.1} parent=1 // pred_check
      _
    $region15: #{tpu_custom_call.1} parent=1 // pred_check_branch
      %55 = sbr.rel (0) target = $region17
    $region16: #{tpu_custom_call.1} parent=1 // pred_region
      %57 = vsyncadd [#allocation9], 0
      %s58 = sshll.u32 %s3, 4
      %s59 = int_to_ptr.hbm [resolvable:$true] %s58
      %s60 = sshll.u32 [#allocation8], 4
      %s61 = int_to_ptr.vmem [resolvable:$true] %s60
      %66 = dma.hbm_to_vmem [thread:$0]  %s59, 8192, %s61, [#allocation9], 128, 128, 8
    $region17: #{tpu_custom_call.1} parent=1 // pred_fallthru
      _
    // Predicated region
    $region18: #{tpu_custom_call.1} parent=1 // pred_check
      _
    $region19: #{tpu_custom_call.1} parent=1 // pred_check_branch
      %68 = sbr.rel (0) target = $region21
    $region20: #{tpu_custom_call.1} parent=1 // pred_region
      %70 = vsyncadd [#allocation9], 0
      %s71 = sshll.u32 %s4, 4
      %s72 = int_to_ptr.hbm [resolvable:$true] %s71
      %s73 = sshll.u32 [#allocation10], 4
      %s74 = int_to_ptr.vmem [resolvable:$true] %s73
      %79 = dma.hbm_to_vmem [thread:$0]  %s72, 8192, %s74, [#allocation9], 256, 256, 16
    $region21: #{tpu_custom_call.1} parent=1 // pred_fallthru
      _
    // Predicated region
    $region22: #{tpu_custom_call.1} parent=1 // pred_check
      _
    $region23: #{tpu_custom_call.1} parent=1 // pred_check_branch
      %81 = sbr.rel (0) target = $region25
    $region24: #{tpu_custom_call.1} parent=1 // pred_region
      %83 = vsyncadd [#allocation12], 0
      %s84 = sshll.u32 %s5, 4
      %s85 = int_to_ptr.hbm [resolvable:$true] %s84
      %s86 = sshll.u32 [#allocation11], 4
      %s87 = int_to_ptr.vmem [resolvable:$true] %s86
      %92 = dma.hbm_to_vmem [thread:$0]  %s85, 4096, %s87, [#allocation12], 64, 64, 4
    $region25: #{tpu_custom_call.1} parent=1 // pred_fallthru
      _
    // Predicated region
    $region26: #{tpu_custom_call.1} parent=1 // pred_check
      _
    $region27: #{tpu_custom_call.1} parent=1 // pred_check_branch
      %94 = sbr.rel (0) target = $region29
    $region28: #{tpu_custom_call.1} parent=1 // pred_region
      %96 = vsyncadd [#allocation12], 0
      %s98 = sshll.u32 %s6, 4
      %s99 = int_to_ptr.hbm [resolvable:$true] %s98
      %s100 = sshll.u32 [#allocation13], 4
      %s101 = int_to_ptr.vmem [resolvable:$true] %s100
      %103 = dma.hbm_to_vmem [thread:$0]  %s99, 16, %s101, [#allocation12]
    $region29: #{tpu_custom_call.1} parent=1 // pred_fallthru
      _
    // Predicated region
    $region30: #{tpu_custom_call.1} parent=1 // pred_check
      _
    $region31: #{tpu_custom_call.1} parent=1 // pred_check_branch
      %105 = sbr.rel (0) target = $region33
    $region32: #{tpu_custom_call.1} parent=1 // pred_region
      %107 = dma.done [#allocation3], 256
    $region33: #{tpu_custom_call.1} parent=1 // pred_fallthru
      _
    // Predicated region
    $region34: #{tpu_custom_call.1} parent=1 // pred_check
      _
    $region35: #{tpu_custom_call.1} parent=1 // pred_check_branch
      %109 = sbr.rel (0) target = $region37
    $region36: #{tpu_custom_call.1} parent=1 // pred_region
      %111 = dma.done [#allocation6], 65536
    $region37: #{tpu_custom_call.1} parent=1 // pred_fallthru
      _
    // Predicated region
    $region38: #{tpu_custom_call.1} parent=1 // pred_check
      _
    $region39: #{tpu_custom_call.1} parent=1 // pred_check_branch
      %113 = sbr.rel (0) target = $region41
    $region40: #{tpu_custom_call.1} parent=1 // pred_region
      %115 = dma.done [#allocation6], 32768
    $region41: #{tpu_custom_call.1} parent=1 // pred_fallthru
      _
    // Predicated region
    $region42: #{tpu_custom_call.1} parent=1 // pred_check
      _
    $region43: #{tpu_custom_call.1} parent=1 // pred_check_branch
      %117 = sbr.rel (0) target = $region45
    $region44: #{tpu_custom_call.1} parent=1 // pred_region
      %119 = dma.done [#allocation9], 8192
    $region45: #{tpu_custom_call.1} parent=1 // pred_fallthru
      _
    // Predicated region
    $region46: #{tpu_custom_call.1} parent=1 // pred_check
      _
    $region47: #{tpu_custom_call.1} parent=1 // pred_check_branch
      %121 = sbr.rel (0) target = $region49
    $region48: #{tpu_custom_call.1} parent=1 // pred_region
      %123 = dma.done [#allocation9], 8192
    $region49: #{tpu_custom_call.1} parent=1 // pred_fallthru
      _
    // Predicated region
    $region50: #{tpu_custom_call.1} parent=1 // pred_check
      _
    $region51: #{tpu_custom_call.1} parent=1 // pred_check_branch
      %125 = sbr.rel (0) target = $region53
    $region52: #{tpu_custom_call.1} parent=1 // pred_region
      %127 = dma.done [#allocation12], 4096
    $region53: #{tpu_custom_call.1} parent=1 // pred_fallthru
      _
    // Predicated region
    $region54: #{tpu_custom_call.1} parent=1 // pred_check
      _
    $region55: #{tpu_custom_call.1} parent=1 // pred_check_branch
      %129 = sbr.rel (0) target = $region57
    $region56: #{tpu_custom_call.1} parent=1 // pred_region
      %131 = dma.done [#allocation12], 16
    $region57: #{tpu_custom_call.1} parent=1 // pred_fallthru
      _
    %v132 = vld [vmem:[#allocation2] sm:$0xff]
    %v133 = vld [vmem:[#allocation2 + $0x8] sm:$0xff]
    %136 = vst [vmem:[#allocation1] ss:$4 sm:$0xff] %v132
    %s137 = scalar_lea.vmem [#allocation1], 32
    %138 = vst [vmem:[%s137] ss:$4 sm:$0xff] %v133
    %v139 = vld.sshfl [vmem:[#allocation1] sm:$0xff pattern:$0x73625140]
    %v140 = vld.sshfl [vmem:[#allocation1 + $0x8] sm:$0xff pattern:$0x73625140]
    %v141 = vld.sshfl [vmem:[#allocation1 + $0x10] sm:$0xff pattern:$0x73625140]
    %v142 = vld.sshfl [vmem:[#allocation1 + $0x18] sm:$0xff pattern:$0x73625140]
    %v143 = vld.sshfl [vmem:[#allocation1 + $0x20] sm:$0xff pattern:$0x73625140]
    %v144 = vld.sshfl [vmem:[#allocation1 + $0x28] sm:$0xff pattern:$0x73625140]
    %v145 = vld.sshfl [vmem:[#allocation1 + $0x30] sm:$0xff pattern:$0x73625140]
    %v146 = vld.sshfl [vmem:[#allocation1 + $0x38] sm:$0xff pattern:$0x73625140]
    %v155 = vpack.c.bf16 %v139, %v139
    %v156 = vpack.c.bf16 %v140, %v140
    %v157 = vpack.c.bf16 %v141, %v141
    %v158 = vpack.c.bf16 %v142, %v142
    %v159 = vpack.c.bf16 %v143, %v143
    %v160 = vpack.c.bf16 %v144, %v144
    %v161 = vpack.c.bf16 %v145, %v145
    %v162 = vpack.c.bf16 %v146, %v146
    %v163 = vld [vmem:[#allocation5] sm:$0xff]
    %v164 = vld [vmem:[#allocation5 + $0x8] sm:$0xff]
    %v165 = vld [vmem:[#allocation5 + $0x10] sm:$0xff]
    %v166 = vld [vmem:[#allocation5 + $0x18] sm:$0xff]
    %v167 = vld [vmem:[#allocation5 + $0x20] sm:$0xff]
    %v168 = vld [vmem:[#allocation5 + $0x28] sm:$0xff]
    %v169 = vld [vmem:[#allocation5 + $0x30] sm:$0xff]
    %v170 = vld [vmem:[#allocation5 + $0x38] sm:$0xff]
    %v171 = vld [vmem:[#allocation5 + $0x40] sm:$0xff]
    %v172 = vld [vmem:[#allocation5 + $0x48] sm:$0xff]
    %v173 = vld [vmem:[#allocation5 + $0x50] sm:$0xff]
    %v174 = vld [vmem:[#allocation5 + $0x58] sm:$0xff]
    %v175 = vld [vmem:[#allocation5 + $0x60] sm:$0xff]
    %v176 = vld [vmem:[#allocation5 + $0x68] sm:$0xff]
    %v177 = vld [vmem:[#allocation5 + $0x70] sm:$0xff]
    %v178 = vld [vmem:[#allocation5 + $0x78] sm:$0xff]
    %v179 = vld [vmem:[#allocation5 + $0x80] sm:$0xff]
    %v180 = vld [vmem:[#allocation5 + $0x88] sm:$0xff]
    %v181 = vld [vmem:[#allocation5 + $0x90] sm:$0xff]
    %v182 = vld [vmem:[#allocation5 + $0x98] sm:$0xff]
    %v183 = vld [vmem:[#allocation5 + $0xa0] sm:$0xff]
    %v184 = vld [vmem:[#allocation5 + $0xa8] sm:$0xff]
    %v185 = vld [vmem:[#allocation5 + $0xb0] sm:$0xff]
    %v186 = vld [vmem:[#allocation5 + $0xb8] sm:$0xff]
    %v187 = vld [vmem:[#allocation5 + $0xc0] sm:$0xff]
    %v188 = vld [vmem:[#allocation5 + $0xc8] sm:$0xff]
    %v189 = vld [vmem:[#allocation5 + $0xd0] sm:$0xff]
    %v190 = vld [vmem:[#allocation5 + $0xd8] sm:$0xff]
    %v191 = vld [vmem:[#allocation5 + $0xe0] sm:$0xff]
    %v192 = vld [vmem:[#allocation5 + $0xe8] sm:$0xff]
    %v193 = vld [vmem:[#allocation5 + $0xf0] sm:$0xff]
    %v194 = vld [vmem:[#allocation5 + $0xf8] sm:$0xff]
    %v195 = vld [vmem:[#allocation5 + $0x100] sm:$0xff]
    %v196 = vld [vmem:[#allocation5 + $0x108] sm:$0xff]
    %v197 = vld [vmem:[#allocation5 + $0x110] sm:$0xff]
    %v198 = vld [vmem:[#allocation5 + $0x118] sm:$0xff]
    %v199 = vld [vmem:[#allocation5 + $0x120] sm:$0xff]
    %v200 = vld [vmem:[#allocation5 + $0x128] sm:$0xff]
    %v201 = vld [vmem:[#allocation5 + $0x130] sm:$0xff]
    %v202 = vld [vmem:[#allocation5 + $0x138] sm:$0xff]
    %v203 = vld [vmem:[#allocation5 + $0x140] sm:$0xff]
    %v204 = vld [vmem:[#allocation5 + $0x148] sm:$0xff]
    %v205 = vld [vmem:[#allocation5 + $0x150] sm:$0xff]
    %v206 = vld [vmem:[#allocation5 + $0x158] sm:$0xff]
    %v207 = vld [vmem:[#allocation5 + $0x160] sm:$0xff]
    %v208 = vld [vmem:[#allocation5 + $0x168] sm:$0xff]
    %v209 = vld [vmem:[#allocation5 + $0x170] sm:$0xff]
    %v210 = vld [vmem:[#allocation5 + $0x178] sm:$0xff]
    %v211 = vld [vmem:[#allocation5 + $0x180] sm:$0xff]
    %v212 = vld [vmem:[#allocation5 + $0x188] sm:$0xff]
    %v213 = vld [vmem:[#allocation5 + $0x190] sm:$0xff]
    %v214 = vld [vmem:[#allocation5 + $0x198] sm:$0xff]
    %v215 = vld [vmem:[#allocation5 + $0x1a0] sm:$0xff]
    %v216 = vld [vmem:[#allocation5 + $0x1a8] sm:$0xff]
    %v217 = vld [vmem:[#allocation5 + $0x1b0] sm:$0xff]
    %v218 = vld [vmem:[#allocation5 + $0x1b8] sm:$0xff]
    %v219 = vld [vmem:[#allocation5 + $0x1c0] sm:$0xff]
    %v220 = vld [vmem:[#allocation5 + $0x1c8] sm:$0xff]
    %v221 = vld [vmem:[#allocation5 + $0x1d0] sm:$0xff]
    %v222 = vld [vmem:[#allocation5 + $0x1d8] sm:$0xff]
    %v223 = vld [vmem:[#allocation5 + $0x1e0] sm:$0xff]
    %v224 = vld [vmem:[#allocation5 + $0x1e8] sm:$0xff]
    %v225 = vld [vmem:[#allocation5 + $0x1f0] sm:$0xff]
    %v226 = vld [vmem:[#allocation5 + $0x1f8] sm:$0xff]
    %v227 = vld [vmem:[#allocation5 + $0x200] sm:$0xff]
    %v228 = vld [vmem:[#allocation5 + $0x208] sm:$0xff]
    %v229 = vld [vmem:[#allocation5 + $0x210] sm:$0xff]
    %v230 = vld [vmem:[#allocation5 + $0x218] sm:$0xff]
    %v231 = vld [vmem:[#allocation5 + $0x220] sm:$0xff]
    %v232 = vld [vmem:[#allocation5 + $0x228] sm:$0xff]
    %v233 = vld [vmem:[#allocation5 + $0x230] sm:$0xff]
    %v234 = vld [vmem:[#allocation5 + $0x238] sm:$0xff]
    %v235 = vld [vmem:[#allocation5 + $0x240] sm:$0xff]
    %v236 = vld [vmem:[#allocation5 + $0x248] sm:$0xff]
    %v237 = vld [vmem:[#allocation5 + $0x250] sm:$0xff]
    %v238 = vld [vmem:[#allocation5 + $0x258] sm:$0xff]
    %v239 = vld [vmem:[#allocation5 + $0x260] sm:$0xff]
    %v240 = vld [vmem:[#allocation5 + $0x268] sm:$0xff]
    %v241 = vld [vmem:[#allocation5 + $0x270] sm:$0xff]
    %v242 = vld [vmem:[#allocation5 + $0x278] sm:$0xff]
    %v243 = vld [vmem:[#allocation5 + $0x280] sm:$0xff]
    %v244 = vld [vmem:[#allocation5 + $0x288] sm:$0xff]
    %v245 = vld [vmem:[#allocation5 + $0x290] sm:$0xff]
    %v246 = vld [vmem:[#allocation5 + $0x298] sm:$0xff]
    %v247 = vld [vmem:[#allocation5 + $0x2a0] sm:$0xff]
    %v248 = vld [vmem:[#allocation5 + $0x2a8] sm:$0xff]
    %v249 = vld [vmem:[#allocation5 + $0x2b0] sm:$0xff]
    %v250 = vld [vmem:[#allocation5 + $0x2b8] sm:$0xff]
    %v251 = vld [vmem:[#allocation5 + $0x2c0] sm:$0xff]
    %v252 = vld [vmem:[#allocation5 + $0x2c8] sm:$0xff]
    %v253 = vld [vmem:[#allocation5 + $0x2d0] sm:$0xff]
    %v254 = vld [vmem:[#allocation5 + $0x2d8] sm:$0xff]
    %v255 = vld [vmem:[#allocation5 + $0x2e0] sm:$0xff]
    %v256 = vld [vmem:[#allocation5 + $0x2e8] sm:$0xff]
    %v257 = vld [vmem:[#allocation5 + $0x2f0] sm:$0xff]
    %v258 = vld [vmem:[#allocation5 + $0x2f8] sm:$0xff]
    %v259 = vld [vmem:[#allocation5 + $0x300] sm:$0xff]
    %v260 = vld [vmem:[#allocation5 + $0x308] sm:$0xff]
    %v261 = vld [vmem:[#allocation5 + $0x310] sm:$0xff]
    %v262 = vld [vmem:[#allocation5 + $0x318] sm:$0xff]
    %v263 = vld [vmem:[#allocation5 + $0x320] sm:$0xff]
    %v264 = vld [vmem:[#allocation5 + $0x328] sm:$0xff]
    %v265 = vld [vmem:[#allocation5 + $0x330] sm:$0xff]
    %v266 = vld [vmem:[#allocation5 + $0x338] sm:$0xff]
    %v267 = vld [vmem:[#allocation5 + $0x340] sm:$0xff]
    %v268 = vld [vmem:[#allocation5 + $0x348] sm:$0xff]
    %v269 = vld [vmem:[#allocation5 + $0x350] sm:$0xff]
    %v270 = vld [vmem:[#allocation5 + $0x358] sm:$0xff]
    %v271 = vld [vmem:[#allocation5 + $0x360] sm:$0xff]
    %v272 = vld [vmem:[#allocation5 + $0x368] sm:$0xff]
    %v273 = vld [vmem:[#allocation5 + $0x370] sm:$0xff]
    %v274 = vld [vmem:[#allocation5 + $0x378] sm:$0xff]
    %v275 = vld [vmem:[#allocation5 + $0x380] sm:$0xff]
    %v276 = vld [vmem:[#allocation5 + $0x388] sm:$0xff]
    %v277 = vld [vmem:[#allocation5 + $0x390] sm:$0xff]
    %v278 = vld [vmem:[#allocation5 + $0x398] sm:$0xff]
    %v279 = vld [vmem:[#allocation5 + $0x3a0] sm:$0xff]
    %v280 = vld [vmem:[#allocation5 + $0x3a8] sm:$0xff]
    %v281 = vld [vmem:[#allocation5 + $0x3b0] sm:$0xff]
    %v282 = vld [vmem:[#allocation5 + $0x3b8] sm:$0xff]
    %v283 = vld [vmem:[#allocation5 + $0x3c0] sm:$0xff]
    %v284 = vld [vmem:[#allocation5 + $0x3c8] sm:$0xff]
    %v285 = vld [vmem:[#allocation5 + $0x3d0] sm:$0xff]
    %v286 = vld [vmem:[#allocation5 + $0x3d8] sm:$0xff]
    %v287 = vld [vmem:[#allocation5 + $0x3e0] sm:$0xff]
    %v288 = vld [vmem:[#allocation5 + $0x3e8] sm:$0xff]
    %v289 = vld [vmem:[#allocation5 + $0x3f0] sm:$0xff]
    %v290 = vld [vmem:[#allocation5 + $0x3f8] sm:$0xff]
    %v291 = vld [vmem:[#allocation5 + $0x400] sm:$0xff]
    %v292 = vld [vmem:[#allocation5 + $0x408] sm:$0xff]
    %v293 = vld [vmem:[#allocation5 + $0x410] sm:$0xff]
    %v294 = vld [vmem:[#allocation5 + $0x418] sm:$0xff]
    %v295 = vld [vmem:[#allocation5 + $0x420] sm:$0xff]
    %v296 = vld [vmem:[#allocation5 + $0x428] sm:$0xff]
    %v297 = vld [vmem:[#allocation5 + $0x430] sm:$0xff]
    %v298 = vld [vmem:[#allocation5 + $0x438] sm:$0xff]
    %v299 = vld [vmem:[#allocation5 + $0x440] sm:$0xff]
    %v300 = vld [vmem:[#allocation5 + $0x448] sm:$0xff]
    %v301 = vld [vmem:[#allocation5 + $0x450] sm:$0xff]
    %v302 = vld [vmem:[#allocation5 + $0x458] sm:$0xff]
    %v303 = vld [vmem:[#allocation5 + $0x460] sm:$0xff]
    %v304 = vld [vmem:[#allocation5 + $0x468] sm:$0xff]
    %v305 = vld [vmem:[#allocation5 + $0x470] sm:$0xff]
    %v306 = vld [vmem:[#allocation5 + $0x478] sm:$0xff]
    %v307 = vld [vmem:[#allocation5 + $0x480] sm:$0xff]
    %v308 = vld [vmem:[#allocation5 + $0x488] sm:$0xff]
    %v309 = vld [vmem:[#allocation5 + $0x490] sm:$0xff]
    %v310 = vld [vmem:[#allocation5 + $0x498] sm:$0xff]
    %v311 = vld [vmem:[#allocation5 + $0x4a0] sm:$0xff]
    %v312 = vld [vmem:[#allocation5 + $0x4a8] sm:$0xff]
    %v313 = vld [vmem:[#allocation5 + $0x4b0] sm:$0xff]
    %v314 = vld [vmem:[#allocation5 + $0x4b8] sm:$0xff]
    %v315 = vld [vmem:[#allocation5 + $0x4c0] sm:$0xff]
    %v316 = vld [vmem:[#allocation5 + $0x4c8] sm:$0xff]
    %v317 = vld [vmem:[#allocation5 + $0x4d0] sm:$0xff]
    %v318 = vld [vmem:[#allocation5 + $0x4d8] sm:$0xff]
    %v319 = vld [vmem:[#allocation5 + $0x4e0] sm:$0xff]
    %v320 = vld [vmem:[#allocation5 + $0x4e8] sm:$0xff]
    %v321 = vld [vmem:[#allocation5 + $0x4f0] sm:$0xff]
    %v322 = vld [vmem:[#allocation5 + $0x4f8] sm:$0xff]
    %v323 = vld [vmem:[#allocation5 + $0x500] sm:$0xff]
    %v324 = vld [vmem:[#allocation5 + $0x508] sm:$0xff]
    %v325 = vld [vmem:[#allocation5 + $0x510] sm:$0xff]
    %v326 = vld [vmem:[#allocation5 + $0x518] sm:$0xff]
    %v327 = vld [vmem:[#allocation5 + $0x520] sm:$0xff]
    %v328 = vld [vmem:[#allocation5 + $0x528] sm:$0xff]
    %v329 = vld [vmem:[#allocation5 + $0x530] sm:$0xff]
    %v330 = vld [vmem:[#allocation5 + $0x538] sm:$0xff]
    %v331 = vld [vmem:[#allocation5 + $0x540] sm:$0xff]
    %v332 = vld [vmem:[#allocation5 + $0x548] sm:$0xff]
    %v333 = vld [vmem:[#allocation5 + $0x550] sm:$0xff]
    %v334 = vld [vmem:[#allocation5 + $0x558] sm:$0xff]
    %v335 = vld [vmem:[#allocation5 + $0x560] sm:$0xff]
    %v336 = vld [vmem:[#allocation5 + $0x568] sm:$0xff]
    %v337 = vld [vmem:[#allocation5 + $0x570] sm:$0xff]
    %v338 = vld [vmem:[#allocation5 + $0x578] sm:$0xff]
    %v339 = vld [vmem:[#allocation5 + $0x580] sm:$0xff]
    %v340 = vld [vmem:[#allocation5 + $0x588] sm:$0xff]
    %v341 = vld [vmem:[#allocation5 + $0x590] sm:$0xff]
    %v342 = vld [vmem:[#allocation5 + $0x598] sm:$0xff]
    %v343 = vld [vmem:[#allocation5 + $0x5a0] sm:$0xff]
    %v344 = vld [vmem:[#allocation5 + $0x5a8] sm:$0xff]
    %v345 = vld [vmem:[#allocation5 + $0x5b0] sm:$0xff]
    %v346 = vld [vmem:[#allocation5 + $0x5b8] sm:$0xff]
    %v347 = vld [vmem:[#allocation5 + $0x5c0] sm:$0xff]
    %v348 = vld [vmem:[#allocation5 + $0x5c8] sm:$0xff]
    %v349 = vld [vmem:[#allocation5 + $0x5d0] sm:$0xff]
    %v350 = vld [vmem:[#allocation5 + $0x5d8] sm:$0xff]
    %v351 = vld [vmem:[#allocation5 + $0x5e0] sm:$0xff]
    %v352 = vld [vmem:[#allocation5 + $0x5e8] sm:$0xff]
    %v353 = vld [vmem:[#allocation5 + $0x5f0] sm:$0xff]
    %v354 = vld [vmem:[#allocation5 + $0x5f8] sm:$0xff]
    %v355 = vld [vmem:[#allocation5 + $0x600] sm:$0xff]
    %v356 = vld [vmem:[#allocation5 + $0x608] sm:$0xff]
    %v357 = vld [vmem:[#allocation5 + $0x610] sm:$0xff]
    %v358 = vld [vmem:[#allocation5 + $0x618] sm:$0xff]
    %v359 = vld [vmem:[#allocation5 + $0x620] sm:$0xff]
    %v360 = vld [vmem:[#allocation5 + $0x628] sm:$0xff]
    %v361 = vld [vmem:[#allocation5 + $0x630] sm:$0xff]
    %v362 = vld [vmem:[#allocation5 + $0x638] sm:$0xff]
    %v363 = vld [vmem:[#allocation5 + $0x640] sm:$0xff]
    %v364 = vld [vmem:[#allocation5 + $0x648] sm:$0xff]
    %v365 = vld [vmem:[#allocation5 + $0x650] sm:$0xff]
    %v366 = vld [vmem:[#allocation5 + $0x658] sm:$0xff]
    %v367 = vld [vmem:[#allocation5 + $0x660] sm:$0xff]
    %v368 = vld [vmem:[#allocation5 + $0x668] sm:$0xff]
    %v369 = vld [vmem:[#allocation5 + $0x670] sm:$0xff]
    %v370 = vld [vmem:[#allocation5 + $0x678] sm:$0xff]
    %v371 = vld [vmem:[#allocation5 + $0x680] sm:$0xff]
    %v372 = vld [vmem:[#allocation5 + $0x688] sm:$0xff]
    %v373 = vld [vmem:[#allocation5 + $0x690] sm:$0xff]
    %v374 = vld [vmem:[#allocation5 + $0x698] sm:$0xff]
    %v375 = vld [vmem:[#allocation5 + $0x6a0] sm:$0xff]
    %v376 = vld [vmem:[#allocation5 + $0x6a8] sm:$0xff]
    %v377 = vld [vmem:[#allocation5 + $0x6b0] sm:$0xff]
    %v378 = vld [vmem:[#allocation5 + $0x6b8] sm:$0xff]
    %v379 = vld [vmem:[#allocation5 + $0x6c0] sm:$0xff]
    %v380 = vld [vmem:[#allocation5 + $0x6c8] sm:$0xff]
    %v381 = vld [vmem:[#allocation5 + $0x6d0] sm:$0xff]
    %v382 = vld [vmem:[#allocation5 + $0x6d8] sm:$0xff]
    %v383 = vld [vmem:[#allocation5 + $0x6e0] sm:$0xff]
    %v384 = vld [vmem:[#allocation5 + $0x6e8] sm:$0xff]
    %v385 = vld [vmem:[#allocation5 + $0x6f0] sm:$0xff]
    %v386 = vld [vmem:[#allocation5 + $0x6f8] sm:$0xff]
    %v387 = vld [vmem:[#allocation5 + $0x700] sm:$0xff]
    %v388 = vld [vmem:[#allocation5 + $0x708] sm:$0xff]
    %v389 = vld [vmem:[#allocation5 + $0x710] sm:$0xff]
    %v390 = vld [vmem:[#allocation5 + $0x718] sm:$0xff]
    %v391 = vld [vmem:[#allocation5 + $0x720] sm:$0xff]
    %v392 = vld [vmem:[#allocation5 + $0x728] sm:$0xff]
    %v393 = vld [vmem:[#allocation5 + $0x730] sm:$0xff]
    %v394 = vld [vmem:[#allocation5 + $0x738] sm:$0xff]
    %v395 = vld [vmem:[#allocation5 + $0x740] sm:$0xff]
    %v396 = vld [vmem:[#allocation5 + $0x748] sm:$0xff]
    %v397 = vld [vmem:[#allocation5 + $0x750] sm:$0xff]
    %v398 = vld [vmem:[#allocation5 + $0x758] sm:$0xff]
    %v399 = vld [vmem:[#allocation5 + $0x760] sm:$0xff]
    %v400 = vld [vmem:[#allocation5 + $0x768] sm:$0xff]
    %v401 = vld [vmem:[#allocation5 + $0x770] sm:$0xff]
    %v402 = vld [vmem:[#allocation5 + $0x778] sm:$0xff]
    %v403 = vld [vmem:[#allocation5 + $0x780] sm:$0xff]
    %v404 = vld [vmem:[#allocation5 + $0x788] sm:$0xff]
    %v405 = vld [vmem:[#allocation5 + $0x790] sm:$0xff]
    %v406 = vld [vmem:[#allocation5 + $0x798] sm:$0xff]
    %v407 = vld [vmem:[#allocation5 + $0x7a0] sm:$0xff]
    %v408 = vld [vmem:[#allocation5 + $0x7a8] sm:$0xff]
    %v409 = vld [vmem:[#allocation5 + $0x7b0] sm:$0xff]
    %v410 = vld [vmem:[#allocation5 + $0x7b8] sm:$0xff]
    %v411 = vld [vmem:[#allocation5 + $0x7c0] sm:$0xff]
    %v412 = vld [vmem:[#allocation5 + $0x7c8] sm:$0xff]
    %v413 = vld [vmem:[#allocation5 + $0x7d0] sm:$0xff]
    %v414 = vld [vmem:[#allocation5 + $0x7d8] sm:$0xff]
    %v415 = vld [vmem:[#allocation5 + $0x7e0] sm:$0xff]
    %v416 = vld [vmem:[#allocation5 + $0x7e8] sm:$0xff]
    %v417 = vld [vmem:[#allocation5 + $0x7f0] sm:$0xff]
    %v418 = vld [vmem:[#allocation5 + $0x7f8] sm:$0xff]
    %v419 = vld [vmem:[#allocation5 + $0x800] sm:$0xff]
    %v420 = vld [vmem:[#allocation5 + $0x808] sm:$0xff]
    %v421 = vld [vmem:[#allocation5 + $0x810] sm:$0xff]
    %v422 = vld [vmem:[#allocation5 + $0x818] sm:$0xff]
    %v423 = vld [vmem:[#allocation5 + $0x820] sm:$0xff]
    %v424 = vld [vmem:[#allocation5 + $0x828] sm:$0xff]
    %v425 = vld [vmem:[#allocation5 + $0x830] sm:$0xff]
    %v426 = vld [vmem:[#allocation5 + $0x838] sm:$0xff]
    %v427 = vld [vmem:[#allocation5 + $0x840] sm:$0xff]
    %v428 = vld [vmem:[#allocation5 + $0x848] sm:$0xff]
    %v429 = vld [vmem:[#allocation5 + $0x850] sm:$0xff]
    %v430 = vld [vmem:[#allocation5 + $0x858] sm:$0xff]
    %v431 = vld [vmem:[#allocation5 + $0x860] sm:$0xff]
    %v432 = vld [vmem:[#allocation5 + $0x868] sm:$0xff]
    %v433 = vld [vmem:[#allocation5 + $0x870] sm:$0xff]
    %v434 = vld [vmem:[#allocation5 + $0x878] sm:$0xff]
    %v435 = vld [vmem:[#allocation5 + $0x880] sm:$0xff]
    %v436 = vld [vmem:[#allocation5 + $0x888] sm:$0xff]
    %v437 = vld [vmem:[#allocation5 + $0x890] sm:$0xff]
    %v438 = vld [vmem:[#allocation5 + $0x898] sm:$0xff]
    %v439 = vld [vmem:[#allocation5 + $0x8a0] sm:$0xff]
    %v440 = vld [vmem:[#allocation5 + $0x8a8] sm:$0xff]
    %v441 = vld [vmem:[#allocation5 + $0x8b0] sm:$0xff]
    %v442 = vld [vmem:[#allocation5 + $0x8b8] sm:$0xff]
    %v443 = vld [vmem:[#allocation5 + $0x8c0] sm:$0xff]
    %v444 = vld [vmem:[#allocation5 + $0x8c8] sm:$0xff]
    %v445 = vld [vmem:[#allocation5 + $0x8d0] sm:$0xff]
    %v446 = vld [vmem:[#allocation5 + $0x8d8] sm:$0xff]
    %v447 = vld [vmem:[#allocation5 + $0x8e0] sm:$0xff]
    %v448 = vld [vmem:[#allocation5 + $0x8e8] sm:$0xff]
    %v449 = vld [vmem:[#allocation5 + $0x8f0] sm:$0xff]
    %v450 = vld [vmem:[#allocation5 + $0x8f8] sm:$0xff]
    %v451 = vld [vmem:[#allocation5 + $0x900] sm:$0xff]
    %v452 = vld [vmem:[#allocation5 + $0x908] sm:$0xff]
    %v453 = vld [vmem:[#allocation5 + $0x910] sm:$0xff]
    %v454 = vld [vmem:[#allocation5 + $0x918] sm:$0xff]
    %v455 = vld [vmem:[#allocation5 + $0x920] sm:$0xff]
    %v456 = vld [vmem:[#allocation5 + $0x928] sm:$0xff]
    %v457 = vld [vmem:[#allocation5 + $0x930] sm:$0xff]
    %v458 = vld [vmem:[#allocation5 + $0x938] sm:$0xff]
    %v459 = vld [vmem:[#allocation5 + $0x940] sm:$0xff]
    %v460 = vld [vmem:[#allocation5 + $0x948] sm:$0xff]
    %v461 = vld [vmem:[#allocation5 + $0x950] sm:$0xff]
    %v462 = vld [vmem:[#allocation5 + $0x958] sm:$0xff]
    %v463 = vld [vmem:[#allocation5 + $0x960] sm:$0xff]
    %v464 = vld [vmem:[#allocation5 + $0x968] sm:$0xff]
    %v465 = vld [vmem:[#allocation5 + $0x970] sm:$0xff]
    %v466 = vld [vmem:[#allocation5 + $0x978] sm:$0xff]
    %v467 = vld [vmem:[#allocation5 + $0x980] sm:$0xff]
    %v468 = vld [vmem:[#allocation5 + $0x988] sm:$0xff]
    %v469 = vld [vmem:[#allocation5 + $0x990] sm:$0xff]
    %v470 = vld [vmem:[#allocation5 + $0x998] sm:$0xff]
    %v471 = vld [vmem:[#allocation5 + $0x9a0] sm:$0xff]
    %v472 = vld [vmem:[#allocation5 + $0x9a8] sm:$0xff]
    %v473 = vld [vmem:[#allocation5 + $0x9b0] sm:$0xff]
    %v474 = vld [vmem:[#allocation5 + $0x9b8] sm:$0xff]
    %v475 = vld [vmem:[#allocation5 + $0x9c0] sm:$0xff]
    %v476 = vld [vmem:[#allocation5 + $0x9c8] sm:$0xff]
    %v477 = vld [vmem:[#allocation5 + $0x9d0] sm:$0xff]
    %v478 = vld [vmem:[#allocation5 + $0x9d8] sm:$0xff]
    %v479 = vld [vmem:[#allocation5 + $0x9e0] sm:$0xff]
    %v480 = vld [vmem:[#allocation5 + $0x9e8] sm:$0xff]
    %v481 = vld [vmem:[#allocation5 + $0x9f0] sm:$0xff]
    %v482 = vld [vmem:[#allocation5 + $0x9f8] sm:$0xff]
    %v483 = vld [vmem:[#allocation5 + $0xa00] sm:$0xff]
    %v484 = vld [vmem:[#allocation5 + $0xa08] sm:$0xff]
    %v485 = vld [vmem:[#allocation5 + $0xa10] sm:$0xff]
    %v486 = vld [vmem:[#allocation5 + $0xa18] sm:$0xff]
    %v487 = vld [vmem:[#allocation5 + $0xa20] sm:$0xff]
    %v488 = vld [vmem:[#allocation5 + $0xa28] sm:$0xff]
    %v489 = vld [vmem:[#allocation5 + $0xa30] sm:$0xff]
    %v490 = vld [vmem:[#allocation5 + $0xa38] sm:$0xff]
    %v491 = vld [vmem:[#allocation5 + $0xa40] sm:$0xff]
    %v492 = vld [vmem:[#allocation5 + $0xa48] sm:$0xff]
    %v493 = vld [vmem:[#allocation5 + $0xa50] sm:$0xff]
    %v494 = vld [vmem:[#allocation5 + $0xa58] sm:$0xff]
    %v495 = vld [vmem:[#allocation5 + $0xa60] sm:$0xff]
    %v496 = vld [vmem:[#allocation5 + $0xa68] sm:$0xff]
    %v497 = vld [vmem:[#allocation5 + $0xa70] sm:$0xff]
    %v498 = vld [vmem:[#allocation5 + $0xa78] sm:$0xff]
    %v499 = vld [vmem:[#allocation5 + $0xa80] sm:$0xff]
    %v500 = vld [vmem:[#allocation5 + $0xa88] sm:$0xff]
    %v501 = vld [vmem:[#allocation5 + $0xa90] sm:$0xff]
    %v502 = vld [vmem:[#allocation5 + $0xa98] sm:$0xff]
    %v503 = vld [vmem:[#allocation5 + $0xaa0] sm:$0xff]
    %v504 = vld [vmem:[#allocation5 + $0xaa8] sm:$0xff]
    %v505 = vld [vmem:[#allocation5 + $0xab0] sm:$0xff]
    %v506 = vld [vmem:[#allocation5 + $0xab8] sm:$0xff]
    %v507 = vld [vmem:[#allocation5 + $0xac0] sm:$0xff]
    %v508 = vld [vmem:[#allocation5 + $0xac8] sm:$0xff]
    %v509 = vld [vmem:[#allocation5 + $0xad0] sm:$0xff]
    %v510 = vld [vmem:[#allocation5 + $0xad8] sm:$0xff]
    %v511 = vld [vmem:[#allocation5 + $0xae0] sm:$0xff]
    %v512 = vld [vmem:[#allocation5 + $0xae8] sm:$0xff]
    %v513 = vld [vmem:[#allocation5 + $0xaf0] sm:$0xff]
    %v514 = vld [vmem:[#allocation5 + $0xaf8] sm:$0xff]
    %v515 = vld [vmem:[#allocation5 + $0xb00] sm:$0xff]
    %v516 = vld [vmem:[#allocation5 + $0xb08] sm:$0xff]
    %v517 = vld [vmem:[#allocation5 + $0xb10] sm:$0xff]
    %v518 = vld [vmem:[#allocation5 + $0xb18] sm:$0xff]
    %v519 = vld [vmem:[#allocation5 + $0xb20] sm:$0xff]
    %v520 = vld [vmem:[#allocation5 + $0xb28] sm:$0xff]
    %v521 = vld [vmem:[#allocation5 + $0xb30] sm:$0xff]
    %v522 = vld [vmem:[#allocation5 + $0xb38] sm:$0xff]
    %v523 = vld [vmem:[#allocation5 + $0xb40] sm:$0xff]
    %v524 = vld [vmem:[#allocation5 + $0xb48] sm:$0xff]
    %v525 = vld [vmem:[#allocation5 + $0xb50] sm:$0xff]
    %v526 = vld [vmem:[#allocation5 + $0xb58] sm:$0xff]
    %v527 = vld [vmem:[#allocation5 + $0xb60] sm:$0xff]
    %v528 = vld [vmem:[#allocation5 + $0xb68] sm:$0xff]
    %v529 = vld [vmem:[#allocation5 + $0xb70] sm:$0xff]
    %v530 = vld [vmem:[#allocation5 + $0xb78] sm:$0xff]
    %v531 = vld [vmem:[#allocation5 + $0xb80] sm:$0xff]
    %v532 = vld [vmem:[#allocation5 + $0xb88] sm:$0xff]
    %v533 = vld [vmem:[#allocation5 + $0xb90] sm:$0xff]
    %v534 = vld [vmem:[#allocation5 + $0xb98] sm:$0xff]
    %v535 = vld [vmem:[#allocation5 + $0xba0] sm:$0xff]
    %v536 = vld [vmem:[#allocation5 + $0xba8] sm:$0xff]
    %v537 = vld [vmem:[#allocation5 + $0xbb0] sm:$0xff]
    %v538 = vld [vmem:[#allocation5 + $0xbb8] sm:$0xff]
    %v539 = vld [vmem:[#allocation5 + $0xbc0] sm:$0xff]
    %v540 = vld [vmem:[#allocation5 + $0xbc8] sm:$0xff]
    %v541 = vld [vmem:[#allocation5 + $0xbd0] sm:$0xff]
    %v542 = vld [vmem:[#allocation5 + $0xbd8] sm:$0xff]
    %v543 = vld [vmem:[#allocation5 + $0xbe0] sm:$0xff]
    %v544 = vld [vmem:[#allocation5 + $0xbe8] sm:$0xff]
    %v545 = vld [vmem:[#allocation5 + $0xbf0] sm:$0xff]
    %v546 = vld [vmem:[#allocation5 + $0xbf8] sm:$0xff]
    %v547 = vld [vmem:[#allocation5 + $0xc00] sm:$0xff]
    %v548 = vld [vmem:[#allocation5 + $0xc08] sm:$0xff]
    %v549 = vld [vmem:[#allocation5 + $0xc10] sm:$0xff]
    %v550 = vld [vmem:[#allocation5 + $0xc18] sm:$0xff]
    %v551 = vld [vmem:[#allocation5 + $0xc20] sm:$0xff]
    %v552 = vld [vmem:[#allocation5 + $0xc28] sm:$0xff]
    %v553 = vld [vmem:[#allocation5 + $0xc30] sm:$0xff]
    %v554 = vld [vmem:[#allocation5 + $0xc38] sm:$0xff]
    %v555 = vld [vmem:[#allocation5 + $0xc40] sm:$0xff]
    %v556 = vld [vmem:[#allocation5 + $0xc48] sm:$0xff]
    %v557 = vld [vmem:[#allocation5 + $0xc50] sm:$0xff]
    %v558 = vld [vmem:[#allocation5 + $0xc58] sm:$0xff]
    %v559 = vld [vmem:[#allocation5 + $0xc60] sm:$0xff]
    %v560 = vld [vmem:[#allocation5 + $0xc68] sm:$0xff]
    %v561 = vld [vmem:[#allocation5 + $0xc70] sm:$0xff]
    %v562 = vld [vmem:[#allocation5 + $0xc78] sm:$0xff]
    %v563 = vld [vmem:[#allocation5 + $0xc80] sm:$0xff]
    %v564 = vld [vmem:[#allocation5 + $0xc88] sm:$0xff]
    %v565 = vld [vmem:[#allocation5 + $0xc90] sm:$0xff]
    %v566 = vld [vmem:[#allocation5 + $0xc98] sm:$0xff]
    %v567 = vld [vmem:[#allocation5 + $0xca0] sm:$0xff]
    %v568 = vld [vmem:[#allocation5 + $0xca8] sm:$0xff]
    %v569 = vld [vmem:[#allocation5 + $0xcb0] sm:$0xff]
    %v570 = vld [vmem:[#allocation5 + $0xcb8] sm:$0xff]
    %v571 = vld [vmem:[#allocation5 + $0xcc0] sm:$0xff]
    %v572 = vld [vmem:[#allocation5 + $0xcc8] sm:$0xff]
    %v573 = vld [vmem:[#allocation5 + $0xcd0] sm:$0xff]
    %v574 = vld [vmem:[#allocation5 + $0xcd8] sm:$0xff]
    %v575 = vld [vmem:[#allocation5 + $0xce0] sm:$0xff]
    %v576 = vld [vmem:[#allocation5 + $0xce8] sm:$0xff]
    %v577 = vld [vmem:[#allocation5 + $0xcf0] sm:$0xff]
    %v578 = vld [vmem:[#allocation5 + $0xcf8] sm:$0xff]
    %v579 = vld [vmem:[#allocation5 + $0xd00] sm:$0xff]
    %v580 = vld [vmem:[#allocation5 + $0xd08] sm:$0xff]
    %v581 = vld [vmem:[#allocation5 + $0xd10] sm:$0xff]
    %v582 = vld [vmem:[#allocation5 + $0xd18] sm:$0xff]
    %v583 = vld [vmem:[#allocation5 + $0xd20] sm:$0xff]
    %v584 = vld [vmem:[#allocation5 + $0xd28] sm:$0xff]
    %v585 = vld [vmem:[#allocation5 + $0xd30] sm:$0xff]
    %v586 = vld [vmem:[#allocation5 + $0xd38] sm:$0xff]
    %v587 = vld [vmem:[#allocation5 + $0xd40] sm:$0xff]
    %v588 = vld [vmem:[#allocation5 + $0xd48] sm:$0xff]
    %v589 = vld [vmem:[#allocation5 + $0xd50] sm:$0xff]
    %v590 = vld [vmem:[#allocation5 + $0xd58] sm:$0xff]
    %v591 = vld [vmem:[#allocation5 + $0xd60] sm:$0xff]
    %v592 = vld [vmem:[#allocation5 + $0xd68] sm:$0xff]
    %v593 = vld [vmem:[#allocation5 + $0xd70] sm:$0xff]
    %v594 = vld [vmem:[#allocation5 + $0xd78] sm:$0xff]
    %v595 = vld [vmem:[#allocation5 + $0xd80] sm:$0xff]
    %v596 = vld [vmem:[#allocation5 + $0xd88] sm:$0xff]
    %v597 = vld [vmem:[#allocation5 + $0xd90] sm:$0xff]
    %v598 = vld [vmem:[#allocation5 + $0xd98] sm:$0xff]
    %v599 = vld [vmem:[#allocation5 + $0xda0] sm:$0xff]
    %v600 = vld [vmem:[#allocation5 + $0xda8] sm:$0xff]
    %v601 = vld [vmem:[#allocation5 + $0xdb0] sm:$0xff]
    %v602 = vld [vmem:[#allocation5 + $0xdb8] sm:$0xff]
    %v603 = vld [vmem:[#allocation5 + $0xdc0] sm:$0xff]
    %v604 = vld [vmem:[#allocation5 + $0xdc8] sm:$0xff]
    %v605 = vld [vmem:[#allocation5 + $0xdd0] sm:$0xff]
    %v606 = vld [vmem:[#allocation5 + $0xdd8] sm:$0xff]
    %v607 = vld [vmem:[#allocation5 + $0xde0] sm:$0xff]
    %v608 = vld [vmem:[#allocation5 + $0xde8] sm:$0xff]
    %v609 = vld [vmem:[#allocation5 + $0xdf0] sm:$0xff]
    %v610 = vld [vmem:[#allocation5 + $0xdf8] sm:$0xff]
    %v611 = vld [vmem:[#allocation5 + $0xe00] sm:$0xff]
    %v612 = vld [vmem:[#allocation5 + $0xe08] sm:$0xff]
    %v613 = vld [vmem:[#allocation5 + $0xe10] sm:$0xff]
    %v614 = vld [vmem:[#allocation5 + $0xe18] sm:$0xff]
    %v615 = vld [vmem:[#allocation5 + $0xe20] sm:$0xff]
    %v616 = vld [vmem:[#allocation5 + $0xe28] sm:$0xff]
    %v617 = vld [vmem:[#allocation5 + $0xe30] sm:$0xff]
    %v618 = vld [vmem:[#allocation5 + $0xe38] sm:$0xff]
    %v619 = vld [vmem:[#allocation5 + $0xe40] sm:$0xff]
    %v620 = vld [vmem:[#allocation5 + $0xe48] sm:$0xff]
    %v621 = vld [vmem:[#allocation5 + $0xe50] sm:$0xff]
    %v622 = vld [vmem:[#allocation5 + $0xe58] sm:$0xff]
    %v623 = vld [vmem:[#allocation5 + $0xe60] sm:$0xff]
    %v624 = vld [vmem:[#allocation5 + $0xe68] sm:$0xff]
    %v625 = vld [vmem:[#allocation5 + $0xe70] sm:$0xff]
    %v626 = vld [vmem:[#allocation5 + $0xe78] sm:$0xff]
    %v627 = vld [vmem:[#allocation5 + $0xe80] sm:$0xff]
    %v628 = vld [vmem:[#allocation5 + $0xe88] sm:$0xff]
    %v629 = vld [vmem:[#allocation5 + $0xe90] sm:$0xff]
    %v630 = vld [vmem:[#allocation5 + $0xe98] sm:$0xff]
    %v631 = vld [vmem:[#allocation5 + $0xea0] sm:$0xff]
    %v632 = vld [vmem:[#allocation5 + $0xea8] sm:$0xff]
    %v633 = vld [vmem:[#allocation5 + $0xeb0] sm:$0xff]
    %v634 = vld [vmem:[#allocation5 + $0xeb8] sm:$0xff]
    %v635 = vld [vmem:[#allocation5 + $0xec0] sm:$0xff]
    %v636 = vld [vmem:[#allocation5 + $0xec8] sm:$0xff]
    %v637 = vld [vmem:[#allocation5 + $0xed0] sm:$0xff]
    %v638 = vld [vmem:[#allocation5 + $0xed8] sm:$0xff]
    %v639 = vld [vmem:[#allocation5 + $0xee0] sm:$0xff]
    %v640 = vld [vmem:[#allocation5 + $0xee8] sm:$0xff]
    %v641 = vld [vmem:[#allocation5 + $0xef0] sm:$0xff]
    %v642 = vld [vmem:[#allocation5 + $0xef8] sm:$0xff]
    %v643 = vld [vmem:[#allocation5 + $0xf00] sm:$0xff]
    %v644 = vld [vmem:[#allocation5 + $0xf08] sm:$0xff]
    %v645 = vld [vmem:[#allocation5 + $0xf10] sm:$0xff]
    %v646 = vld [vmem:[#allocation5 + $0xf18] sm:$0xff]
    %v647 = vld [vmem:[#allocation5 + $0xf20] sm:$0xff]
    %v648 = vld [vmem:[#allocation5 + $0xf28] sm:$0xff]
    %v649 = vld [vmem:[#allocation5 + $0xf30] sm:$0xff]
    %v650 = vld [vmem:[#allocation5 + $0xf38] sm:$0xff]
    %v651 = vld [vmem:[#allocation5 + $0xf40] sm:$0xff]
    %v652 = vld [vmem:[#allocation5 + $0xf48] sm:$0xff]
    %v653 = vld [vmem:[#allocation5 + $0xf50] sm:$0xff]
    %v654 = vld [vmem:[#allocation5 + $0xf58] sm:$0xff]
    %v655 = vld [vmem:[#allocation5 + $0xf60] sm:$0xff]
    %v656 = vld [vmem:[#allocation5 + $0xf68] sm:$0xff]
    %v657 = vld [vmem:[#allocation5 + $0xf70] sm:$0xff]
    %v658 = vld [vmem:[#allocation5 + $0xf78] sm:$0xff]
    %v659 = vld [vmem:[#allocation5 + $0xf80] sm:$0xff]
    %v660 = vld [vmem:[#allocation5 + $0xf88] sm:$0xff]
    %v661 = vld [vmem:[#allocation5 + $0xf90] sm:$0xff]
    %v662 = vld [vmem:[#allocation5 + $0xf98] sm:$0xff]
    %v663 = vld [vmem:[#allocation5 + $0xfa0] sm:$0xff]
    %v664 = vld [vmem:[#allocation5 + $0xfa8] sm:$0xff]
    %v665 = vld [vmem:[#allocation5 + $0xfb0] sm:$0xff]
    %v666 = vld [vmem:[#allocation5 + $0xfb8] sm:$0xff]
    %v667 = vld [vmem:[#allocation5 + $0xfc0] sm:$0xff]
    %v668 = vld [vmem:[#allocation5 + $0xfc8] sm:$0xff]
    %v669 = vld [vmem:[#allocation5 + $0xfd0] sm:$0xff]
    %v670 = vld [vmem:[#allocation5 + $0xfd8] sm:$0xff]
    %v671 = vld [vmem:[#allocation5 + $0xfe0] sm:$0xff]
    %v672 = vld [vmem:[#allocation5 + $0xfe8] sm:$0xff]
    %v673 = vld [vmem:[#allocation5 + $0xff0] sm:$0xff]
    %v674 = vld [vmem:[#allocation5 + $0xff8] sm:$0xff]
    %v1187 = vunpack.c.l.b16 %v163
    %v1188 = vunpack.c.h.b16 %v163
    %v1189 = vunpack.c.l.b16 %v164
    %v1190 = vunpack.c.h.b16 %v164
    %v1191 = vunpack.c.l.b16 %v165
    %v1192 = vunpack.c.h.b16 %v165
    %v1193 = vunpack.c.l.b16 %v166
    %v1194 = vunpack.c.h.b16 %v166
    %v1195 = vunpack.c.l.b16 %v167
    %v1196 = vunpack.c.h.b16 %v167
    %v1197 = vunpack.c.l.b16 %v168
    %v1198 = vunpack.c.h.b16 %v168
    %v1199 = vunpack.c.l.b16 %v169
    %v1200 = vunpack.c.h.b16 %v169
    %v1201 = vunpack.c.l.b16 %v170
    %v1202 = vunpack.c.h.b16 %v170
    %v1203 = vunpack.c.l.b16 %v171
    %v1204 = vunpack.c.h.b16 %v171
    %v1205 = vunpack.c.l.b16 %v172
    %v1206 = vunpack.c.h.b16 %v172
    %v1207 = vunpack.c.l.b16 %v173
    %v1208 = vunpack.c.h.b16 %v173
    %v1209 = vunpack.c.l.b16 %v174
    %v1210 = vunpack.c.h.b16 %v174
    %v1211 = vunpack.c.l.b16 %v175
    %v1212 = vunpack.c.h.b16 %v175
    %v1213 = vunpack.c.l.b16 %v176
    %v1214 = vunpack.c.h.b16 %v176
    %v1215 = vunpack.c.l.b16 %v177
    %v1216 = vunpack.c.h.b16 %v177
    %v1217 = vunpack.c.l.b16 %v178
    %v1218 = vunpack.c.h.b16 %v178
    %v1219 = vunpack.c.l.b16 %v179
    %v1220 = vunpack.c.h.b16 %v179
    %v1221 = vunpack.c.l.b16 %v180
    %v1222 = vunpack.c.h.b16 %v180
    %v1223 = vunpack.c.l.b16 %v181
    %v1224 = vunpack.c.h.b16 %v181
    %v1225 = vunpack.c.l.b16 %v182
    %v1226 = vunpack.c.h.b16 %v182
    %v1227 = vunpack.c.l.b16 %v183
    %v1228 = vunpack.c.h.b16 %v183
    %v1229 = vunpack.c.l.b16 %v184
    %v1230 = vunpack.c.h.b16 %v184
    %v1231 = vunpack.c.l.b16 %v185
    %v1232 = vunpack.c.h.b16 %v185
    %v1233 = vunpack.c.l.b16 %v186
    %v1234 = vunpack.c.h.b16 %v186
    %v1235 = vunpack.c.l.b16 %v187
    %v1236 = vunpack.c.h.b16 %v187
    %v1237 = vunpack.c.l.b16 %v188
    %v1238 = vunpack.c.h.b16 %v188
    %v1239 = vunpack.c.l.b16 %v189
    %v1240 = vunpack.c.h.b16 %v189
    %v1241 = vunpack.c.l.b16 %v190
    %v1242 = vunpack.c.h.b16 %v190
    %v1243 = vunpack.c.l.b16 %v191
    %v1244 = vunpack.c.h.b16 %v191
    %v1245 = vunpack.c.l.b16 %v192
    %v1246 = vunpack.c.h.b16 %v192
    %v1247 = vunpack.c.l.b16 %v193
    %v1248 = vunpack.c.h.b16 %v193
    %v1249 = vunpack.c.l.b16 %v194
    %v1250 = vunpack.c.h.b16 %v194
    %v1251 = vunpack.c.l.b16 %v195
    %v1252 = vunpack.c.h.b16 %v195
    %v1253 = vunpack.c.l.b16 %v196
    %v1254 = vunpack.c.h.b16 %v196
    %v1255 = vunpack.c.l.b16 %v197
    %v1256 = vunpack.c.h.b16 %v197
    %v1257 = vunpack.c.l.b16 %v198
    %v1258 = vunpack.c.h.b16 %v198
    %v1259 = vunpack.c.l.b16 %v199
    %v1260 = vunpack.c.h.b16 %v199
    %v1261 = vunpack.c.l.b16 %v200
    %v1262 = vunpack.c.h.b16 %v200
    %v1263 = vunpack.c.l.b16 %v201
    %v1264 = vunpack.c.h.b16 %v201
    %v1265 = vunpack.c.l.b16 %v202
    %v1266 = vunpack.c.h.b16 %v202
    %v1267 = vunpack.c.l.b16 %v203
    %v1268 = vunpack.c.h.b16 %v203
    %v1269 = vunpack.c.l.b16 %v204
    %v1270 = vunpack.c.h.b16 %v204
    %v1271 = vunpack.c.l.b16 %v205
    %v1272 = vunpack.c.h.b16 %v205
    %v1273 = vunpack.c.l.b16 %v206
    %v1274 = vunpack.c.h.b16 %v206
    %v1275 = vunpack.c.l.b16 %v207
    %v1276 = vunpack.c.h.b16 %v207
    %v1277 = vunpack.c.l.b16 %v208
    %v1278 = vunpack.c.h.b16 %v208
    %v1279 = vunpack.c.l.b16 %v209
    %v1280 = vunpack.c.h.b16 %v209
    %v1281 = vunpack.c.l.b16 %v210
    %v1282 = vunpack.c.h.b16 %v210
    %v1283 = vunpack.c.l.b16 %v211
    %v1284 = vunpack.c.h.b16 %v211
    %v1285 = vunpack.c.l.b16 %v212
    %v1286 = vunpack.c.h.b16 %v212
    %v1287 = vunpack.c.l.b16 %v213
    %v1288 = vunpack.c.h.b16 %v213
    %v1289 = vunpack.c.l.b16 %v214
    %v1290 = vunpack.c.h.b16 %v214
    %v1291 = vunpack.c.l.b16 %v215
    %v1292 = vunpack.c.h.b16 %v215
    %v1293 = vunpack.c.l.b16 %v216
    %v1294 = vunpack.c.h.b16 %v216
    %v1295 = vunpack.c.l.b16 %v217
    %v1296 = vunpack.c.h.b16 %v217
    %v1297 = vunpack.c.l.b16 %v218
    %v1298 = vunpack.c.h.b16 %v218
    %v1299 = vunpack.c.l.b16 %v219
    %v1300 = vunpack.c.h.b16 %v219
    %v1301 = vunpack.c.l.b16 %v220
    %v1302 = vunpack.c.h.b16 %v220
    %v1303 = vunpack.c.l.b16 %v221
    %v1304 = vunpack.c.h.b16 %v221
    %v1305 = vunpack.c.l.b16 %v222
    %v1306 = vunpack.c.h.b16 %v222
    %v1307 = vunpack.c.l.b16 %v223
    %v1308 = vunpack.c.h.b16 %v223
    %v1309 = vunpack.c.l.b16 %v224
    %v1310 = vunpack.c.h.b16 %v224
    %v1311 = vunpack.c.l.b16 %v225
    %v1312 = vunpack.c.h.b16 %v225
    %v1313 = vunpack.c.l.b16 %v226
    %v1314 = vunpack.c.h.b16 %v226
    %v1315 = vunpack.c.l.b16 %v227
    %v1316 = vunpack.c.h.b16 %v227
    %v1317 = vunpack.c.l.b16 %v228
    %v1318 = vunpack.c.h.b16 %v228
    %v1319 = vunpack.c.l.b16 %v229
    %v1320 = vunpack.c.h.b16 %v229
    %v1321 = vunpack.c.l.b16 %v230
    %v1322 = vunpack.c.h.b16 %v230
    %v1323 = vunpack.c.l.b16 %v231
    %v1324 = vunpack.c.h.b16 %v231
    %v1325 = vunpack.c.l.b16 %v232
    %v1326 = vunpack.c.h.b16 %v232
    %v1327 = vunpack.c.l.b16 %v233
    %v1328 = vunpack.c.h.b16 %v233
    %v1329 = vunpack.c.l.b16 %v234
    %v1330 = vunpack.c.h.b16 %v234
    %v1331 = vunpack.c.l.b16 %v235
    %v1332 = vunpack.c.h.b16 %v235
    %v1333 = vunpack.c.l.b16 %v236
    %v1334 = vunpack.c.h.b16 %v236
    %v1335 = vunpack.c.l.b16 %v237
    %v1336 = vunpack.c.h.b16 %v237
    %v1337 = vunpack.c.l.b16 %v238
    %v1338 = vunpack.c.h.b16 %v238
    %v1339 = vunpack.c.l.b16 %v239
    %v1340 = vunpack.c.h.b16 %v239
    %v1341 = vunpack.c.l.b16 %v240
    %v1342 = vunpack.c.h.b16 %v240
    %v1343 = vunpack.c.l.b16 %v241
    %v1344 = vunpack.c.h.b16 %v241
    %v1345 = vunpack.c.l.b16 %v242
    %v1346 = vunpack.c.h.b16 %v242
    %v1347 = vunpack.c.l.b16 %v243
    %v1348 = vunpack.c.h.b16 %v243
    %v1349 = vunpack.c.l.b16 %v244
    %v1350 = vunpack.c.h.b16 %v244
    %v1351 = vunpack.c.l.b16 %v245
    %v1352 = vunpack.c.h.b16 %v245
    %v1353 = vunpack.c.l.b16 %v246
    %v1354 = vunpack.c.h.b16 %v246
    %v1355 = vunpack.c.l.b16 %v247
    %v1356 = vunpack.c.h.b16 %v247
    %v1357 = vunpack.c.l.b16 %v248
    %v1358 = vunpack.c.h.b16 %v248
    %v1359 = vunpack.c.l.b16 %v249
    %v1360 = vunpack.c.h.b16 %v249
    %v1361 = vunpack.c.l.b16 %v250
    %v1362 = vunpack.c.h.b16 %v250
    %v1363 = vunpack.c.l.b16 %v251
    %v1364 = vunpack.c.h.b16 %v251
    %v1365 = vunpack.c.l.b16 %v252
    %v1366 = vunpack.c.h.b16 %v252
    %v1367 = vunpack.c.l.b16 %v253
    %v1368 = vunpack.c.h.b16 %v253
    %v1369 = vunpack.c.l.b16 %v254
    %v1370 = vunpack.c.h.b16 %v254
    %v1371 = vunpack.c.l.b16 %v255
    %v1372 = vunpack.c.h.b16 %v255
    %v1373 = vunpack.c.l.b16 %v256
    %v1374 = vunpack.c.h.b16 %v256
    %v1375 = vunpack.c.l.b16 %v257
    %v1376 = vunpack.c.h.b16 %v257
    %v1377 = vunpack.c.l.b16 %v258
    %v1378 = vunpack.c.h.b16 %v258
    %v1379 = vunpack.c.l.b16 %v259
    %v1380 = vunpack.c.h.b16 %v259
    %v1381 = vunpack.c.l.b16 %v260
    %v1382 = vunpack.c.h.b16 %v260
    %v1383 = vunpack.c.l.b16 %v261
    %v1384 = vunpack.c.h.b16 %v261
    %v1385 = vunpack.c.l.b16 %v262
    %v1386 = vunpack.c.h.b16 %v262
    %v1387 = vunpack.c.l.b16 %v263
    %v1388 = vunpack.c.h.b16 %v263
    %v1389 = vunpack.c.l.b16 %v264
    %v1390 = vunpack.c.h.b16 %v264
    %v1391 = vunpack.c.l.b16 %v265
    %v1392 = vunpack.c.h.b16 %v265
    %v1393 = vunpack.c.l.b16 %v266
    %v1394 = vunpack.c.h.b16 %v266
    %v1395 = vunpack.c.l.b16 %v267
    %v1396 = vunpack.c.h.b16 %v267
    %v1397 = vunpack.c.l.b16 %v268
    %v1398 = vunpack.c.h.b16 %v268
    %v1399 = vunpack.c.l.b16 %v269
    %v1400 = vunpack.c.h.b16 %v269
    %v1401 = vunpack.c.l.b16 %v270
    %v1402 = vunpack.c.h.b16 %v270
    %v1403 = vunpack.c.l.b16 %v271
    %v1404 = vunpack.c.h.b16 %v271
    %v1405 = vunpack.c.l.b16 %v272
    %v1406 = vunpack.c.h.b16 %v272
    %v1407 = vunpack.c.l.b16 %v273
    %v1408 = vunpack.c.h.b16 %v273
    %v1409 = vunpack.c.l.b16 %v274
    %v1410 = vunpack.c.h.b16 %v274
    %v1411 = vunpack.c.l.b16 %v275
    %v1412 = vunpack.c.h.b16 %v275
    %v1413 = vunpack.c.l.b16 %v276
    %v1414 = vunpack.c.h.b16 %v276
    %v1415 = vunpack.c.l.b16 %v277
    %v1416 = vunpack.c.h.b16 %v277
    %v1417 = vunpack.c.l.b16 %v278
    %v1418 = vunpack.c.h.b16 %v278
    %v1419 = vunpack.c.l.b16 %v279
    %v1420 = vunpack.c.h.b16 %v279
    %v1421 = vunpack.c.l.b16 %v280
    %v1422 = vunpack.c.h.b16 %v280
    %v1423 = vunpack.c.l.b16 %v281
    %v1424 = vunpack.c.h.b16 %v281
    %v1425 = vunpack.c.l.b16 %v282
    %v1426 = vunpack.c.h.b16 %v282
    %v1427 = vunpack.c.l.b16 %v283
    %v1428 = vunpack.c.h.b16 %v283
    %v1429 = vunpack.c.l.b16 %v284
    %v1430 = vunpack.c.h.b16 %v284
    %v1431 = vunpack.c.l.b16 %v285
    %v1432 = vunpack.c.h.b16 %v285
    %v1433 = vunpack.c.l.b16 %v286
    %v1434 = vunpack.c.h.b16 %v286
    %v1435 = vunpack.c.l.b16 %v287
    %v1436 = vunpack.c.h.b16 %v287
    %v1437 = vunpack.c.l.b16 %v288
    %v1438 = vunpack.c.h.b16 %v288
    %v1439 = vunpack.c.l.b16 %v289
    %v1440 = vunpack.c.h.b16 %v289
    %v1441 = vunpack.c.l.b16 %v290
    %v1442 = vunpack.c.h.b16 %v290
    %v1443 = vunpack.c.l.b16 %v291
    %v1444 = vunpack.c.h.b16 %v291
    %v1445 = vunpack.c.l.b16 %v292
    %v1446 = vunpack.c.h.b16 %v292
    %v1447 = vunpack.c.l.b16 %v293
    %v1448 = vunpack.c.h.b16 %v293
    %v1449 = vunpack.c.l.b16 %v294
    %v1450 = vunpack.c.h.b16 %v294
    %v1451 = vunpack.c.l.b16 %v295
    %v1452 = vunpack.c.h.b16 %v295
    %v1453 = vunpack.c.l.b16 %v296
    %v1454 = vunpack.c.h.b16 %v296
    %v1455 = vunpack.c.l.b16 %v297
    %v1456 = vunpack.c.h.b16 %v297
    %v1457 = vunpack.c.l.b16 %v298
    %v1458 = vunpack.c.h.b16 %v298
    %v1459 = vunpack.c.l.b16 %v299
    %v1460 = vunpack.c.h.b16 %v299
    %v1461 = vunpack.c.l.b16 %v300
    %v1462 = vunpack.c.h.b16 %v300
    %v1463 = vunpack.c.l.b16 %v301
    %v1464 = vunpack.c.h.b16 %v301
    %v1465 = vunpack.c.l.b16 %v302
    %v1466 = vunpack.c.h.b16 %v302
    %v1467 = vunpack.c.l.b16 %v303
    %v1468 = vunpack.c.h.b16 %v303
    %v1469 = vunpack.c.l.b16 %v304
    %v1470 = vunpack.c.h.b16 %v304
    %v1471 = vunpack.c.l.b16 %v305
    %v1472 = vunpack.c.h.b16 %v305
    %v1473 = vunpack.c.l.b16 %v306
    %v1474 = vunpack.c.h.b16 %v306
    %v1475 = vunpack.c.l.b16 %v307
    %v1476 = vunpack.c.h.b16 %v307
    %v1477 = vunpack.c.l.b16 %v308
    %v1478 = vunpack.c.h.b16 %v308
    %v1479 = vunpack.c.l.b16 %v309
    %v1480 = vunpack.c.h.b16 %v309
    %v1481 = vunpack.c.l.b16 %v310
    %v1482 = vunpack.c.h.b16 %v310
    %v1483 = vunpack.c.l.b16 %v311
    %v1484 = vunpack.c.h.b16 %v311
    %v1485 = vunpack.c.l.b16 %v312
    %v1486 = vunpack.c.h.b16 %v312
    %v1487 = vunpack.c.l.b16 %v313
    %v1488 = vunpack.c.h.b16 %v313
    %v1489 = vunpack.c.l.b16 %v314
    %v1490 = vunpack.c.h.b16 %v314
    %v1491 = vunpack.c.l.b16 %v315
    %v1492 = vunpack.c.h.b16 %v315
    %v1493 = vunpack.c.l.b16 %v316
    %v1494 = vunpack.c.h.b16 %v316
    %v1495 = vunpack.c.l.b16 %v317
    %v1496 = vunpack.c.h.b16 %v317
    %v1497 = vunpack.c.l.b16 %v318
    %v1498 = vunpack.c.h.b16 %v318
    %v1499 = vunpack.c.l.b16 %v319
    %v1500 = vunpack.c.h.b16 %v319
    %v1501 = vunpack.c.l.b16 %v320
    %v1502 = vunpack.c.h.b16 %v320
    %v1503 = vunpack.c.l.b16 %v321
    %v1504 = vunpack.c.h.b16 %v321
    %v1505 = vunpack.c.l.b16 %v322
    %v1506 = vunpack.c.h.b16 %v322
    %v1507 = vunpack.c.l.b16 %v323
    %v1508 = vunpack.c.h.b16 %v323
    %v1509 = vunpack.c.l.b16 %v324
    %v1510 = vunpack.c.h.b16 %v324
    %v1511 = vunpack.c.l.b16 %v325
    %v1512 = vunpack.c.h.b16 %v325
    %v1513 = vunpack.c.l.b16 %v326
    %v1514 = vunpack.c.h.b16 %v326
    %v1515 = vunpack.c.l.b16 %v327
    %v1516 = vunpack.c.h.b16 %v327
    %v1517 = vunpack.c.l.b16 %v328
    %v1518 = vunpack.c.h.b16 %v328
    %v1519 = vunpack.c.l.b16 %v329
    %v1520 = vunpack.c.h.b16 %v329
    %v1521 = vunpack.c.l.b16 %v330
    %v1522 = vunpack.c.h.b16 %v330
    %v1523 = vunpack.c.l.b16 %v331
    %v1524 = vunpack.c.h.b16 %v331
    %v1525 = vunpack.c.l.b16 %v332
    %v1526 = vunpack.c.h.b16 %v332
    %v1527 = vunpack.c.l.b16 %v333
    %v1528 = vunpack.c.h.b16 %v333
    %v1529 = vunpack.c.l.b16 %v334
    %v1530 = vunpack.c.h.b16 %v334
    %v1531 = vunpack.c.l.b16 %v335
    %v1532 = vunpack.c.h.b16 %v335
    %v1533 = vunpack.c.l.b16 %v336
    %v1534 = vunpack.c.h.b16 %v336
    %v1535 = vunpack.c.l.b16 %v337
    %v1536 = vunpack.c.h.b16 %v337
    %v1537 = vunpack.c.l.b16 %v338
    %v1538 = vunpack.c.h.b16 %v338
    %v1539 = vunpack.c.l.b16 %v339
    %v1540 = vunpack.c.h.b16 %v339
    %v1541 = vunpack.c.l.b16 %v340
    %v1542 = vunpack.c.h.b16 %v340
    %v1543 = vunpack.c.l.b16 %v341
    %v1544 = vunpack.c.h.b16 %v341
    %v1545 = vunpack.c.l.b16 %v342
    %v1546 = vunpack.c.h.b16 %v342
    %v1547 = vunpack.c.l.b16 %v343
    %v1548 = vunpack.c.h.b16 %v343
    %v1549 = vunpack.c.l.b16 %v344
    %v1550 = vunpack.c.h.b16 %v344
    %v1551 = vunpack.c.l.b16 %v345
    %v1552 = vunpack.c.h.b16 %v345
    %v1553 = vunpack.c.l.b16 %v346
    %v1554 = vunpack.c.h.b16 %v346
    %v1555 = vunpack.c.l.b16 %v347
    %v1556 = vunpack.c.h.b16 %v347
    %v1557 = vunpack.c.l.b16 %v348
    %v1558 = vunpack.c.h.b16 %v348
    %v1559 = vunpack.c.l.b16 %v349
    %v1560 = vunpack.c.h.b16 %v349
    %v1561 = vunpack.c.l.b16 %v350
    %v1562 = vunpack.c.h.b16 %v350
    %v1563 = vunpack.c.l.b16 %v351
    %v1564 = vunpack.c.h.b16 %v351
    %v1565 = vunpack.c.l.b16 %v352
    %v1566 = vunpack.c.h.b16 %v352
    %v1567 = vunpack.c.l.b16 %v353
    %v1568 = vunpack.c.h.b16 %v353
    %v1569 = vunpack.c.l.b16 %v354
    %v1570 = vunpack.c.h.b16 %v354
    %v1571 = vunpack.c.l.b16 %v355
    %v1572 = vunpack.c.h.b16 %v355
    %v1573 = vunpack.c.l.b16 %v356
    %v1574 = vunpack.c.h.b16 %v356
    %v1575 = vunpack.c.l.b16 %v357
    %v1576 = vunpack.c.h.b16 %v357
    %v1577 = vunpack.c.l.b16 %v358
    %v1578 = vunpack.c.h.b16 %v358
    %v1579 = vunpack.c.l.b16 %v359
    %v1580 = vunpack.c.h.b16 %v359
    %v1581 = vunpack.c.l.b16 %v360
    %v1582 = vunpack.c.h.b16 %v360
    %v1583 = vunpack.c.l.b16 %v361
    %v1584 = vunpack.c.h.b16 %v361
    %v1585 = vunpack.c.l.b16 %v362
    %v1586 = vunpack.c.h.b16 %v362
    %v1587 = vunpack.c.l.b16 %v363
    %v1588 = vunpack.c.h.b16 %v363
    %v1589 = vunpack.c.l.b16 %v364
    %v1590 = vunpack.c.h.b16 %v364
    %v1591 = vunpack.c.l.b16 %v365
    %v1592 = vunpack.c.h.b16 %v365
    %v1593 = vunpack.c.l.b16 %v366
    %v1594 = vunpack.c.h.b16 %v366
    %v1595 = vunpack.c.l.b16 %v367
    %v1596 = vunpack.c.h.b16 %v367
    %v1597 = vunpack.c.l.b16 %v368
    %v1598 = vunpack.c.h.b16 %v368
    %v1599 = vunpack.c.l.b16 %v369
    %v1600 = vunpack.c.h.b16 %v369
    %v1601 = vunpack.c.l.b16 %v370
    %v1602 = vunpack.c.h.b16 %v370
    %v1603 = vunpack.c.l.b16 %v371
    %v1604 = vunpack.c.h.b16 %v371
    %v1605 = vunpack.c.l.b16 %v372
    %v1606 = vunpack.c.h.b16 %v372
    %v1607 = vunpack.c.l.b16 %v373
    %v1608 = vunpack.c.h.b16 %v373
    %v1609 = vunpack.c.l.b16 %v374
    %v1610 = vunpack.c.h.b16 %v374
    %v1611 = vunpack.c.l.b16 %v375
    %v1612 = vunpack.c.h.b16 %v375
    %v1613 = vunpack.c.l.b16 %v376
    %v1614 = vunpack.c.h.b16 %v376
    %v1615 = vunpack.c.l.b16 %v377
    %v1616 = vunpack.c.h.b16 %v377
    %v1617 = vunpack.c.l.b16 %v378
    %v1618 = vunpack.c.h.b16 %v378
    %v1619 = vunpack.c.l.b16 %v379
    %v1620 = vunpack.c.h.b16 %v379
    %v1621 = vunpack.c.l.b16 %v380
    %v1622 = vunpack.c.h.b16 %v380
    %v1623 = vunpack.c.l.b16 %v381
    %v1624 = vunpack.c.h.b16 %v381
    %v1625 = vunpack.c.l.b16 %v382
    %v1626 = vunpack.c.h.b16 %v382
    %v1627 = vunpack.c.l.b16 %v383
    %v1628 = vunpack.c.h.b16 %v383
    %v1629 = vunpack.c.l.b16 %v384
    %v1630 = vunpack.c.h.b16 %v384
    %v1631 = vunpack.c.l.b16 %v385
    %v1632 = vunpack.c.h.b16 %v385
    %v1633 = vunpack.c.l.b16 %v386
    %v1634 = vunpack.c.h.b16 %v386
    %v1635 = vunpack.c.l.b16 %v387
    %v1636 = vunpack.c.h.b16 %v387
    %v1637 = vunpack.c.l.b16 %v388
    %v1638 = vunpack.c.h.b16 %v388
    %v1639 = vunpack.c.l.b16 %v389
    %v1640 = vunpack.c.h.b16 %v389
    %v1641 = vunpack.c.l.b16 %v390
    %v1642 = vunpack.c.h.b16 %v390
    %v1643 = vunpack.c.l.b16 %v391
    %v1644 = vunpack.c.h.b16 %v391
    %v1645 = vunpack.c.l.b16 %v392
    %v1646 = vunpack.c.h.b16 %v392
    %v1647 = vunpack.c.l.b16 %v393
    %v1648 = vunpack.c.h.b16 %v393
    %v1649 = vunpack.c.l.b16 %v394
    %v1650 = vunpack.c.h.b16 %v394
    %v1651 = vunpack.c.l.b16 %v395
    %v1652 = vunpack.c.h.b16 %v395
    %v1653 = vunpack.c.l.b16 %v396
    %v1654 = vunpack.c.h.b16 %v396
    %v1655 = vunpack.c.l.b16 %v397
    %v1656 = vunpack.c.h.b16 %v397
    %v1657 = vunpack.c.l.b16 %v398
    %v1658 = vunpack.c.h.b16 %v398
    %v1659 = vunpack.c.l.b16 %v399
    %v1660 = vunpack.c.h.b16 %v399
    %v1661 = vunpack.c.l.b16 %v400
    %v1662 = vunpack.c.h.b16 %v400
    %v1663 = vunpack.c.l.b16 %v401
    %v1664 = vunpack.c.h.b16 %v401
    %v1665 = vunpack.c.l.b16 %v402
    %v1666 = vunpack.c.h.b16 %v402
    %v1667 = vunpack.c.l.b16 %v403
    %v1668 = vunpack.c.h.b16 %v403
    %v1669 = vunpack.c.l.b16 %v404
    %v1670 = vunpack.c.h.b16 %v404
    %v1671 = vunpack.c.l.b16 %v405
    %v1672 = vunpack.c.h.b16 %v405
    %v1673 = vunpack.c.l.b16 %v406
    %v1674 = vunpack.c.h.b16 %v406
    %v1675 = vunpack.c.l.b16 %v407
    %v1676 = vunpack.c.h.b16 %v407
    %v1677 = vunpack.c.l.b16 %v408
    %v1678 = vunpack.c.h.b16 %v408
    %v1679 = vunpack.c.l.b16 %v409
    %v1680 = vunpack.c.h.b16 %v409
    %v1681 = vunpack.c.l.b16 %v410
    %v1682 = vunpack.c.h.b16 %v410
    %v1683 = vunpack.c.l.b16 %v411
    %v1684 = vunpack.c.h.b16 %v411
    %v1685 = vunpack.c.l.b16 %v412
    %v1686 = vunpack.c.h.b16 %v412
    %v1687 = vunpack.c.l.b16 %v413
    %v1688 = vunpack.c.h.b16 %v413
    %v1689 = vunpack.c.l.b16 %v414
    %v1690 = vunpack.c.h.b16 %v414
    %v1691 = vunpack.c.l.b16 %v415
    %v1692 = vunpack.c.h.b16 %v415
    %v1693 = vunpack.c.l.b16 %v416
    %v1694 = vunpack.c.h.b16 %v416
    %v1695 = vunpack.c.l.b16 %v417
    %v1696 = vunpack.c.h.b16 %v417
    %v1697 = vunpack.c.l.b16 %v418
    %v1698 = vunpack.c.h.b16 %v418
    %v1699 = vunpack.c.l.b16 %v419
    %v1700 = vunpack.c.h.b16 %v419
    %v1701 = vunpack.c.l.b16 %v420
    %v1702 = vunpack.c.h.b16 %v420
    %v1703 = vunpack.c.l.b16 %v421
    %v1704 = vunpack.c.h.b16 %v421
    %v1705 = vunpack.c.l.b16 %v422
    %v1706 = vunpack.c.h.b16 %v422
    %v1707 = vunpack.c.l.b16 %v423
    %v1708 = vunpack.c.h.b16 %v423
    %v1709 = vunpack.c.l.b16 %v424
    %v1710 = vunpack.c.h.b16 %v424
    %v1711 = vunpack.c.l.b16 %v425
    %v1712 = vunpack.c.h.b16 %v425
    %v1713 = vunpack.c.l.b16 %v426
    %v1714 = vunpack.c.h.b16 %v426
    %v1715 = vunpack.c.l.b16 %v427
    %v1716 = vunpack.c.h.b16 %v427
    %v1717 = vunpack.c.l.b16 %v428
    %v1718 = vunpack.c.h.b16 %v428
    %v1719 = vunpack.c.l.b16 %v429
    %v1720 = vunpack.c.h.b16 %v429
    %v1721 = vunpack.c.l.b16 %v430
    %v1722 = vunpack.c.h.b16 %v430
    %v1723 = vunpack.c.l.b16 %v431
    %v1724 = vunpack.c.h.b16 %v431
    %v1725 = vunpack.c.l.b16 %v432
    %v1726 = vunpack.c.h.b16 %v432
    %v1727 = vunpack.c.l.b16 %v433
    %v1728 = vunpack.c.h.b16 %v433
    %v1729 = vunpack.c.l.b16 %v434
    %v1730 = vunpack.c.h.b16 %v434
    %v1731 = vunpack.c.l.b16 %v435
    %v1732 = vunpack.c.h.b16 %v435
    %v1733 = vunpack.c.l.b16 %v436
    %v1734 = vunpack.c.h.b16 %v436
    %v1735 = vunpack.c.l.b16 %v437
    %v1736 = vunpack.c.h.b16 %v437
    %v1737 = vunpack.c.l.b16 %v438
    %v1738 = vunpack.c.h.b16 %v438
    %v1739 = vunpack.c.l.b16 %v439
    %v1740 = vunpack.c.h.b16 %v439
    %v1741 = vunpack.c.l.b16 %v440
    %v1742 = vunpack.c.h.b16 %v440
    %v1743 = vunpack.c.l.b16 %v441
    %v1744 = vunpack.c.h.b16 %v441
    %v1745 = vunpack.c.l.b16 %v442
    %v1746 = vunpack.c.h.b16 %v442
    %v1747 = vunpack.c.l.b16 %v443
    %v1748 = vunpack.c.h.b16 %v443
    %v1749 = vunpack.c.l.b16 %v444
    %v1750 = vunpack.c.h.b16 %v444
    %v1751 = vunpack.c.l.b16 %v445
    %v1752 = vunpack.c.h.b16 %v445
    %v1753 = vunpack.c.l.b16 %v446
    %v1754 = vunpack.c.h.b16 %v446
    %v1755 = vunpack.c.l.b16 %v447
    %v1756 = vunpack.c.h.b16 %v447
    %v1757 = vunpack.c.l.b16 %v448
    %v1758 = vunpack.c.h.b16 %v448
    %v1759 = vunpack.c.l.b16 %v449
    %v1760 = vunpack.c.h.b16 %v449
    %v1761 = vunpack.c.l.b16 %v450
    %v1762 = vunpack.c.h.b16 %v450
    %v1763 = vunpack.c.l.b16 %v451
    %v1764 = vunpack.c.h.b16 %v451
    %v1765 = vunpack.c.l.b16 %v452
    %v1766 = vunpack.c.h.b16 %v452
    %v1767 = vunpack.c.l.b16 %v453
    %v1768 = vunpack.c.h.b16 %v453
    %v1769 = vunpack.c.l.b16 %v454
    %v1770 = vunpack.c.h.b16 %v454
    %v1771 = vunpack.c.l.b16 %v455
    %v1772 = vunpack.c.h.b16 %v455
    %v1773 = vunpack.c.l.b16 %v456
    %v1774 = vunpack.c.h.b16 %v456
    %v1775 = vunpack.c.l.b16 %v457
    %v1776 = vunpack.c.h.b16 %v457
    %v1777 = vunpack.c.l.b16 %v458
    %v1778 = vunpack.c.h.b16 %v458
    %v1779 = vunpack.c.l.b16 %v459
    %v1780 = vunpack.c.h.b16 %v459
    %v1781 = vunpack.c.l.b16 %v460
    %v1782 = vunpack.c.h.b16 %v460
    %v1783 = vunpack.c.l.b16 %v461
    %v1784 = vunpack.c.h.b16 %v461
    %v1785 = vunpack.c.l.b16 %v462
    %v1786 = vunpack.c.h.b16 %v462
    %v1787 = vunpack.c.l.b16 %v463
    %v1788 = vunpack.c.h.b16 %v463
    %v1789 = vunpack.c.l.b16 %v464
    %v1790 = vunpack.c.h.b16 %v464
    %v1791 = vunpack.c.l.b16 %v465
    %v1792 = vunpack.c.h.b16 %v465
    %v1793 = vunpack.c.l.b16 %v466
    %v1794 = vunpack.c.h.b16 %v466
    %v1795 = vunpack.c.l.b16 %v467
    %v1796 = vunpack.c.h.b16 %v467
    %v1797 = vunpack.c.l.b16 %v468
    %v1798 = vunpack.c.h.b16 %v468
    %v1799 = vunpack.c.l.b16 %v469
    %v1800 = vunpack.c.h.b16 %v469
    %v1801 = vunpack.c.l.b16 %v470
    %v1802 = vunpack.c.h.b16 %v470
    %v1803 = vunpack.c.l.b16 %v471
    %v1804 = vunpack.c.h.b16 %v471
    %v1805 = vunpack.c.l.b16 %v472
    %v1806 = vunpack.c.h.b16 %v472
    %v1807 = vunpack.c.l.b16 %v473
    %v1808 = vunpack.c.h.b16 %v473
    %v1809 = vunpack.c.l.b16 %v474
    %v1810 = vunpack.c.h.b16 %v474
    %v1811 = vunpack.c.l.b16 %v475
    %v1812 = vunpack.c.h.b16 %v475
    %v1813 = vunpack.c.l.b16 %v476
    %v1814 = vunpack.c.h.b16 %v476
    %v1815 = vunpack.c.l.b16 %v477
    %v1816 = vunpack.c.h.b16 %v477
    %v1817 = vunpack.c.l.b16 %v478
    %v1818 = vunpack.c.h.b16 %v478
    %v1819 = vunpack.c.l.b16 %v479
    %v1820 = vunpack.c.h.b16 %v479
    %v1821 = vunpack.c.l.b16 %v480
    %v1822 = vunpack.c.h.b16 %v480
    %v1823 = vunpack.c.l.b16 %v481
    %v1824 = vunpack.c.h.b16 %v481
    %v1825 = vunpack.c.l.b16 %v482
    %v1826 = vunpack.c.h.b16 %v482
    %v1827 = vunpack.c.l.b16 %v483
    %v1828 = vunpack.c.h.b16 %v483
    %v1829 = vunpack.c.l.b16 %v484
    %v1830 = vunpack.c.h.b16 %v484
    %v1831 = vunpack.c.l.b16 %v485
    %v1832 = vunpack.c.h.b16 %v485
    %v1833 = vunpack.c.l.b16 %v486
    %v1834 = vunpack.c.h.b16 %v486
    %v1835 = vunpack.c.l.b16 %v487
    %v1836 = vunpack.c.h.b16 %v487
    %v1837 = vunpack.c.l.b16 %v488
    %v1838 = vunpack.c.h.b16 %v488
    %v1839 = vunpack.c.l.b16 %v489
    %v1840 = vunpack.c.h.b16 %v489
    %v1841 = vunpack.c.l.b16 %v490
    %v1842 = vunpack.c.h.b16 %v490
    %v1843 = vunpack.c.l.b16 %v491
    %v1844 = vunpack.c.h.b16 %v491
    %v1845 = vunpack.c.l.b16 %v492
    %v1846 = vunpack.c.h.b16 %v492
    %v1847 = vunpack.c.l.b16 %v493
    %v1848 = vunpack.c.h.b16 %v493
    %v1849 = vunpack.c.l.b16 %v494
    %v1850 = vunpack.c.h.b16 %v494
    %v1851 = vunpack.c.l.b16 %v495
    %v1852 = vunpack.c.h.b16 %v495
    %v1853 = vunpack.c.l.b16 %v496
    %v1854 = vunpack.c.h.b16 %v496
    %v1855 = vunpack.c.l.b16 %v497
    %v1856 = vunpack.c.h.b16 %v497
    %v1857 = vunpack.c.l.b16 %v498
    %v1858 = vunpack.c.h.b16 %v498
    %v1859 = vunpack.c.l.b16 %v499
    %v1860 = vunpack.c.h.b16 %v499
    %v1861 = vunpack.c.l.b16 %v500
    %v1862 = vunpack.c.h.b16 %v500
    %v1863 = vunpack.c.l.b16 %v501
    %v1864 = vunpack.c.h.b16 %v501
    %v1865 = vunpack.c.l.b16 %v502
    %v1866 = vunpack.c.h.b16 %v502
    %v1867 = vunpack.c.l.b16 %v503
    %v1868 = vunpack.c.h.b16 %v503
    %v1869 = vunpack.c.l.b16 %v504
    %v1870 = vunpack.c.h.b16 %v504
    %v1871 = vunpack.c.l.b16 %v505
    %v1872 = vunpack.c.h.b16 %v505
    %v1873 = vunpack.c.l.b16 %v506
    %v1874 = vunpack.c.h.b16 %v506
    %v1875 = vunpack.c.l.b16 %v507
    %v1876 = vunpack.c.h.b16 %v507
    %v1877 = vunpack.c.l.b16 %v508
    %v1878 = vunpack.c.h.b16 %v508
    %v1879 = vunpack.c.l.b16 %v509
    %v1880 = vunpack.c.h.b16 %v509
    %v1881 = vunpack.c.l.b16 %v510
    %v1882 = vunpack.c.h.b16 %v510
    %v1883 = vunpack.c.l.b16 %v511
    %v1884 = vunpack.c.h.b16 %v511
    %v1885 = vunpack.c.l.b16 %v512
    %v1886 = vunpack.c.h.b16 %v512
    %v1887 = vunpack.c.l.b16 %v513
    %v1888 = vunpack.c.h.b16 %v513
    %v1889 = vunpack.c.l.b16 %v514
    %v1890 = vunpack.c.h.b16 %v514
    %v1891 = vunpack.c.l.b16 %v515
    %v1892 = vunpack.c.h.b16 %v515
    %v1893 = vunpack.c.l.b16 %v516
    %v1894 = vunpack.c.h.b16 %v516
    %v1895 = vunpack.c.l.b16 %v517
    %v1896 = vunpack.c.h.b16 %v517
    %v1897 = vunpack.c.l.b16 %v518
    %v1898 = vunpack.c.h.b16 %v518
    %v1899 = vunpack.c.l.b16 %v519
    %v1900 = vunpack.c.h.b16 %v519
    %v1901 = vunpack.c.l.b16 %v520
    %v1902 = vunpack.c.h.b16 %v520
    %v1903 = vunpack.c.l.b16 %v521
    %v1904 = vunpack.c.h.b16 %v521
    %v1905 = vunpack.c.l.b16 %v522
    %v1906 = vunpack.c.h.b16 %v522
    %v1907 = vunpack.c.l.b16 %v523
    %v1908 = vunpack.c.h.b16 %v523
    %v1909 = vunpack.c.l.b16 %v524
    %v1910 = vunpack.c.h.b16 %v524
    %v1911 = vunpack.c.l.b16 %v525
    %v1912 = vunpack.c.h.b16 %v525
    %v1913 = vunpack.c.l.b16 %v526
    %v1914 = vunpack.c.h.b16 %v526
    %v1915 = vunpack.c.l.b16 %v527
    %v1916 = vunpack.c.h.b16 %v527
    %v1917 = vunpack.c.l.b16 %v528
    %v1918 = vunpack.c.h.b16 %v528
    %v1919 = vunpack.c.l.b16 %v529
    %v1920 = vunpack.c.h.b16 %v529
    %v1921 = vunpack.c.l.b16 %v530
    %v1922 = vunpack.c.h.b16 %v530
    %v1923 = vunpack.c.l.b16 %v531
    %v1924 = vunpack.c.h.b16 %v531
    %v1925 = vunpack.c.l.b16 %v532
    %v1926 = vunpack.c.h.b16 %v532
    %v1927 = vunpack.c.l.b16 %v533
    %v1928 = vunpack.c.h.b16 %v533
    %v1929 = vunpack.c.l.b16 %v534
    %v1930 = vunpack.c.h.b16 %v534
    %v1931 = vunpack.c.l.b16 %v535
    %v1932 = vunpack.c.h.b16 %v535
    %v1933 = vunpack.c.l.b16 %v536
    %v1934 = vunpack.c.h.b16 %v536
    %v1935 = vunpack.c.l.b16 %v537
    %v1936 = vunpack.c.h.b16 %v537
    %v1937 = vunpack.c.l.b16 %v538
    %v1938 = vunpack.c.h.b16 %v538
    %v1939 = vunpack.c.l.b16 %v539
    %v1940 = vunpack.c.h.b16 %v539
    %v1941 = vunpack.c.l.b16 %v540
    %v1942 = vunpack.c.h.b16 %v540
    %v1943 = vunpack.c.l.b16 %v541
    %v1944 = vunpack.c.h.b16 %v541
    %v1945 = vunpack.c.l.b16 %v542
    %v1946 = vunpack.c.h.b16 %v542
    %v1947 = vunpack.c.l.b16 %v543
    %v1948 = vunpack.c.h.b16 %v543
    %v1949 = vunpack.c.l.b16 %v544
    %v1950 = vunpack.c.h.b16 %v544
    %v1951 = vunpack.c.l.b16 %v545
    %v1952 = vunpack.c.h.b16 %v545
    %v1953 = vunpack.c.l.b16 %v546
    %v1954 = vunpack.c.h.b16 %v546
    %v1955 = vunpack.c.l.b16 %v547
    %v1956 = vunpack.c.h.b16 %v547
    %v1957 = vunpack.c.l.b16 %v548
    %v1958 = vunpack.c.h.b16 %v548
    %v1959 = vunpack.c.l.b16 %v549
    %v1960 = vunpack.c.h.b16 %v549
    %v1961 = vunpack.c.l.b16 %v550
    %v1962 = vunpack.c.h.b16 %v550
    %v1963 = vunpack.c.l.b16 %v551
    %v1964 = vunpack.c.h.b16 %v551
    %v1965 = vunpack.c.l.b16 %v552
    %v1966 = vunpack.c.h.b16 %v552
    %v1967 = vunpack.c.l.b16 %v553
    %v1968 = vunpack.c.h.b16 %v553
    %v1969 = vunpack.c.l.b16 %v554
    %v1970 = vunpack.c.h.b16 %v554
    %v1971 = vunpack.c.l.b16 %v555
    %v1972 = vunpack.c.h.b16 %v555
    %v1973 = vunpack.c.l.b16 %v556
    %v1974 = vunpack.c.h.b16 %v556
    %v1975 = vunpack.c.l.b16 %v557
    %v1976 = vunpack.c.h.b16 %v557
    %v1977 = vunpack.c.l.b16 %v558
    %v1978 = vunpack.c.h.b16 %v558
    %v1979 = vunpack.c.l.b16 %v559
    %v1980 = vunpack.c.h.b16 %v559
    %v1981 = vunpack.c.l.b16 %v560
    %v1982 = vunpack.c.h.b16 %v560
    %v1983 = vunpack.c.l.b16 %v561
    %v1984 = vunpack.c.h.b16 %v561
    %v1985 = vunpack.c.l.b16 %v562
    %v1986 = vunpack.c.h.b16 %v562
    %v1987 = vunpack.c.l.b16 %v563
    %v1988 = vunpack.c.h.b16 %v563
    %v1989 = vunpack.c.l.b16 %v564
    %v1990 = vunpack.c.h.b16 %v564
    %v1991 = vunpack.c.l.b16 %v565
    %v1992 = vunpack.c.h.b16 %v565
    %v1993 = vunpack.c.l.b16 %v566
    %v1994 = vunpack.c.h.b16 %v566
    %v1995 = vunpack.c.l.b16 %v567
    %v1996 = vunpack.c.h.b16 %v567
    %v1997 = vunpack.c.l.b16 %v568
    %v1998 = vunpack.c.h.b16 %v568
    %v1999 = vunpack.c.l.b16 %v569
    %v2000 = vunpack.c.h.b16 %v569
    %v2001 = vunpack.c.l.b16 %v570
    %v2002 = vunpack.c.h.b16 %v570
    %v2003 = vunpack.c.l.b16 %v571
    %v2004 = vunpack.c.h.b16 %v571
    %v2005 = vunpack.c.l.b16 %v572
    %v2006 = vunpack.c.h.b16 %v572
    %v2007 = vunpack.c.l.b16 %v573
    %v2008 = vunpack.c.h.b16 %v573
    %v2009 = vunpack.c.l.b16 %v574
    %v2010 = vunpack.c.h.b16 %v574
    %v2011 = vunpack.c.l.b16 %v575
    %v2012 = vunpack.c.h.b16 %v575
    %v2013 = vunpack.c.l.b16 %v576
    %v2014 = vunpack.c.h.b16 %v576
    %v2015 = vunpack.c.l.b16 %v577
    %v2016 = vunpack.c.h.b16 %v577
    %v2017 = vunpack.c.l.b16 %v578
    %v2018 = vunpack.c.h.b16 %v578
    %v2019 = vunpack.c.l.b16 %v579
    %v2020 = vunpack.c.h.b16 %v579
    %v2021 = vunpack.c.l.b16 %v580
    %v2022 = vunpack.c.h.b16 %v580
    %v2023 = vunpack.c.l.b16 %v581
    %v2024 = vunpack.c.h.b16 %v581
    %v2025 = vunpack.c.l.b16 %v582
    %v2026 = vunpack.c.h.b16 %v582
    %v2027 = vunpack.c.l.b16 %v583
    %v2028 = vunpack.c.h.b16 %v583
    %v2029 = vunpack.c.l.b16 %v584
    %v2030 = vunpack.c.h.b16 %v584
    %v2031 = vunpack.c.l.b16 %v585
    %v2032 = vunpack.c.h.b16 %v585
    %v2033 = vunpack.c.l.b16 %v586
    %v2034 = vunpack.c.h.b16 %v586
    %v2035 = vunpack.c.l.b16 %v587
    %v2036 = vunpack.c.h.b16 %v587
    %v2037 = vunpack.c.l.b16 %v588
    %v2038 = vunpack.c.h.b16 %v588
    %v2039 = vunpack.c.l.b16 %v589
    %v2040 = vunpack.c.h.b16 %v589
    %v2041 = vunpack.c.l.b16 %v590
    %v2042 = vunpack.c.h.b16 %v590
    %v2043 = vunpack.c.l.b16 %v591
    %v2044 = vunpack.c.h.b16 %v591
    %v2045 = vunpack.c.l.b16 %v592
    %v2046 = vunpack.c.h.b16 %v592
    %v2047 = vunpack.c.l.b16 %v593
    %v2048 = vunpack.c.h.b16 %v593
    %v2049 = vunpack.c.l.b16 %v594
    %v2050 = vunpack.c.h.b16 %v594
    %v2051 = vunpack.c.l.b16 %v595
    %v2052 = vunpack.c.h.b16 %v595
    %v2053 = vunpack.c.l.b16 %v596
    %v2054 = vunpack.c.h.b16 %v596
    %v2055 = vunpack.c.l.b16 %v597
    %v2056 = vunpack.c.h.b16 %v597
    %v2057 = vunpack.c.l.b16 %v598
    %v2058 = vunpack.c.h.b16 %v598
    %v2059 = vunpack.c.l.b16 %v599
    %v2060 = vunpack.c.h.b16 %v599
    %v2061 = vunpack.c.l.b16 %v600
    %v2062 = vunpack.c.h.b16 %v600
    %v2063 = vunpack.c.l.b16 %v601
    %v2064 = vunpack.c.h.b16 %v601
    %v2065 = vunpack.c.l.b16 %v602
    %v2066 = vunpack.c.h.b16 %v602
    %v2067 = vunpack.c.l.b16 %v603
    %v2068 = vunpack.c.h.b16 %v603
    %v2069 = vunpack.c.l.b16 %v604
    %v2070 = vunpack.c.h.b16 %v604
    %v2071 = vunpack.c.l.b16 %v605
    %v2072 = vunpack.c.h.b16 %v605
    %v2073 = vunpack.c.l.b16 %v606
    %v2074 = vunpack.c.h.b16 %v606
    %v2075 = vunpack.c.l.b16 %v607
    %v2076 = vunpack.c.h.b16 %v607
    %v2077 = vunpack.c.l.b16 %v608
    %v2078 = vunpack.c.h.b16 %v608
    %v2079 = vunpack.c.l.b16 %v609
    %v2080 = vunpack.c.h.b16 %v609
    %v2081 = vunpack.c.l.b16 %v610
    %v2082 = vunpack.c.h.b16 %v610
    %v2083 = vunpack.c.l.b16 %v611
    %v2084 = vunpack.c.h.b16 %v611
    %v2085 = vunpack.c.l.b16 %v612
    %v2086 = vunpack.c.h.b16 %v612
    %v2087 = vunpack.c.l.b16 %v613
    %v2088 = vunpack.c.h.b16 %v613
    %v2089 = vunpack.c.l.b16 %v614
    %v2090 = vunpack.c.h.b16 %v614
    %v2091 = vunpack.c.l.b16 %v615
    %v2092 = vunpack.c.h.b16 %v615
    %v2093 = vunpack.c.l.b16 %v616
    %v2094 = vunpack.c.h.b16 %v616
    %v2095 = vunpack.c.l.b16 %v617
    %v2096 = vunpack.c.h.b16 %v617
    %v2097 = vunpack.c.l.b16 %v618
    %v2098 = vunpack.c.h.b16 %v618
    %v2099 = vunpack.c.l.b16 %v619
    %v2100 = vunpack.c.h.b16 %v619
    %v2101 = vunpack.c.l.b16 %v620
    %v2102 = vunpack.c.h.b16 %v620
    %v2103 = vunpack.c.l.b16 %v621
    %v2104 = vunpack.c.h.b16 %v621
    %v2105 = vunpack.c.l.b16 %v622
    %v2106 = vunpack.c.h.b16 %v622
    %v2107 = vunpack.c.l.b16 %v623
    %v2108 = vunpack.c.h.b16 %v623
    %v2109 = vunpack.c.l.b16 %v624
    %v2110 = vunpack.c.h.b16 %v624
    %v2111 = vunpack.c.l.b16 %v625
    %v2112 = vunpack.c.h.b16 %v625
    %v2113 = vunpack.c.l.b16 %v626
    %v2114 = vunpack.c.h.b16 %v626
    %v2115 = vunpack.c.l.b16 %v627
    %v2116 = vunpack.c.h.b16 %v627
    %v2117 = vunpack.c.l.b16 %v628
    %v2118 = vunpack.c.h.b16 %v628
    %v2119 = vunpack.c.l.b16 %v629
    %v2120 = vunpack.c.h.b16 %v629
    %v2121 = vunpack.c.l.b16 %v630
    %v2122 = vunpack.c.h.b16 %v630
    %v2123 = vunpack.c.l.b16 %v631
    %v2124 = vunpack.c.h.b16 %v631
    %v2125 = vunpack.c.l.b16 %v632
    %v2126 = vunpack.c.h.b16 %v632
    %v2127 = vunpack.c.l.b16 %v633
    %v2128 = vunpack.c.h.b16 %v633
    %v2129 = vunpack.c.l.b16 %v634
    %v2130 = vunpack.c.h.b16 %v634
    %v2131 = vunpack.c.l.b16 %v635
    %v2132 = vunpack.c.h.b16 %v635
    %v2133 = vunpack.c.l.b16 %v636
    %v2134 = vunpack.c.h.b16 %v636
    %v2135 = vunpack.c.l.b16 %v637
    %v2136 = vunpack.c.h.b16 %v637
    %v2137 = vunpack.c.l.b16 %v638
    %v2138 = vunpack.c.h.b16 %v638
    %v2139 = vunpack.c.l.b16 %v639
    %v2140 = vunpack.c.h.b16 %v639
    %v2141 = vunpack.c.l.b16 %v640
    %v2142 = vunpack.c.h.b16 %v640
    %v2143 = vunpack.c.l.b16 %v641
    %v2144 = vunpack.c.h.b16 %v641
    %v2145 = vunpack.c.l.b16 %v642
    %v2146 = vunpack.c.h.b16 %v642
    %v2147 = vunpack.c.l.b16 %v643
    %v2148 = vunpack.c.h.b16 %v643
    %v2149 = vunpack.c.l.b16 %v644
    %v2150 = vunpack.c.h.b16 %v644
    %v2151 = vunpack.c.l.b16 %v645
    %v2152 = vunpack.c.h.b16 %v645
    %v2153 = vunpack.c.l.b16 %v646
    %v2154 = vunpack.c.h.b16 %v646
    %v2155 = vunpack.c.l.b16 %v647
    %v2156 = vunpack.c.h.b16 %v647
    %v2157 = vunpack.c.l.b16 %v648
    %v2158 = vunpack.c.h.b16 %v648
    %v2159 = vunpack.c.l.b16 %v649
    %v2160 = vunpack.c.h.b16 %v649
    %v2161 = vunpack.c.l.b16 %v650
    %v2162 = vunpack.c.h.b16 %v650
    %v2163 = vunpack.c.l.b16 %v651
    %v2164 = vunpack.c.h.b16 %v651
    %v2165 = vunpack.c.l.b16 %v652
    %v2166 = vunpack.c.h.b16 %v652
    %v2167 = vunpack.c.l.b16 %v653
    %v2168 = vunpack.c.h.b16 %v653
    %v2169 = vunpack.c.l.b16 %v654
    %v2170 = vunpack.c.h.b16 %v654
    %v2171 = vunpack.c.l.b16 %v655
    %v2172 = vunpack.c.h.b16 %v655
    %v2173 = vunpack.c.l.b16 %v656
    %v2174 = vunpack.c.h.b16 %v656
    %v2175 = vunpack.c.l.b16 %v657
    %v2176 = vunpack.c.h.b16 %v657
    %v2177 = vunpack.c.l.b16 %v658
    %v2178 = vunpack.c.h.b16 %v658
    %v2179 = vunpack.c.l.b16 %v659
    %v2180 = vunpack.c.h.b16 %v659
    %v2181 = vunpack.c.l.b16 %v660
    %v2182 = vunpack.c.h.b16 %v660
    %v2183 = vunpack.c.l.b16 %v661
    %v2184 = vunpack.c.h.b16 %v661
    %v2185 = vunpack.c.l.b16 %v662
    %v2186 = vunpack.c.h.b16 %v662
    %v2187 = vunpack.c.l.b16 %v663
    %v2188 = vunpack.c.h.b16 %v663
    %v2189 = vunpack.c.l.b16 %v664
    %v2190 = vunpack.c.h.b16 %v664
    %v2191 = vunpack.c.l.b16 %v665
    %v2192 = vunpack.c.h.b16 %v665
    %v2193 = vunpack.c.l.b16 %v666
    %v2194 = vunpack.c.h.b16 %v666
    %v2195 = vunpack.c.l.b16 %v667
    %v2196 = vunpack.c.h.b16 %v667
    %v2197 = vunpack.c.l.b16 %v668
    %v2198 = vunpack.c.h.b16 %v668
    %v2199 = vunpack.c.l.b16 %v669
    %v2200 = vunpack.c.h.b16 %v669
    %v2201 = vunpack.c.l.b16 %v670
    %v2202 = vunpack.c.h.b16 %v670
    %v2203 = vunpack.c.l.b16 %v671
    %v2204 = vunpack.c.h.b16 %v671
    %v2205 = vunpack.c.l.b16 %v672
    %v2206 = vunpack.c.h.b16 %v672
    %v2207 = vunpack.c.l.b16 %v673
    %v2208 = vunpack.c.h.b16 %v673
    %v2209 = vunpack.c.l.b16 %v674
    %v2210 = vunpack.c.h.b16 %v674
    %v2211 = vpack.c.b16 %v1195, %v1187
    %v2212 = vpack.c.b16 %v1196, %v1188
    %v2213 = vpack.c.b16 %v1197, %v1189
    %v2214 = vpack.c.b16 %v1198, %v1190
    %v2215 = vpack.c.b16 %v1199, %v1191
    %v2216 = vpack.c.b16 %v1200, %v1192
    %v2217 = vpack.c.b16 %v1201, %v1193
    %v2218 = vpack.c.b16 %v1202, %v1194
    %v2219 = vpack.c.b16 %v1211, %v1203
    %v2220 = vpack.c.b16 %v1212, %v1204
    %v2221 = vpack.c.b16 %v1213, %v1205
    %v2222 = vpack.c.b16 %v1214, %v1206
    %v2223 = vpack.c.b16 %v1215, %v1207
    %v2224 = vpack.c.b16 %v1216, %v1208
    %v2225 = vpack.c.b16 %v1217, %v1209
    %v2226 = vpack.c.b16 %v1218, %v1210
    %v2227 = vpack.c.b16 %v1227, %v1219
    %v2228 = vpack.c.b16 %v1228, %v1220
    %v2229 = vpack.c.b16 %v1229, %v1221
    %v2230 = vpack.c.b16 %v1230, %v1222
    %v2231 = vpack.c.b16 %v1231, %v1223
    %v2232 = vpack.c.b16 %v1232, %v1224
    %v2233 = vpack.c.b16 %v1233, %v1225
    %v2234 = vpack.c.b16 %v1234, %v1226
    %v2235 = vpack.c.b16 %v1243, %v1235
    %v2236 = vpack.c.b16 %v1244, %v1236
    %v2237 = vpack.c.b16 %v1245, %v1237
    %v2238 = vpack.c.b16 %v1246, %v1238
    %v2239 = vpack.c.b16 %v1247, %v1239
    %v2240 = vpack.c.b16 %v1248, %v1240
    %v2241 = vpack.c.b16 %v1249, %v1241
    %v2242 = vpack.c.b16 %v1250, %v1242
    %v2243 = vpack.c.b16 %v1259, %v1251
    %v2244 = vpack.c.b16 %v1260, %v1252
    %v2245 = vpack.c.b16 %v1261, %v1253
    %v2246 = vpack.c.b16 %v1262, %v1254
    %v2247 = vpack.c.b16 %v1263, %v1255
    %v2248 = vpack.c.b16 %v1264, %v1256
    %v2249 = vpack.c.b16 %v1265, %v1257
    %v2250 = vpack.c.b16 %v1266, %v1258
    %v2251 = vpack.c.b16 %v1275, %v1267
    %v2252 = vpack.c.b16 %v1276, %v1268
    %v2253 = vpack.c.b16 %v1277, %v1269
    %v2254 = vpack.c.b16 %v1278, %v1270
    %v2255 = vpack.c.b16 %v1279, %v1271
    %v2256 = vpack.c.b16 %v1280, %v1272
    %v2257 = vpack.c.b16 %v1281, %v1273
    %v2258 = vpack.c.b16 %v1282, %v1274
    %v2259 = vpack.c.b16 %v1291, %v1283
    %v2260 = vpack.c.b16 %v1292, %v1284
    %v2261 = vpack.c.b16 %v1293, %v1285
    %v2262 = vpack.c.b16 %v1294, %v1286
    %v2263 = vpack.c.b16 %v1295, %v1287
    %v2264 = vpack.c.b16 %v1296, %v1288
    %v2265 = vpack.c.b16 %v1297, %v1289
    %v2266 = vpack.c.b16 %v1298, %v1290
    %v2267 = vpack.c.b16 %v1307, %v1299
    %v2268 = vpack.c.b16 %v1308, %v1300
    %v2269 = vpack.c.b16 %v1309, %v1301
    %v2270 = vpack.c.b16 %v1310, %v1302
    %v2271 = vpack.c.b16 %v1311, %v1303
    %v2272 = vpack.c.b16 %v1312, %v1304
    %v2273 = vpack.c.b16 %v1313, %v1305
    %v2274 = vpack.c.b16 %v1314, %v1306
    %v2275 = vpack.c.b16 %v1323, %v1315
    %v2276 = vpack.c.b16 %v1324, %v1316
    %v2277 = vpack.c.b16 %v1325, %v1317
    %v2278 = vpack.c.b16 %v1326, %v1318
    %v2279 = vpack.c.b16 %v1327, %v1319
    %v2280 = vpack.c.b16 %v1328, %v1320
    %v2281 = vpack.c.b16 %v1329, %v1321
    %v2282 = vpack.c.b16 %v1330, %v1322
    %v2283 = vpack.c.b16 %v1339, %v1331
    %v2284 = vpack.c.b16 %v1340, %v1332
    %v2285 = vpack.c.b16 %v1341, %v1333
    %v2286 = vpack.c.b16 %v1342, %v1334
    %v2287 = vpack.c.b16 %v1343, %v1335
    %v2288 = vpack.c.b16 %v1344, %v1336
    %v2289 = vpack.c.b16 %v1345, %v1337
    %v2290 = vpack.c.b16 %v1346, %v1338
    %v2291 = vpack.c.b16 %v1355, %v1347
    %v2292 = vpack.c.b16 %v1356, %v1348
    %v2293 = vpack.c.b16 %v1357, %v1349
    %v2294 = vpack.c.b16 %v1358, %v1350
    %v2295 = vpack.c.b16 %v1359, %v1351
    %v2296 = vpack.c.b16 %v1360, %v1352
    %v2297 = vpack.c.b16 %v1361, %v1353
    %v2298 = vpack.c.b16 %v1362, %v1354
    %v2299 = vpack.c.b16 %v1371, %v1363
    %v2300 = vpack.c.b16 %v1372, %v1364
    %v2301 = vpack.c.b16 %v1373, %v1365
    %v2302 = vpack.c.b16 %v1374, %v1366
    %v2303 = vpack.c.b16 %v1375, %v1367
    %v2304 = vpack.c.b16 %v1376, %v1368
    %v2305 = vpack.c.b16 %v1377, %v1369
    %v2306 = vpack.c.b16 %v1378, %v1370
    %v2307 = vpack.c.b16 %v1387, %v1379
    %v2308 = vpack.c.b16 %v1388, %v1380
    %v2309 = vpack.c.b16 %v1389, %v1381
    %v2310 = vpack.c.b16 %v1390, %v1382
    %v2311 = vpack.c.b16 %v1391, %v1383
    %v2312 = vpack.c.b16 %v1392, %v1384
    %v2313 = vpack.c.b16 %v1393, %v1385
    %v2314 = vpack.c.b16 %v1394, %v1386
    %v2315 = vpack.c.b16 %v1403, %v1395
    %v2316 = vpack.c.b16 %v1404, %v1396
    %v2317 = vpack.c.b16 %v1405, %v1397
    %v2318 = vpack.c.b16 %v1406, %v1398
    %v2319 = vpack.c.b16 %v1407, %v1399
    %v2320 = vpack.c.b16 %v1408, %v1400
    %v2321 = vpack.c.b16 %v1409, %v1401
    %v2322 = vpack.c.b16 %v1410, %v1402
    %v2323 = vpack.c.b16 %v1419, %v1411
    %v2324 = vpack.c.b16 %v1420, %v1412
    %v2325 = vpack.c.b16 %v1421, %v1413
    %v2326 = vpack.c.b16 %v1422, %v1414
    %v2327 = vpack.c.b16 %v1423, %v1415
    %v2328 = vpack.c.b16 %v1424, %v1416
    %v2329 = vpack.c.b16 %v1425, %v1417
    %v2330 = vpack.c.b16 %v1426, %v1418
    %v2331 = vpack.c.b16 %v1435, %v1427
    %v2332 = vpack.c.b16 %v1436, %v1428
    %v2333 = vpack.c.b16 %v1437, %v1429
    %v2334 = vpack.c.b16 %v1438, %v1430
    %v2335 = vpack.c.b16 %v1439, %v1431
    %v2336 = vpack.c.b16 %v1440, %v1432
    %v2337 = vpack.c.b16 %v1441, %v1433
    %v2338 = vpack.c.b16 %v1442, %v1434
    %v2339 = vpack.c.b16 %v1451, %v1443
    %v2340 = vpack.c.b16 %v1452, %v1444
    %v2341 = vpack.c.b16 %v1453, %v1445
    %v2342 = vpack.c.b16 %v1454, %v1446
    %v2343 = vpack.c.b16 %v1455, %v1447
    %v2344 = vpack.c.b16 %v1456, %v1448
    %v2345 = vpack.c.b16 %v1457, %v1449
    %v2346 = vpack.c.b16 %v1458, %v1450
    %v2347 = vpack.c.b16 %v1467, %v1459
    %v2348 = vpack.c.b16 %v1468, %v1460
    %v2349 = vpack.c.b16 %v1469, %v1461
    %v2350 = vpack.c.b16 %v1470, %v1462
    %v2351 = vpack.c.b16 %v1471, %v1463
    %v2352 = vpack.c.b16 %v1472, %v1464
    %v2353 = vpack.c.b16 %v1473, %v1465
    %v2354 = vpack.c.b16 %v1474, %v1466
    %v2355 = vpack.c.b16 %v1483, %v1475
    %v2356 = vpack.c.b16 %v1484, %v1476
    %v2357 = vpack.c.b16 %v1485, %v1477
    %v2358 = vpack.c.b16 %v1486, %v1478
    %v2359 = vpack.c.b16 %v1487, %v1479
    %v2360 = vpack.c.b16 %v1488, %v1480
    %v2361 = vpack.c.b16 %v1489, %v1481
    %v2362 = vpack.c.b16 %v1490, %v1482
    %v2363 = vpack.c.b16 %v1499, %v1491
    %v2364 = vpack.c.b16 %v1500, %v1492
    %v2365 = vpack.c.b16 %v1501, %v1493
    %v2366 = vpack.c.b16 %v1502, %v1494
    %v2367 = vpack.c.b16 %v1503, %v1495
    %v2368 = vpack.c.b16 %v1504, %v1496
    %v2369 = vpack.c.b16 %v1505, %v1497
    %v2370 = vpack.c.b16 %v1506, %v1498
    %v2371 = vpack.c.b16 %v1515, %v1507
    %v2372 = vpack.c.b16 %v1516, %v1508
    %v2373 = vpack.c.b16 %v1517, %v1509
    %v2374 = vpack.c.b16 %v1518, %v1510
    %v2375 = vpack.c.b16 %v1519, %v1511
    %v2376 = vpack.c.b16 %v1520, %v1512
    %v2377 = vpack.c.b16 %v1521, %v1513
    %v2378 = vpack.c.b16 %v1522, %v1514
    %v2379 = vpack.c.b16 %v1531, %v1523
    %v2380 = vpack.c.b16 %v1532, %v1524
    %v2381 = vpack.c.b16 %v1533, %v1525
    %v2382 = vpack.c.b16 %v1534, %v1526
    %v2383 = vpack.c.b16 %v1535, %v1527
    %v2384 = vpack.c.b16 %v1536, %v1528
    %v2385 = vpack.c.b16 %v1537, %v1529
    %v2386 = vpack.c.b16 %v1538, %v1530
    %v2387 = vpack.c.b16 %v1547, %v1539
    %v2388 = vpack.c.b16 %v1548, %v1540
    %v2389 = vpack.c.b16 %v1549, %v1541
    %v2390 = vpack.c.b16 %v1550, %v1542
    %v2391 = vpack.c.b16 %v1551, %v1543
    %v2392 = vpack.c.b16 %v1552, %v1544
    %v2393 = vpack.c.b16 %v1553, %v1545
    %v2394 = vpack.c.b16 %v1554, %v1546
    %v2395 = vpack.c.b16 %v1563, %v1555
    %v2396 = vpack.c.b16 %v1564, %v1556
    %v2397 = vpack.c.b16 %v1565, %v1557
    %v2398 = vpack.c.b16 %v1566, %v1558
    %v2399 = vpack.c.b16 %v1567, %v1559
    %v2400 = vpack.c.b16 %v1568, %v1560
    %v2401 = vpack.c.b16 %v1569, %v1561
    %v2402 = vpack.c.b16 %v1570, %v1562
    %v2403 = vpack.c.b16 %v1579, %v1571
    %v2404 = vpack.c.b16 %v1580, %v1572
    %v2405 = vpack.c.b16 %v1581, %v1573
    %v2406 = vpack.c.b16 %v1582, %v1574
    %v2407 = vpack.c.b16 %v1583, %v1575
    %v2408 = vpack.c.b16 %v1584, %v1576
    %v2409 = vpack.c.b16 %v1585, %v1577
    %v2410 = vpack.c.b16 %v1586, %v1578
    %v2411 = vpack.c.b16 %v1595, %v1587
    %v2412 = vpack.c.b16 %v1596, %v1588
    %v2413 = vpack.c.b16 %v1597, %v1589
    %v2414 = vpack.c.b16 %v1598, %v1590
    %v2415 = vpack.c.b16 %v1599, %v1591
    %v2416 = vpack.c.b16 %v1600, %v1592
    %v2417 = vpack.c.b16 %v1601, %v1593
    %v2418 = vpack.c.b16 %v1602, %v1594
    %v2419 = vpack.c.b16 %v1611, %v1603
    %v2420 = vpack.c.b16 %v1612, %v1604
    %v2421 = vpack.c.b16 %v1613, %v1605
    %v2422 = vpack.c.b16 %v1614, %v1606
    %v2423 = vpack.c.b16 %v1615, %v1607
    %v2424 = vpack.c.b16 %v1616, %v1608
    %v2425 = vpack.c.b16 %v1617, %v1609
    %v2426 = vpack.c.b16 %v1618, %v1610
    %v2427 = vpack.c.b16 %v1627, %v1619
    %v2428 = vpack.c.b16 %v1628, %v1620
    %v2429 = vpack.c.b16 %v1629, %v1621
    %v2430 = vpack.c.b16 %v1630, %v1622
    %v2431 = vpack.c.b16 %v1631, %v1623
    %v2432 = vpack.c.b16 %v1632, %v1624
    %v2433 = vpack.c.b16 %v1633, %v1625
    %v2434 = vpack.c.b16 %v1634, %v1626
    %v2435 = vpack.c.b16 %v1643, %v1635
    %v2436 = vpack.c.b16 %v1644, %v1636
    %v2437 = vpack.c.b16 %v1645, %v1637
    %v2438 = vpack.c.b16 %v1646, %v1638
    %v2439 = vpack.c.b16 %v1647, %v1639
    %v2440 = vpack.c.b16 %v1648, %v1640
    %v2441 = vpack.c.b16 %v1649, %v1641
    %v2442 = vpack.c.b16 %v1650, %v1642
    %v2443 = vpack.c.b16 %v1659, %v1651
    %v2444 = vpack.c.b16 %v1660, %v1652
    %v2445 = vpack.c.b16 %v1661, %v1653
    %v2446 = vpack.c.b16 %v1662, %v1654
    %v2447 = vpack.c.b16 %v1663, %v1655
    %v2448 = vpack.c.b16 %v1664, %v1656
    %v2449 = vpack.c.b16 %v1665, %v1657
    %v2450 = vpack.c.b16 %v1666, %v1658
    %v2451 = vpack.c.b16 %v1675, %v1667
    %v2452 = vpack.c.b16 %v1676, %v1668
    %v2453 = vpack.c.b16 %v1677, %v1669
    %v2454 = vpack.c.b16 %v1678, %v1670
    %v2455 = vpack.c.b16 %v1679, %v1671
    %v2456 = vpack.c.b16 %v1680, %v1672
    %v2457 = vpack.c.b16 %v1681, %v1673
    %v2458 = vpack.c.b16 %v1682, %v1674
    %v2459 = vpack.c.b16 %v1691, %v1683
    %v2460 = vpack.c.b16 %v1692, %v1684
    %v2461 = vpack.c.b16 %v1693, %v1685
    %v2462 = vpack.c.b16 %v1694, %v1686
    %v2463 = vpack.c.b16 %v1695, %v1687
    %v2464 = vpack.c.b16 %v1696, %v1688
    %v2465 = vpack.c.b16 %v1697, %v1689
    %v2466 = vpack.c.b16 %v1698, %v1690
    %v2467 = vpack.c.b16 %v1707, %v1699
    %v2468 = vpack.c.b16 %v1708, %v1700
    %v2469 = vpack.c.b16 %v1709, %v1701
    %v2470 = vpack.c.b16 %v1710, %v1702
    %v2471 = vpack.c.b16 %v1711, %v1703
    %v2472 = vpack.c.b16 %v1712, %v1704
    %v2473 = vpack.c.b16 %v1713, %v1705
    %v2474 = vpack.c.b16 %v1714, %v1706
    %v2475 = vpack.c.b16 %v1723, %v1715
    %v2476 = vpack.c.b16 %v1724, %v1716
    %v2477 = vpack.c.b16 %v1725, %v1717
    %v2478 = vpack.c.b16 %v1726, %v1718
    %v2479 = vpack.c.b16 %v1727, %v1719
    %v2480 = vpack.c.b16 %v1728, %v1720
    %v2481 = vpack.c.b16 %v1729, %v1721
    %v2482 = vpack.c.b16 %v1730, %v1722
    %v2483 = vpack.c.b16 %v1739, %v1731
    %v2484 = vpack.c.b16 %v1740, %v1732
    %v2485 = vpack.c.b16 %v1741, %v1733
    %v2486 = vpack.c.b16 %v1742, %v1734
    %v2487 = vpack.c.b16 %v1743, %v1735
    %v2488 = vpack.c.b16 %v1744, %v1736
    %v2489 = vpack.c.b16 %v1745, %v1737
    %v2490 = vpack.c.b16 %v1746, %v1738
    %v2491 = vpack.c.b16 %v1755, %v1747
    %v2492 = vpack.c.b16 %v1756, %v1748
    %v2493 = vpack.c.b16 %v1757, %v1749
    %v2494 = vpack.c.b16 %v1758, %v1750
    %v2495 = vpack.c.b16 %v1759, %v1751
    %v2496 = vpack.c.b16 %v1760, %v1752
    %v2497 = vpack.c.b16 %v1761, %v1753
    %v2498 = vpack.c.b16 %v1762, %v1754
    %v2499 = vpack.c.b16 %v1771, %v1763
    %v2500 = vpack.c.b16 %v1772, %v1764
    %v2501 = vpack.c.b16 %v1773, %v1765
    %v2502 = vpack.c.b16 %v1774, %v1766
    %v2503 = vpack.c.b16 %v1775, %v1767
    %v2504 = vpack.c.b16 %v1776, %v1768
    %v2505 = vpack.c.b16 %v1777, %v1769
    %v2506 = vpack.c.b16 %v1778, %v1770
    %v2507 = vpack.c.b16 %v1787, %v1779
    %v2508 = vpack.c.b16 %v1788, %v1780
    %v2509 = vpack.c.b16 %v1789, %v1781
    %v2510 = vpack.c.b16 %v1790, %v1782
    %v2511 = vpack.c.b16 %v1791, %v1783
    %v2512 = vpack.c.b16 %v1792, %v1784
    %v2513 = vpack.c.b16 %v1793, %v1785
    %v2514 = vpack.c.b16 %v1794, %v1786
    %v2515 = vpack.c.b16 %v1803, %v1795
    %v2516 = vpack.c.b16 %v1804, %v1796
    %v2517 = vpack.c.b16 %v1805, %v1797
    %v2518 = vpack.c.b16 %v1806, %v1798
    %v2519 = vpack.c.b16 %v1807, %v1799
    %v2520 = vpack.c.b16 %v1808, %v1800
    %v2521 = vpack.c.b16 %v1809, %v1801
    %v2522 = vpack.c.b16 %v1810, %v1802
    %v2523 = vpack.c.b16 %v1819, %v1811
    %v2524 = vpack.c.b16 %v1820, %v1812
    %v2525 = vpack.c.b16 %v1821, %v1813
    %v2526 = vpack.c.b16 %v1822, %v1814
    %v2527 = vpack.c.b16 %v1823, %v1815
    %v2528 = vpack.c.b16 %v1824, %v1816
    %v2529 = vpack.c.b16 %v1825, %v1817
    %v2530 = vpack.c.b16 %v1826, %v1818
    %v2531 = vpack.c.b16 %v1835, %v1827
    %v2532 = vpack.c.b16 %v1836, %v1828
    %v2533 = vpack.c.b16 %v1837, %v1829
    %v2534 = vpack.c.b16 %v1838, %v1830
    %v2535 = vpack.c.b16 %v1839, %v1831
    %v2536 = vpack.c.b16 %v1840, %v1832
    %v2537 = vpack.c.b16 %v1841, %v1833
    %v2538 = vpack.c.b16 %v1842, %v1834
    %v2539 = vpack.c.b16 %v1851, %v1843
    %v2540 = vpack.c.b16 %v1852, %v1844
    %v2541 = vpack.c.b16 %v1853, %v1845
    %v2542 = vpack.c.b16 %v1854, %v1846
    %v2543 = vpack.c.b16 %v1855, %v1847
    %v2544 = vpack.c.b16 %v1856, %v1848
    %v2545 = vpack.c.b16 %v1857, %v1849
    %v2546 = vpack.c.b16 %v1858, %v1850
    %v2547 = vpack.c.b16 %v1867, %v1859
    %v2548 = vpack.c.b16 %v1868, %v1860
    %v2549 = vpack.c.b16 %v1869, %v1861
    %v2550 = vpack.c.b16 %v1870, %v1862
    %v2551 = vpack.c.b16 %v1871, %v1863
    %v2552 = vpack.c.b16 %v1872, %v1864
    %v2553 = vpack.c.b16 %v1873, %v1865
    %v2554 = vpack.c.b16 %v1874, %v1866
    %v2555 = vpack.c.b16 %v1883, %v1875
    %v2556 = vpack.c.b16 %v1884, %v1876
    %v2557 = vpack.c.b16 %v1885, %v1877
    %v2558 = vpack.c.b16 %v1886, %v1878
    %v2559 = vpack.c.b16 %v1887, %v1879
    %v2560 = vpack.c.b16 %v1888, %v1880
    %v2561 = vpack.c.b16 %v1889, %v1881
    %v2562 = vpack.c.b16 %v1890, %v1882
    %v2563 = vpack.c.b16 %v1899, %v1891
    %v2564 = vpack.c.b16 %v1900, %v1892
    %v2565 = vpack.c.b16 %v1901, %v1893
    %v2566 = vpack.c.b16 %v1902, %v1894
    %v2567 = vpack.c.b16 %v1903, %v1895
    %v2568 = vpack.c.b16 %v1904, %v1896
    %v2569 = vpack.c.b16 %v1905, %v1897
    %v2570 = vpack.c.b16 %v1906, %v1898
    %v2571 = vpack.c.b16 %v1915, %v1907
    %v2572 = vpack.c.b16 %v1916, %v1908
    %v2573 = vpack.c.b16 %v1917, %v1909
    %v2574 = vpack.c.b16 %v1918, %v1910
    %v2575 = vpack.c.b16 %v1919, %v1911
    %v2576 = vpack.c.b16 %v1920, %v1912
    %v2577 = vpack.c.b16 %v1921, %v1913
    %v2578 = vpack.c.b16 %v1922, %v1914
    %v2579 = vpack.c.b16 %v1931, %v1923
    %v2580 = vpack.c.b16 %v1932, %v1924
    %v2581 = vpack.c.b16 %v1933, %v1925
    %v2582 = vpack.c.b16 %v1934, %v1926
    %v2583 = vpack.c.b16 %v1935, %v1927
    %v2584 = vpack.c.b16 %v1936, %v1928
    %v2585 = vpack.c.b16 %v1937, %v1929
    %v2586 = vpack.c.b16 %v1938, %v1930
    %v2587 = vpack.c.b16 %v1947, %v1939
    %v2588 = vpack.c.b16 %v1948, %v1940
    %v2589 = vpack.c.b16 %v1949, %v1941
    %v2590 = vpack.c.b16 %v1950, %v1942
    %v2591 = vpack.c.b16 %v1951, %v1943
    %v2592 = vpack.c.b16 %v1952, %v1944
    %v2593 = vpack.c.b16 %v1953, %v1945
    %v2594 = vpack.c.b16 %v1954, %v1946
    %v2595 = vpack.c.b16 %v1963, %v1955
    %v2596 = vpack.c.b16 %v1964, %v1956
    %v2597 = vpack.c.b16 %v1965, %v1957
    %v2598 = vpack.c.b16 %v1966, %v1958
    %v2599 = vpack.c.b16 %v1967, %v1959
    %v2600 = vpack.c.b16 %v1968, %v1960
    %v2601 = vpack.c.b16 %v1969, %v1961
    %v2602 = vpack.c.b16 %v1970, %v1962
    %v2603 = vpack.c.b16 %v1979, %v1971
    %v2604 = vpack.c.b16 %v1980, %v1972
    %v2605 = vpack.c.b16 %v1981, %v1973
    %v2606 = vpack.c.b16 %v1982, %v1974
    %v2607 = vpack.c.b16 %v1983, %v1975
    %v2608 = vpack.c.b16 %v1984, %v1976
    %v2609 = vpack.c.b16 %v1985, %v1977
    %v2610 = vpack.c.b16 %v1986, %v1978
    %v2611 = vpack.c.b16 %v1995, %v1987
    %v2612 = vpack.c.b16 %v1996, %v1988
    %v2613 = vpack.c.b16 %v1997, %v1989
    %v2614 = vpack.c.b16 %v1998, %v1990
    %v2615 = vpack.c.b16 %v1999, %v1991
    %v2616 = vpack.c.b16 %v2000, %v1992
    %v2617 = vpack.c.b16 %v2001, %v1993
    %v2618 = vpack.c.b16 %v2002, %v1994
    %v2619 = vpack.c.b16 %v2011, %v2003
    %v2620 = vpack.c.b16 %v2012, %v2004
    %v2621 = vpack.c.b16 %v2013, %v2005
    %v2622 = vpack.c.b16 %v2014, %v2006
    %v2623 = vpack.c.b16 %v2015, %v2007
    %v2624 = vpack.c.b16 %v2016, %v2008
    %v2625 = vpack.c.b16 %v2017, %v2009
    %v2626 = vpack.c.b16 %v2018, %v2010
    %v2627 = vpack.c.b16 %v2027, %v2019
    %v2628 = vpack.c.b16 %v2028, %v2020
    %v2629 = vpack.c.b16 %v2029, %v2021
    %v2630 = vpack.c.b16 %v2030, %v2022
    %v2631 = vpack.c.b16 %v2031, %v2023
    %v2632 = vpack.c.b16 %v2032, %v2024
    %v2633 = vpack.c.b16 %v2033, %v2025
    %v2634 = vpack.c.b16 %v2034, %v2026
    %v2635 = vpack.c.b16 %v2043, %v2035
    %v2636 = vpack.c.b16 %v2044, %v2036
    %v2637 = vpack.c.b16 %v2045, %v2037
    %v2638 = vpack.c.b16 %v2046, %v2038
    %v2639 = vpack.c.b16 %v2047, %v2039
    %v2640 = vpack.c.b16 %v2048, %v2040
    %v2641 = vpack.c.b16 %v2049, %v2041
    %v2642 = vpack.c.b16 %v2050, %v2042
    %v2643 = vpack.c.b16 %v2059, %v2051
    %v2644 = vpack.c.b16 %v2060, %v2052
    %v2645 = vpack.c.b16 %v2061, %v2053
    %v2646 = vpack.c.b16 %v2062, %v2054
    %v2647 = vpack.c.b16 %v2063, %v2055
    %v2648 = vpack.c.b16 %v2064, %v2056
    %v2649 = vpack.c.b16 %v2065, %v2057
    %v2650 = vpack.c.b16 %v2066, %v2058
    %v2651 = vpack.c.b16 %v2075, %v2067
    %v2652 = vpack.c.b16 %v2076, %v2068
    %v2653 = vpack.c.b16 %v2077, %v2069
    %v2654 = vpack.c.b16 %v2078, %v2070
    %v2655 = vpack.c.b16 %v2079, %v2071
    %v2656 = vpack.c.b16 %v2080, %v2072
    %v2657 = vpack.c.b16 %v2081, %v2073
    %v2658 = vpack.c.b16 %v2082, %v2074
    %v2659 = vpack.c.b16 %v2091, %v2083
    %v2660 = vpack.c.b16 %v2092, %v2084
    %v2661 = vpack.c.b16 %v2093, %v2085
    %v2662 = vpack.c.b16 %v2094, %v2086
    %v2663 = vpack.c.b16 %v2095, %v2087
    %v2664 = vpack.c.b16 %v2096, %v2088
    %v2665 = vpack.c.b16 %v2097, %v2089
    %v2666 = vpack.c.b16 %v2098, %v2090
    %v2667 = vpack.c.b16 %v2107, %v2099
    %v2668 = vpack.c.b16 %v2108, %v2100
    %v2669 = vpack.c.b16 %v2109, %v2101
    %v2670 = vpack.c.b16 %v2110, %v2102
    %v2671 = vpack.c.b16 %v2111, %v2103
    %v2672 = vpack.c.b16 %v2112, %v2104
    %v2673 = vpack.c.b16 %v2113, %v2105
    %v2674 = vpack.c.b16 %v2114, %v2106
    %v2675 = vpack.c.b16 %v2123, %v2115
    %v2676 = vpack.c.b16 %v2124, %v2116
    %v2677 = vpack.c.b16 %v2125, %v2117
    %v2678 = vpack.c.b16 %v2126, %v2118
    %v2679 = vpack.c.b16 %v2127, %v2119
    %v2680 = vpack.c.b16 %v2128, %v2120
    %v2681 = vpack.c.b16 %v2129, %v2121
    %v2682 = vpack.c.b16 %v2130, %v2122
    %v2683 = vpack.c.b16 %v2139, %v2131
    %v2684 = vpack.c.b16 %v2140, %v2132
    %v2685 = vpack.c.b16 %v2141, %v2133
    %v2686 = vpack.c.b16 %v2142, %v2134
    %v2687 = vpack.c.b16 %v2143, %v2135
    %v2688 = vpack.c.b16 %v2144, %v2136
    %v2689 = vpack.c.b16 %v2145, %v2137
    %v2690 = vpack.c.b16 %v2146, %v2138
    %v2691 = vpack.c.b16 %v2155, %v2147
    %v2692 = vpack.c.b16 %v2156, %v2148
    %v2693 = vpack.c.b16 %v2157, %v2149
    %v2694 = vpack.c.b16 %v2158, %v2150
    %v2695 = vpack.c.b16 %v2159, %v2151
    %v2696 = vpack.c.b16 %v2160, %v2152
    %v2697 = vpack.c.b16 %v2161, %v2153
    %v2698 = vpack.c.b16 %v2162, %v2154
    %v2699 = vpack.c.b16 %v2171, %v2163
    %v2700 = vpack.c.b16 %v2172, %v2164
    %v2701 = vpack.c.b16 %v2173, %v2165
    %v2702 = vpack.c.b16 %v2174, %v2166
    %v2703 = vpack.c.b16 %v2175, %v2167
    %v2704 = vpack.c.b16 %v2176, %v2168
    %v2705 = vpack.c.b16 %v2177, %v2169
    %v2706 = vpack.c.b16 %v2178, %v2170
    %v2707 = vpack.c.b16 %v2187, %v2179
    %v2708 = vpack.c.b16 %v2188, %v2180
    %v2709 = vpack.c.b16 %v2189, %v2181
    %v2710 = vpack.c.b16 %v2190, %v2182
    %v2711 = vpack.c.b16 %v2191, %v2183
    %v2712 = vpack.c.b16 %v2192, %v2184
    %v2713 = vpack.c.b16 %v2193, %v2185
    %v2714 = vpack.c.b16 %v2194, %v2186
    %v2715 = vpack.c.b16 %v2203, %v2195
    %v2716 = vpack.c.b16 %v2204, %v2196
    %v2717 = vpack.c.b16 %v2205, %v2197
    %v2718 = vpack.c.b16 %v2206, %v2198
    %v2719 = vpack.c.b16 %v2207, %v2199
    %v2720 = vpack.c.b16 %v2208, %v2200
    %v2721 = vpack.c.b16 %v2209, %v2201
    %v2722 = vpack.c.b16 %v2210, %v2202
    %3235 = vmatpush.bf16.msra.mxu0 %v2267
    %3236 = vmatpush.bf16.msra.mxu0 %v2259
    %3237 = vmatpush.bf16.msra.mxu0 %v2251
    %3238 = vmatpush.bf16.msra.mxu0 %v2243
    %3239 = vmatpush.bf16.msra.mxu0 %v2235
    %3240 = vmatpush.bf16.msra.mxu0 %v2227
    %3241 = vmatpush.bf16.msra.mxu0 %v2219
    %3242 = vmatpush.bf16.msra.mxu0 %v2211
    %3243 = vmatmul.bf16.gmra.mxu0 %v155
    %v3244 = vpop.f32.mrf.mxu0
    %v3245 = vadd.f32 0.0, %v3244
    %v3246 = vpop.f32.mrf.mxu0
    %3247 = vdwg.mxu0
    %3248 = vmatpush.bf16.msra.mxu0 %v2331
    %3249 = vmatpush.bf16.msra.mxu0 %v2323
    %3250 = vmatpush.bf16.msra.mxu0 %v2315
    %3251 = vmatpush.bf16.msra.mxu0 %v2307
    %3252 = vmatpush.bf16.msra.mxu0 %v2299
    %3253 = vmatpush.bf16.msra.mxu0 %v2291
    %3254 = vmatpush.bf16.msra.mxu0 %v2283
    %3255 = vmatpush.bf16.msra.mxu0 %v2275
    %3256 = vmatmul.bf16.gmra.mxu0 %v156
    %v3257 = vpop.f32.mrf.mxu0
    %v3258 = vadd.f32 %v3245, %v3257
    %v3259 = vpop.f32.mrf.mxu0
    %3260 = vdwg.mxu0
    %3261 = vmatpush.bf16.msra.mxu0 %v2395
    %3262 = vmatpush.bf16.msra.mxu0 %v2387
    %3263 = vmatpush.bf16.msra.mxu0 %v2379
    %3264 = vmatpush.bf16.msra.mxu0 %v2371
    %3265 = vmatpush.bf16.msra.mxu0 %v2363
    %3266 = vmatpush.bf16.msra.mxu0 %v2355
    %3267 = vmatpush.bf16.msra.mxu0 %v2347
    %3268 = vmatpush.bf16.msra.mxu0 %v2339
    %3269 = vmatmul.bf16.gmra.mxu0 %v157
    %v3270 = vpop.f32.mrf.mxu0
    %v3271 = vadd.f32 %v3258, %v3270
    %v3272 = vpop.f32.mrf.mxu0
    %3273 = vdwg.mxu0
    %3274 = vmatpush.bf16.msra.mxu0 %v2459
    %3275 = vmatpush.bf16.msra.mxu0 %v2451
    %3276 = vmatpush.bf16.msra.mxu0 %v2443
    %3277 = vmatpush.bf16.msra.mxu0 %v2435
    %3278 = vmatpush.bf16.msra.mxu0 %v2427
    %3279 = vmatpush.bf16.msra.mxu0 %v2419
    %3280 = vmatpush.bf16.msra.mxu0 %v2411
    %3281 = vmatpush.bf16.msra.mxu0 %v2403
    %3282 = vmatmul.bf16.gmra.mxu0 %v158
    %v3283 = vpop.f32.mrf.mxu0
    %v3284 = vadd.f32 %v3271, %v3283
    %v3285 = vpop.f32.mrf.mxu0
    %3286 = vdwg.mxu0
    %3287 = vmatpush.bf16.msra.mxu0 %v2523
    %3288 = vmatpush.bf16.msra.mxu0 %v2515
    %3289 = vmatpush.bf16.msra.mxu0 %v2507
    %3290 = vmatpush.bf16.msra.mxu0 %v2499
    %3291 = vmatpush.bf16.msra.mxu0 %v2491
    %3292 = vmatpush.bf16.msra.mxu0 %v2483
    %3293 = vmatpush.bf16.msra.mxu0 %v2475
    %3294 = vmatpush.bf16.msra.mxu0 %v2467
    %3295 = vmatmul.bf16.gmra.mxu0 %v159
    %v3296 = vpop.f32.mrf.mxu0
    %v3297 = vadd.f32 %v3284, %v3296
    %v3298 = vpop.f32.mrf.mxu0
    %3299 = vdwg.mxu0
    %3300 = vmatpush.bf16.msra.mxu0 %v2587
    %3301 = vmatpush.bf16.msra.mxu0 %v2579
    %3302 = vmatpush.bf16.msra.mxu0 %v2571
    %3303 = vmatpush.bf16.msra.mxu0 %v2563
    %3304 = vmatpush.bf16.msra.mxu0 %v2555
    %3305 = vmatpush.bf16.msra.mxu0 %v2547
    %3306 = vmatpush.bf16.msra.mxu0 %v2539
    %3307 = vmatpush.bf16.msra.mxu0 %v2531
    %3308 = vmatmul.bf16.gmra.mxu0 %v160
    %v3309 = vpop.f32.mrf.mxu0
    %v3310 = vadd.f32 %v3297, %v3309
    %v3311 = vpop.f32.mrf.mxu0
    %3312 = vdwg.mxu0
    %3313 = vmatpush.bf16.msra.mxu0 %v2651
    %3314 = vmatpush.bf16.msra.mxu0 %v2643
    %3315 = vmatpush.bf16.msra.mxu0 %v2635
    %3316 = vmatpush.bf16.msra.mxu0 %v2627
    %3317 = vmatpush.bf16.msra.mxu0 %v2619
    %3318 = vmatpush.bf16.msra.mxu0 %v2611
    %3319 = vmatpush.bf16.msra.mxu0 %v2603
    %3320 = vmatpush.bf16.msra.mxu0 %v2595
    %3321 = vmatmul.bf16.gmra.mxu0 %v161
    %v3322 = vpop.f32.mrf.mxu0
    %v3323 = vadd.f32 %v3310, %v3322
    %v3324 = vpop.f32.mrf.mxu0
    %3325 = vdwg.mxu0
    %3326 = vmatpush.bf16.msra.mxu0 %v2715
    %3327 = vmatpush.bf16.msra.mxu0 %v2707
    %3328 = vmatpush.bf16.msra.mxu0 %v2699
    %3329 = vmatpush.bf16.msra.mxu0 %v2691
    %3330 = vmatpush.bf16.msra.mxu0 %v2683
    %3331 = vmatpush.bf16.msra.mxu0 %v2675
    %3332 = vmatpush.bf16.msra.mxu0 %v2667
    %3333 = vmatpush.bf16.msra.mxu0 %v2659
    %3334 = vmatmul.bf16.gmra.mxu0 %v162
    %v3335 = vpop.f32.mrf.mxu0
    %v3336 = vadd.f32 %v3323, %v3335
    %v3337 = vpop.f32.mrf.mxu0
    %3338 = vdwg.mxu0
    %3339 = vmatpush.bf16.msra.mxu0 %v2268
    %3340 = vmatpush.bf16.msra.mxu0 %v2260
    %3341 = vmatpush.bf16.msra.mxu0 %v2252
    %3342 = vmatpush.bf16.msra.mxu0 %v2244
    %3343 = vmatpush.bf16.msra.mxu0 %v2236
    %3344 = vmatpush.bf16.msra.mxu0 %v2228
    %3345 = vmatpush.bf16.msra.mxu0 %v2220
    %3346 = vmatpush.bf16.msra.mxu0 %v2212
    %3347 = vmatmul.bf16.gmra.mxu0 %v155
    %v3348 = vpop.f32.mrf.mxu0
    %v3349 = vadd.f32 0.0, %v3348
    %v3350 = vpop.f32.mrf.mxu0
    %3351 = vdwg.mxu0
    %3352 = vmatpush.bf16.msra.mxu0 %v2332
    %3353 = vmatpush.bf16.msra.mxu0 %v2324
    %3354 = vmatpush.bf16.msra.mxu0 %v2316
    %3355 = vmatpush.bf16.msra.mxu0 %v2308
    %3356 = vmatpush.bf16.msra.mxu0 %v2300
    %3357 = vmatpush.bf16.msra.mxu0 %v2292
    %3358 = vmatpush.bf16.msra.mxu0 %v2284
    %3359 = vmatpush.bf16.msra.mxu0 %v2276
    %3360 = vmatmul.bf16.gmra.mxu0 %v156
    %v3361 = vpop.f32.mrf.mxu0
    %v3362 = vadd.f32 %v3349, %v3361
    %v3363 = vpop.f32.mrf.mxu0
    %3364 = vdwg.mxu0
    %3365 = vmatpush.bf16.msra.mxu0 %v2396
    %3366 = vmatpush.bf16.msra.mxu0 %v2388
    %3367 = vmatpush.bf16.msra.mxu0 %v2380
    %3368 = vmatpush.bf16.msra.mxu0 %v2372
    %3369 = vmatpush.bf16.msra.mxu0 %v2364
    %3370 = vmatpush.bf16.msra.mxu0 %v2356
    %3371 = vmatpush.bf16.msra.mxu0 %v2348
    %3372 = vmatpush.bf16.msra.mxu0 %v2340
    %3373 = vmatmul.bf16.gmra.mxu0 %v157
    %v3374 = vpop.f32.mrf.mxu0
    %v3375 = vadd.f32 %v3362, %v3374
    %v3376 = vpop.f32.mrf.mxu0
    %3377 = vdwg.mxu0
    %3378 = vmatpush.bf16.msra.mxu0 %v2460
    %3379 = vmatpush.bf16.msra.mxu0 %v2452
    %3380 = vmatpush.bf16.msra.mxu0 %v2444
    %3381 = vmatpush.bf16.msra.mxu0 %v2436
    %3382 = vmatpush.bf16.msra.mxu0 %v2428
    %3383 = vmatpush.bf16.msra.mxu0 %v2420
    %3384 = vmatpush.bf16.msra.mxu0 %v2412
    %3385 = vmatpush.bf16.msra.mxu0 %v2404
    %3386 = vmatmul.bf16.gmra.mxu0 %v158
    %v3387 = vpop.f32.mrf.mxu0
    %v3388 = vadd.f32 %v3375, %v3387
    %v3389 = vpop.f32.mrf.mxu0
    %3390 = vdwg.mxu0
    %3391 = vmatpush.bf16.msra.mxu0 %v2524
    %3392 = vmatpush.bf16.msra.mxu0 %v2516
    %3393 = vmatpush.bf16.msra.mxu0 %v2508
    %3394 = vmatpush.bf16.msra.mxu0 %v2500
    %3395 = vmatpush.bf16.msra.mxu0 %v2492
    %3396 = vmatpush.bf16.msra.mxu0 %v2484
    %3397 = vmatpush.bf16.msra.mxu0 %v2476
    %3398 = vmatpush.bf16.msra.mxu0 %v2468
    %3399 = vmatmul.bf16.gmra.mxu0 %v159
    %v3400 = vpop.f32.mrf.mxu0
    %v3401 = vadd.f32 %v3388, %v3400
    %v3402 = vpop.f32.mrf.mxu0
    %3403 = vdwg.mxu0
    %3404 = vmatpush.bf16.msra.mxu0 %v2588
    %3405 = vmatpush.bf16.msra.mxu0 %v2580
    %3406 = vmatpush.bf16.msra.mxu0 %v2572
    %3407 = vmatpush.bf16.msra.mxu0 %v2564
    %3408 = vmatpush.bf16.msra.mxu0 %v2556
    %3409 = vmatpush.bf16.msra.mxu0 %v2548
    %3410 = vmatpush.bf16.msra.mxu0 %v2540
    %3411 = vmatpush.bf16.msra.mxu0 %v2532
    %3412 = vmatmul.bf16.gmra.mxu0 %v160
    %v3413 = vpop.f32.mrf.mxu0
    %v3414 = vadd.f32 %v3401, %v3413
    %v3415 = vpop.f32.mrf.mxu0
    %3416 = vdwg.mxu0
    %3417 = vmatpush.bf16.msra.mxu0 %v2652
    %3418 = vmatpush.bf16.msra.mxu0 %v2644
    %3419 = vmatpush.bf16.msra.mxu0 %v2636
    %3420 = vmatpush.bf16.msra.mxu0 %v2628
    %3421 = vmatpush.bf16.msra.mxu0 %v2620
    %3422 = vmatpush.bf16.msra.mxu0 %v2612
    %3423 = vmatpush.bf16.msra.mxu0 %v2604
    %3424 = vmatpush.bf16.msra.mxu0 %v2596
    %3425 = vmatmul.bf16.gmra.mxu0 %v161
    %v3426 = vpop.f32.mrf.mxu0
    %v3427 = vadd.f32 %v3414, %v3426
    %v3428 = vpop.f32.mrf.mxu0
    %3429 = vdwg.mxu0
    %3430 = vmatpush.bf16.msra.mxu0 %v2716
    %3431 = vmatpush.bf16.msra.mxu0 %v2708
    %3432 = vmatpush.bf16.msra.mxu0 %v2700
    %3433 = vmatpush.bf16.msra.mxu0 %v2692
    %3434 = vmatpush.bf16.msra.mxu0 %v2684
    %3435 = vmatpush.bf16.msra.mxu0 %v2676
    %3436 = vmatpush.bf16.msra.mxu0 %v2668
    %3437 = vmatpush.bf16.msra.mxu0 %v2660
    %3438 = vmatmul.bf16.gmra.mxu0 %v162
    %v3439 = vpop.f32.mrf.mxu0
    %v3440 = vadd.f32 %v3427, %v3439
    %v3441 = vpop.f32.mrf.mxu0
    %3442 = vdwg.mxu0
    %3443 = vmatpush.bf16.msra.mxu0 %v2269
    %3444 = vmatpush.bf16.msra.mxu0 %v2261
    %3445 = vmatpush.bf16.msra.mxu0 %v2253
    %3446 = vmatpush.bf16.msra.mxu0 %v2245
    %3447 = vmatpush.bf16.msra.mxu0 %v2237
    %3448 = vmatpush.bf16.msra.mxu0 %v2229
    %3449 = vmatpush.bf16.msra.mxu0 %v2221
    %3450 = vmatpush.bf16.msra.mxu0 %v2213
    %3451 = vmatmul.bf16.gmra.mxu0 %v155
    %v3452 = vpop.f32.mrf.mxu0
    %v3453 = vadd.f32 0.0, %v3452
    %v3454 = vpop.f32.mrf.mxu0
    %3455 = vdwg.mxu0
    %3456 = vmatpush.bf16.msra.mxu0 %v2333
    %3457 = vmatpush.bf16.msra.mxu0 %v2325
    %3458 = vmatpush.bf16.msra.mxu0 %v2317
    %3459 = vmatpush.bf16.msra.mxu0 %v2309
    %3460 = vmatpush.bf16.msra.mxu0 %v2301
    %3461 = vmatpush.bf16.msra.mxu0 %v2293
    %3462 = vmatpush.bf16.msra.mxu0 %v2285
    %3463 = vmatpush.bf16.msra.mxu0 %v2277
    %3464 = vmatmul.bf16.gmra.mxu0 %v156
    %v3465 = vpop.f32.mrf.mxu0
    %v3466 = vadd.f32 %v3453, %v3465
    %v3467 = vpop.f32.mrf.mxu0
    %3468 = vdwg.mxu0
    %3469 = vmatpush.bf16.msra.mxu0 %v2397
    %3470 = vmatpush.bf16.msra.mxu0 %v2389
    %3471 = vmatpush.bf16.msra.mxu0 %v2381
    %3472 = vmatpush.bf16.msra.mxu0 %v2373
    %3473 = vmatpush.bf16.msra.mxu0 %v2365
    %3474 = vmatpush.bf16.msra.mxu0 %v2357
    %3475 = vmatpush.bf16.msra.mxu0 %v2349
    %3476 = vmatpush.bf16.msra.mxu0 %v2341
    %3477 = vmatmul.bf16.gmra.mxu0 %v157
    %v3478 = vpop.f32.mrf.mxu0
    %v3479 = vadd.f32 %v3466, %v3478
    %v3480 = vpop.f32.mrf.mxu0
    %3481 = vdwg.mxu0
    %3482 = vmatpush.bf16.msra.mxu0 %v2461
    %3483 = vmatpush.bf16.msra.mxu0 %v2453
    %3484 = vmatpush.bf16.msra.mxu0 %v2445
    %3485 = vmatpush.bf16.msra.mxu0 %v2437
    %3486 = vmatpush.bf16.msra.mxu0 %v2429
    %3487 = vmatpush.bf16.msra.mxu0 %v2421
    %3488 = vmatpush.bf16.msra.mxu0 %v2413
    %3489 = vmatpush.bf16.msra.mxu0 %v2405
    %3490 = vmatmul.bf16.gmra.mxu0 %v158
    %v3491 = vpop.f32.mrf.mxu0
    %v3492 = vadd.f32 %v3479, %v3491
    %v3493 = vpop.f32.mrf.mxu0
    %3494 = vdwg.mxu0
    %3495 = vmatpush.bf16.msra.mxu0 %v2525
    %3496 = vmatpush.bf16.msra.mxu0 %v2517
    %3497 = vmatpush.bf16.msra.mxu0 %v2509
    %3498 = vmatpush.bf16.msra.mxu0 %v2501
    %3499 = vmatpush.bf16.msra.mxu0 %v2493
    %3500 = vmatpush.bf16.msra.mxu0 %v2485
    %3501 = vmatpush.bf16.msra.mxu0 %v2477
    %3502 = vmatpush.bf16.msra.mxu0 %v2469
    %3503 = vmatmul.bf16.gmra.mxu0 %v159
    %v3504 = vpop.f32.mrf.mxu0
    %v3505 = vadd.f32 %v3492, %v3504
    %v3506 = vpop.f32.mrf.mxu0
    %3507 = vdwg.mxu0
    %3508 = vmatpush.bf16.msra.mxu0 %v2589
    %3509 = vmatpush.bf16.msra.mxu0 %v2581
    %3510 = vmatpush.bf16.msra.mxu0 %v2573
    %3511 = vmatpush.bf16.msra.mxu0 %v2565
    %3512 = vmatpush.bf16.msra.mxu0 %v2557
    %3513 = vmatpush.bf16.msra.mxu0 %v2549
    %3514 = vmatpush.bf16.msra.mxu0 %v2541
    %3515 = vmatpush.bf16.msra.mxu0 %v2533
    %3516 = vmatmul.bf16.gmra.mxu0 %v160
    %v3517 = vpop.f32.mrf.mxu0
    %v3518 = vadd.f32 %v3505, %v3517
    %v3519 = vpop.f32.mrf.mxu0
    %3520 = vdwg.mxu0
    %3521 = vmatpush.bf16.msra.mxu0 %v2653
    %3522 = vmatpush.bf16.msra.mxu0 %v2645
    %3523 = vmatpush.bf16.msra.mxu0 %v2637
    %3524 = vmatpush.bf16.msra.mxu0 %v2629
    %3525 = vmatpush.bf16.msra.mxu0 %v2621
    %3526 = vmatpush.bf16.msra.mxu0 %v2613
    %3527 = vmatpush.bf16.msra.mxu0 %v2605
    %3528 = vmatpush.bf16.msra.mxu0 %v2597
    %3529 = vmatmul.bf16.gmra.mxu0 %v161
    %v3530 = vpop.f32.mrf.mxu0
    %v3531 = vadd.f32 %v3518, %v3530
    %v3532 = vpop.f32.mrf.mxu0
    %3533 = vdwg.mxu0
    %3534 = vmatpush.bf16.msra.mxu0 %v2717
    %3535 = vmatpush.bf16.msra.mxu0 %v2709
    %3536 = vmatpush.bf16.msra.mxu0 %v2701
    %3537 = vmatpush.bf16.msra.mxu0 %v2693
    %3538 = vmatpush.bf16.msra.mxu0 %v2685
    %3539 = vmatpush.bf16.msra.mxu0 %v2677
    %3540 = vmatpush.bf16.msra.mxu0 %v2669
    %3541 = vmatpush.bf16.msra.mxu0 %v2661
    %3542 = vmatmul.bf16.gmra.mxu0 %v162
    %v3543 = vpop.f32.mrf.mxu0
    %v3544 = vadd.f32 %v3531, %v3543
    %v3545 = vpop.f32.mrf.mxu0
    %3546 = vdwg.mxu0
    %3547 = vmatpush.bf16.msra.mxu0 %v2270
    %3548 = vmatpush.bf16.msra.mxu0 %v2262
    %3549 = vmatpush.bf16.msra.mxu0 %v2254
    %3550 = vmatpush.bf16.msra.mxu0 %v2246
    %3551 = vmatpush.bf16.msra.mxu0 %v2238
    %3552 = vmatpush.bf16.msra.mxu0 %v2230
    %3553 = vmatpush.bf16.msra.mxu0 %v2222
    %3554 = vmatpush.bf16.msra.mxu0 %v2214
    %3555 = vmatmul.bf16.gmra.mxu0 %v155
    %v3556 = vpop.f32.mrf.mxu0
    %v3557 = vadd.f32 0.0, %v3556
    %v3558 = vpop.f32.mrf.mxu0
    %3559 = vdwg.mxu0
    %3560 = vmatpush.bf16.msra.mxu0 %v2334
    %3561 = vmatpush.bf16.msra.mxu0 %v2326
    %3562 = vmatpush.bf16.msra.mxu0 %v2318
    %3563 = vmatpush.bf16.msra.mxu0 %v2310
    %3564 = vmatpush.bf16.msra.mxu0 %v2302
    %3565 = vmatpush.bf16.msra.mxu0 %v2294
    %3566 = vmatpush.bf16.msra.mxu0 %v2286
    %3567 = vmatpush.bf16.msra.mxu0 %v2278
    %3568 = vmatmul.bf16.gmra.mxu0 %v156
    %v3569 = vpop.f32.mrf.mxu0
    %v3570 = vadd.f32 %v3557, %v3569
    %v3571 = vpop.f32.mrf.mxu0
    %3572 = vdwg.mxu0
    %3573 = vmatpush.bf16.msra.mxu0 %v2398
    %3574 = vmatpush.bf16.msra.mxu0 %v2390
    %3575 = vmatpush.bf16.msra.mxu0 %v2382
    %3576 = vmatpush.bf16.msra.mxu0 %v2374
    %3577 = vmatpush.bf16.msra.mxu0 %v2366
    %3578 = vmatpush.bf16.msra.mxu0 %v2358
    %3579 = vmatpush.bf16.msra.mxu0 %v2350
    %3580 = vmatpush.bf16.msra.mxu0 %v2342
    %3581 = vmatmul.bf16.gmra.mxu0 %v157
    %v3582 = vpop.f32.mrf.mxu0
    %v3583 = vadd.f32 %v3570, %v3582
    %v3584 = vpop.f32.mrf.mxu0
    %3585 = vdwg.mxu0
    %3586 = vmatpush.bf16.msra.mxu0 %v2462
    %3587 = vmatpush.bf16.msra.mxu0 %v2454
    %3588 = vmatpush.bf16.msra.mxu0 %v2446
    %3589 = vmatpush.bf16.msra.mxu0 %v2438
    %3590 = vmatpush.bf16.msra.mxu0 %v2430
    %3591 = vmatpush.bf16.msra.mxu0 %v2422
    %3592 = vmatpush.bf16.msra.mxu0 %v2414
    %3593 = vmatpush.bf16.msra.mxu0 %v2406
    %3594 = vmatmul.bf16.gmra.mxu0 %v158
    %v3595 = vpop.f32.mrf.mxu0
    %v3596 = vadd.f32 %v3583, %v3595
    %v3597 = vpop.f32.mrf.mxu0
    %3598 = vdwg.mxu0
    %3599 = vmatpush.bf16.msra.mxu0 %v2526
    %3600 = vmatpush.bf16.msra.mxu0 %v2518
    %3601 = vmatpush.bf16.msra.mxu0 %v2510
    %3602 = vmatpush.bf16.msra.mxu0 %v2502
    %3603 = vmatpush.bf16.msra.mxu0 %v2494
    %3604 = vmatpush.bf16.msra.mxu0 %v2486
    %3605 = vmatpush.bf16.msra.mxu0 %v2478
    %3606 = vmatpush.bf16.msra.mxu0 %v2470
    %3607 = vmatmul.bf16.gmra.mxu0 %v159
    %v3608 = vpop.f32.mrf.mxu0
    %v3609 = vadd.f32 %v3596, %v3608
    %v3610 = vpop.f32.mrf.mxu0
    %3611 = vdwg.mxu0
    %3612 = vmatpush.bf16.msra.mxu0 %v2590
    %3613 = vmatpush.bf16.msra.mxu0 %v2582
    %3614 = vmatpush.bf16.msra.mxu0 %v2574
    %3615 = vmatpush.bf16.msra.mxu0 %v2566
    %3616 = vmatpush.bf16.msra.mxu0 %v2558
    %3617 = vmatpush.bf16.msra.mxu0 %v2550
    %3618 = vmatpush.bf16.msra.mxu0 %v2542
    %3619 = vmatpush.bf16.msra.mxu0 %v2534
    %3620 = vmatmul.bf16.gmra.mxu0 %v160
    %v3621 = vpop.f32.mrf.mxu0
    %v3622 = vadd.f32 %v3609, %v3621
    %v3623 = vpop.f32.mrf.mxu0
    %3624 = vdwg.mxu0
    %3625 = vmatpush.bf16.msra.mxu0 %v2654
    %3626 = vmatpush.bf16.msra.mxu0 %v2646
    %3627 = vmatpush.bf16.msra.mxu0 %v2638
    %3628 = vmatpush.bf16.msra.mxu0 %v2630
    %3629 = vmatpush.bf16.msra.mxu0 %v2622
    %3630 = vmatpush.bf16.msra.mxu0 %v2614
    %3631 = vmatpush.bf16.msra.mxu0 %v2606
    %3632 = vmatpush.bf16.msra.mxu0 %v2598
    %3633 = vmatmul.bf16.gmra.mxu0 %v161
    %v3634 = vpop.f32.mrf.mxu0
    %v3635 = vadd.f32 %v3622, %v3634
    %v3636 = vpop.f32.mrf.mxu0
    %3637 = vdwg.mxu0
    %3638 = vmatpush.bf16.msra.mxu0 %v2718
    %3639 = vmatpush.bf16.msra.mxu0 %v2710
    %3640 = vmatpush.bf16.msra.mxu0 %v2702
    %3641 = vmatpush.bf16.msra.mxu0 %v2694
    %3642 = vmatpush.bf16.msra.mxu0 %v2686
    %3643 = vmatpush.bf16.msra.mxu0 %v2678
    %3644 = vmatpush.bf16.msra.mxu0 %v2670
    %3645 = vmatpush.bf16.msra.mxu0 %v2662
    %3646 = vmatmul.bf16.gmra.mxu0 %v162
    %v3647 = vpop.f32.mrf.mxu0
    %v3648 = vadd.f32 %v3635, %v3647
    %v3649 = vpop.f32.mrf.mxu0
    %3650 = vdwg.mxu0
    %3651 = vmatpush.bf16.msra.mxu0 %v2271
    %3652 = vmatpush.bf16.msra.mxu0 %v2263
    %3653 = vmatpush.bf16.msra.mxu0 %v2255
    %3654 = vmatpush.bf16.msra.mxu0 %v2247
    %3655 = vmatpush.bf16.msra.mxu0 %v2239
    %3656 = vmatpush.bf16.msra.mxu0 %v2231
    %3657 = vmatpush.bf16.msra.mxu0 %v2223
    %3658 = vmatpush.bf16.msra.mxu0 %v2215
    %3659 = vmatmul.bf16.gmra.mxu0 %v155
    %v3660 = vpop.f32.mrf.mxu0
    %v3661 = vadd.f32 0.0, %v3660
    %v3662 = vpop.f32.mrf.mxu0
    %3663 = vdwg.mxu0
    %3664 = vmatpush.bf16.msra.mxu0 %v2335
    %3665 = vmatpush.bf16.msra.mxu0 %v2327
    %3666 = vmatpush.bf16.msra.mxu0 %v2319
    %3667 = vmatpush.bf16.msra.mxu0 %v2311
    %3668 = vmatpush.bf16.msra.mxu0 %v2303
    %3669 = vmatpush.bf16.msra.mxu0 %v2295
    %3670 = vmatpush.bf16.msra.mxu0 %v2287
    %3671 = vmatpush.bf16.msra.mxu0 %v2279
    %3672 = vmatmul.bf16.gmra.mxu0 %v156
    %v3673 = vpop.f32.mrf.mxu0
    %v3674 = vadd.f32 %v3661, %v3673
    %v3675 = vpop.f32.mrf.mxu0
    %3676 = vdwg.mxu0
    %3677 = vmatpush.bf16.msra.mxu0 %v2399
    %3678 = vmatpush.bf16.msra.mxu0 %v2391
    %3679 = vmatpush.bf16.msra.mxu0 %v2383
    %3680 = vmatpush.bf16.msra.mxu0 %v2375
    %3681 = vmatpush.bf16.msra.mxu0 %v2367
    %3682 = vmatpush.bf16.msra.mxu0 %v2359
    %3683 = vmatpush.bf16.msra.mxu0 %v2351
    %3684 = vmatpush.bf16.msra.mxu0 %v2343
    %3685 = vmatmul.bf16.gmra.mxu0 %v157
    %v3686 = vpop.f32.mrf.mxu0
    %v3687 = vadd.f32 %v3674, %v3686
    %v3688 = vpop.f32.mrf.mxu0
    %3689 = vdwg.mxu0
    %3690 = vmatpush.bf16.msra.mxu0 %v2463
    %3691 = vmatpush.bf16.msra.mxu0 %v2455
    %3692 = vmatpush.bf16.msra.mxu0 %v2447
    %3693 = vmatpush.bf16.msra.mxu0 %v2439
    %3694 = vmatpush.bf16.msra.mxu0 %v2431
    %3695 = vmatpush.bf16.msra.mxu0 %v2423
    %3696 = vmatpush.bf16.msra.mxu0 %v2415
    %3697 = vmatpush.bf16.msra.mxu0 %v2407
    %3698 = vmatmul.bf16.gmra.mxu0 %v158
    %v3699 = vpop.f32.mrf.mxu0
    %v3700 = vadd.f32 %v3687, %v3699
    %v3701 = vpop.f32.mrf.mxu0
    %3702 = vdwg.mxu0
    %3703 = vmatpush.bf16.msra.mxu0 %v2527
    %3704 = vmatpush.bf16.msra.mxu0 %v2519
    %3705 = vmatpush.bf16.msra.mxu0 %v2511
    %3706 = vmatpush.bf16.msra.mxu0 %v2503
    %3707 = vmatpush.bf16.msra.mxu0 %v2495
    %3708 = vmatpush.bf16.msra.mxu0 %v2487
    %3709 = vmatpush.bf16.msra.mxu0 %v2479
    %3710 = vmatpush.bf16.msra.mxu0 %v2471
    %3711 = vmatmul.bf16.gmra.mxu0 %v159
    %v3712 = vpop.f32.mrf.mxu0
    %v3713 = vadd.f32 %v3700, %v3712
    %v3714 = vpop.f32.mrf.mxu0
    %3715 = vdwg.mxu0
    %3716 = vmatpush.bf16.msra.mxu0 %v2591
    %3717 = vmatpush.bf16.msra.mxu0 %v2583
    %3718 = vmatpush.bf16.msra.mxu0 %v2575
    %3719 = vmatpush.bf16.msra.mxu0 %v2567
    %3720 = vmatpush.bf16.msra.mxu0 %v2559
    %3721 = vmatpush.bf16.msra.mxu0 %v2551
    %3722 = vmatpush.bf16.msra.mxu0 %v2543
    %3723 = vmatpush.bf16.msra.mxu0 %v2535
    %3724 = vmatmul.bf16.gmra.mxu0 %v160
    %v3725 = vpop.f32.mrf.mxu0
    %v3726 = vadd.f32 %v3713, %v3725
    %v3727 = vpop.f32.mrf.mxu0
    %3728 = vdwg.mxu0
    %3729 = vmatpush.bf16.msra.mxu0 %v2655
    %3730 = vmatpush.bf16.msra.mxu0 %v2647
    %3731 = vmatpush.bf16.msra.mxu0 %v2639
    %3732 = vmatpush.bf16.msra.mxu0 %v2631
    %3733 = vmatpush.bf16.msra.mxu0 %v2623
    %3734 = vmatpush.bf16.msra.mxu0 %v2615
    %3735 = vmatpush.bf16.msra.mxu0 %v2607
    %3736 = vmatpush.bf16.msra.mxu0 %v2599
    %3737 = vmatmul.bf16.gmra.mxu0 %v161
    %v3738 = vpop.f32.mrf.mxu0
    %v3739 = vadd.f32 %v3726, %v3738
    %v3740 = vpop.f32.mrf.mxu0
    %3741 = vdwg.mxu0
    %3742 = vmatpush.bf16.msra.mxu0 %v2719
    %3743 = vmatpush.bf16.msra.mxu0 %v2711
    %3744 = vmatpush.bf16.msra.mxu0 %v2703
    %3745 = vmatpush.bf16.msra.mxu0 %v2695
    %3746 = vmatpush.bf16.msra.mxu0 %v2687
    %3747 = vmatpush.bf16.msra.mxu0 %v2679
    %3748 = vmatpush.bf16.msra.mxu0 %v2671
    %3749 = vmatpush.bf16.msra.mxu0 %v2663
    %3750 = vmatmul.bf16.gmra.mxu0 %v162
    %v3751 = vpop.f32.mrf.mxu0
    %v3752 = vadd.f32 %v3739, %v3751
    %v3753 = vpop.f32.mrf.mxu0
    %3754 = vdwg.mxu0
    %3755 = vmatpush.bf16.msra.mxu0 %v2272
    %3756 = vmatpush.bf16.msra.mxu0 %v2264
    %3757 = vmatpush.bf16.msra.mxu0 %v2256
    %3758 = vmatpush.bf16.msra.mxu0 %v2248
    %3759 = vmatpush.bf16.msra.mxu0 %v2240
    %3760 = vmatpush.bf16.msra.mxu0 %v2232
    %3761 = vmatpush.bf16.msra.mxu0 %v2224
    %3762 = vmatpush.bf16.msra.mxu0 %v2216
    %3763 = vmatmul.bf16.gmra.mxu0 %v155
    %v3764 = vpop.f32.mrf.mxu0
    %v3765 = vadd.f32 0.0, %v3764
    %v3766 = vpop.f32.mrf.mxu0
    %3767 = vdwg.mxu0
    %3768 = vmatpush.bf16.msra.mxu0 %v2336
    %3769 = vmatpush.bf16.msra.mxu0 %v2328
    %3770 = vmatpush.bf16.msra.mxu0 %v2320
    %3771 = vmatpush.bf16.msra.mxu0 %v2312
    %3772 = vmatpush.bf16.msra.mxu0 %v2304
    %3773 = vmatpush.bf16.msra.mxu0 %v2296
    %3774 = vmatpush.bf16.msra.mxu0 %v2288
    %3775 = vmatpush.bf16.msra.mxu0 %v2280
    %3776 = vmatmul.bf16.gmra.mxu0 %v156
    %v3777 = vpop.f32.mrf.mxu0
    %v3778 = vadd.f32 %v3765, %v3777
    %v3779 = vpop.f32.mrf.mxu0
    %3780 = vdwg.mxu0
    %3781 = vmatpush.bf16.msra.mxu0 %v2400
    %3782 = vmatpush.bf16.msra.mxu0 %v2392
    %3783 = vmatpush.bf16.msra.mxu0 %v2384
    %3784 = vmatpush.bf16.msra.mxu0 %v2376
    %3785 = vmatpush.bf16.msra.mxu0 %v2368
    %3786 = vmatpush.bf16.msra.mxu0 %v2360
    %3787 = vmatpush.bf16.msra.mxu0 %v2352
    %3788 = vmatpush.bf16.msra.mxu0 %v2344
    %3789 = vmatmul.bf16.gmra.mxu0 %v157
    %v3790 = vpop.f32.mrf.mxu0
    %v3791 = vadd.f32 %v3778, %v3790
    %v3792 = vpop.f32.mrf.mxu0
    %3793 = vdwg.mxu0
    %3794 = vmatpush.bf16.msra.mxu0 %v2464
    %3795 = vmatpush.bf16.msra.mxu0 %v2456
    %3796 = vmatpush.bf16.msra.mxu0 %v2448
    %3797 = vmatpush.bf16.msra.mxu0 %v2440
    %3798 = vmatpush.bf16.msra.mxu0 %v2432
    %3799 = vmatpush.bf16.msra.mxu0 %v2424
    %3800 = vmatpush.bf16.msra.mxu0 %v2416
    %3801 = vmatpush.bf16.msra.mxu0 %v2408
    %3802 = vmatmul.bf16.gmra.mxu0 %v158
    %v3803 = vpop.f32.mrf.mxu0
    %v3804 = vadd.f32 %v3791, %v3803
    %v3805 = vpop.f32.mrf.mxu0
    %3806 = vdwg.mxu0
    %3807 = vmatpush.bf16.msra.mxu0 %v2528
    %3808 = vmatpush.bf16.msra.mxu0 %v2520
    %3809 = vmatpush.bf16.msra.mxu0 %v2512
    %3810 = vmatpush.bf16.msra.mxu0 %v2504
    %3811 = vmatpush.bf16.msra.mxu0 %v2496
    %3812 = vmatpush.bf16.msra.mxu0 %v2488
    %3813 = vmatpush.bf16.msra.mxu0 %v2480
    %3814 = vmatpush.bf16.msra.mxu0 %v2472
    %3815 = vmatmul.bf16.gmra.mxu0 %v159
    %v3816 = vpop.f32.mrf.mxu0
    %v3817 = vadd.f32 %v3804, %v3816
    %v3818 = vpop.f32.mrf.mxu0
    %3819 = vdwg.mxu0
    %3820 = vmatpush.bf16.msra.mxu0 %v2592
    %3821 = vmatpush.bf16.msra.mxu0 %v2584
    %3822 = vmatpush.bf16.msra.mxu0 %v2576
    %3823 = vmatpush.bf16.msra.mxu0 %v2568
    %3824 = vmatpush.bf16.msra.mxu0 %v2560
    %3825 = vmatpush.bf16.msra.mxu0 %v2552
    %3826 = vmatpush.bf16.msra.mxu0 %v2544
    %3827 = vmatpush.bf16.msra.mxu0 %v2536
    %3828 = vmatmul.bf16.gmra.mxu0 %v160
    %v3829 = vpop.f32.mrf.mxu0
    %v3830 = vadd.f32 %v3817, %v3829
    %v3831 = vpop.f32.mrf.mxu0
    %3832 = vdwg.mxu0
    %3833 = vmatpush.bf16.msra.mxu0 %v2656
    %3834 = vmatpush.bf16.msra.mxu0 %v2648
    %3835 = vmatpush.bf16.msra.mxu0 %v2640
    %3836 = vmatpush.bf16.msra.mxu0 %v2632
    %3837 = vmatpush.bf16.msra.mxu0 %v2624
    %3838 = vmatpush.bf16.msra.mxu0 %v2616
    %3839 = vmatpush.bf16.msra.mxu0 %v2608
    %3840 = vmatpush.bf16.msra.mxu0 %v2600
    %3841 = vmatmul.bf16.gmra.mxu0 %v161
    %v3842 = vpop.f32.mrf.mxu0
    %v3843 = vadd.f32 %v3830, %v3842
    %v3844 = vpop.f32.mrf.mxu0
    %3845 = vdwg.mxu0
    %3846 = vmatpush.bf16.msra.mxu0 %v2720
    %3847 = vmatpush.bf16.msra.mxu0 %v2712
    %3848 = vmatpush.bf16.msra.mxu0 %v2704
    %3849 = vmatpush.bf16.msra.mxu0 %v2696
    %3850 = vmatpush.bf16.msra.mxu0 %v2688
    %3851 = vmatpush.bf16.msra.mxu0 %v2680
    %3852 = vmatpush.bf16.msra.mxu0 %v2672
    %3853 = vmatpush.bf16.msra.mxu0 %v2664
    %3854 = vmatmul.bf16.gmra.mxu0 %v162
    %v3855 = vpop.f32.mrf.mxu0
    %v3856 = vadd.f32 %v3843, %v3855
    %v3857 = vpop.f32.mrf.mxu0
    %3858 = vdwg.mxu0
    %3859 = vmatpush.bf16.msra.mxu0 %v2273
    %3860 = vmatpush.bf16.msra.mxu0 %v2265
    %3861 = vmatpush.bf16.msra.mxu0 %v2257
    %3862 = vmatpush.bf16.msra.mxu0 %v2249
    %3863 = vmatpush.bf16.msra.mxu0 %v2241
    %3864 = vmatpush.bf16.msra.mxu0 %v2233
    %3865 = vmatpush.bf16.msra.mxu0 %v2225
    %3866 = vmatpush.bf16.msra.mxu0 %v2217
    %3867 = vmatmul.bf16.gmra.mxu0 %v155
    %v3868 = vpop.f32.mrf.mxu0
    %v3869 = vadd.f32 0.0, %v3868
    %v3870 = vpop.f32.mrf.mxu0
    %3871 = vdwg.mxu0
    %3872 = vmatpush.bf16.msra.mxu0 %v2337
    %3873 = vmatpush.bf16.msra.mxu0 %v2329
    %3874 = vmatpush.bf16.msra.mxu0 %v2321
    %3875 = vmatpush.bf16.msra.mxu0 %v2313
    %3876 = vmatpush.bf16.msra.mxu0 %v2305
    %3877 = vmatpush.bf16.msra.mxu0 %v2297
    %3878 = vmatpush.bf16.msra.mxu0 %v2289
    %3879 = vmatpush.bf16.msra.mxu0 %v2281
    %3880 = vmatmul.bf16.gmra.mxu0 %v156
    %v3881 = vpop.f32.mrf.mxu0
    %v3882 = vadd.f32 %v3869, %v3881
    %v3883 = vpop.f32.mrf.mxu0
    %3884 = vdwg.mxu0
    %3885 = vmatpush.bf16.msra.mxu0 %v2401
    %3886 = vmatpush.bf16.msra.mxu0 %v2393
    %3887 = vmatpush.bf16.msra.mxu0 %v2385
    %3888 = vmatpush.bf16.msra.mxu0 %v2377
    %3889 = vmatpush.bf16.msra.mxu0 %v2369
    %3890 = vmatpush.bf16.msra.mxu0 %v2361
    %3891 = vmatpush.bf16.msra.mxu0 %v2353
    %3892 = vmatpush.bf16.msra.mxu0 %v2345
    %3893 = vmatmul.bf16.gmra.mxu0 %v157
    %v3894 = vpop.f32.mrf.mxu0
    %v3895 = vadd.f32 %v3882, %v3894
    %v3896 = vpop.f32.mrf.mxu0
    %3897 = vdwg.mxu0
    %3898 = vmatpush.bf16.msra.mxu0 %v2465
    %3899 = vmatpush.bf16.msra.mxu0 %v2457
    %3900 = vmatpush.bf16.msra.mxu0 %v2449
    %3901 = vmatpush.bf16.msra.mxu0 %v2441
    %3902 = vmatpush.bf16.msra.mxu0 %v2433
    %3903 = vmatpush.bf16.msra.mxu0 %v2425
    %3904 = vmatpush.bf16.msra.mxu0 %v2417
    %3905 = vmatpush.bf16.msra.mxu0 %v2409
    %3906 = vmatmul.bf16.gmra.mxu0 %v158
    %v3907 = vpop.f32.mrf.mxu0
    %v3908 = vadd.f32 %v3895, %v3907
    %v3909 = vpop.f32.mrf.mxu0
    %3910 = vdwg.mxu0
    %3911 = vmatpush.bf16.msra.mxu0 %v2529
    %3912 = vmatpush.bf16.msra.mxu0 %v2521
    %3913 = vmatpush.bf16.msra.mxu0 %v2513
    %3914 = vmatpush.bf16.msra.mxu0 %v2505
    %3915 = vmatpush.bf16.msra.mxu0 %v2497
    %3916 = vmatpush.bf16.msra.mxu0 %v2489
    %3917 = vmatpush.bf16.msra.mxu0 %v2481
    %3918 = vmatpush.bf16.msra.mxu0 %v2473
    %3919 = vmatmul.bf16.gmra.mxu0 %v159
    %v3920 = vpop.f32.mrf.mxu0
    %v3921 = vadd.f32 %v3908, %v3920
    %v3922 = vpop.f32.mrf.mxu0
    %3923 = vdwg.mxu0
    %3924 = vmatpush.bf16.msra.mxu0 %v2593
    %3925 = vmatpush.bf16.msra.mxu0 %v2585
    %3926 = vmatpush.bf16.msra.mxu0 %v2577
    %3927 = vmatpush.bf16.msra.mxu0 %v2569
    %3928 = vmatpush.bf16.msra.mxu0 %v2561
    %3929 = vmatpush.bf16.msra.mxu0 %v2553
    %3930 = vmatpush.bf16.msra.mxu0 %v2545
    %3931 = vmatpush.bf16.msra.mxu0 %v2537
    %3932 = vmatmul.bf16.gmra.mxu0 %v160
    %v3933 = vpop.f32.mrf.mxu0
    %v3934 = vadd.f32 %v3921, %v3933
    %v3935 = vpop.f32.mrf.mxu0
    %3936 = vdwg.mxu0
    %3937 = vmatpush.bf16.msra.mxu0 %v2657
    %3938 = vmatpush.bf16.msra.mxu0 %v2649
    %3939 = vmatpush.bf16.msra.mxu0 %v2641
    %3940 = vmatpush.bf16.msra.mxu0 %v2633
    %3941 = vmatpush.bf16.msra.mxu0 %v2625
    %3942 = vmatpush.bf16.msra.mxu0 %v2617
    %3943 = vmatpush.bf16.msra.mxu0 %v2609
    %3944 = vmatpush.bf16.msra.mxu0 %v2601
    %3945 = vmatmul.bf16.gmra.mxu0 %v161
    %v3946 = vpop.f32.mrf.mxu0
    %v3947 = vadd.f32 %v3934, %v3946
    %v3948 = vpop.f32.mrf.mxu0
    %3949 = vdwg.mxu0
    %3950 = vmatpush.bf16.msra.mxu0 %v2721
    %3951 = vmatpush.bf16.msra.mxu0 %v2713
    %3952 = vmatpush.bf16.msra.mxu0 %v2705
    %3953 = vmatpush.bf16.msra.mxu0 %v2697
    %3954 = vmatpush.bf16.msra.mxu0 %v2689
    %3955 = vmatpush.bf16.msra.mxu0 %v2681
    %3956 = vmatpush.bf16.msra.mxu0 %v2673
    %3957 = vmatpush.bf16.msra.mxu0 %v2665
    %3958 = vmatmul.bf16.gmra.mxu0 %v162
    %v3959 = vpop.f32.mrf.mxu0
    %v3960 = vadd.f32 %v3947, %v3959
    %v3961 = vpop.f32.mrf.mxu0
    %3962 = vdwg.mxu0
    %3963 = vmatpush.bf16.msra.mxu0 %v2274
    %3964 = vmatpush.bf16.msra.mxu0 %v2266
    %3965 = vmatpush.bf16.msra.mxu0 %v2258
    %3966 = vmatpush.bf16.msra.mxu0 %v2250
    %3967 = vmatpush.bf16.msra.mxu0 %v2242
    %3968 = vmatpush.bf16.msra.mxu0 %v2234
    %3969 = vmatpush.bf16.msra.mxu0 %v2226
    %3970 = vmatpush.bf16.msra.mxu0 %v2218
    %3971 = vmatmul.bf16.gmra.mxu0 %v155
    %v3972 = vpop.f32.mrf.mxu0
    %v3973 = vadd.f32 0.0, %v3972
    %v3974 = vpop.f32.mrf.mxu0
    %3975 = vdwg.mxu0
    %3976 = vmatpush.bf16.msra.mxu0 %v2338
    %3977 = vmatpush.bf16.msra.mxu0 %v2330
    %3978 = vmatpush.bf16.msra.mxu0 %v2322
    %3979 = vmatpush.bf16.msra.mxu0 %v2314
    %3980 = vmatpush.bf16.msra.mxu0 %v2306
    %3981 = vmatpush.bf16.msra.mxu0 %v2298
    %3982 = vmatpush.bf16.msra.mxu0 %v2290
    %3983 = vmatpush.bf16.msra.mxu0 %v2282
    %3984 = vmatmul.bf16.gmra.mxu0 %v156
    %v3985 = vpop.f32.mrf.mxu0
    %v3986 = vadd.f32 %v3973, %v3985
    %v3987 = vpop.f32.mrf.mxu0
    %3988 = vdwg.mxu0
    %3989 = vmatpush.bf16.msra.mxu0 %v2402
    %3990 = vmatpush.bf16.msra.mxu0 %v2394
    %3991 = vmatpush.bf16.msra.mxu0 %v2386
    %3992 = vmatpush.bf16.msra.mxu0 %v2378
    %3993 = vmatpush.bf16.msra.mxu0 %v2370
    %3994 = vmatpush.bf16.msra.mxu0 %v2362
    %3995 = vmatpush.bf16.msra.mxu0 %v2354
    %3996 = vmatpush.bf16.msra.mxu0 %v2346
    %3997 = vmatmul.bf16.gmra.mxu0 %v157
    %v3998 = vpop.f32.mrf.mxu0
    %v3999 = vadd.f32 %v3986, %v3998
    %v4000 = vpop.f32.mrf.mxu0
    %4001 = vdwg.mxu0
    %4002 = vmatpush.bf16.msra.mxu0 %v2466
    %4003 = vmatpush.bf16.msra.mxu0 %v2458
    %4004 = vmatpush.bf16.msra.mxu0 %v2450
    %4005 = vmatpush.bf16.msra.mxu0 %v2442
    %4006 = vmatpush.bf16.msra.mxu0 %v2434
    %4007 = vmatpush.bf16.msra.mxu0 %v2426
    %4008 = vmatpush.bf16.msra.mxu0 %v2418
    %4009 = vmatpush.bf16.msra.mxu0 %v2410
    %4010 = vmatmul.bf16.gmra.mxu0 %v158
    %v4011 = vpop.f32.mrf.mxu0
    %v4012 = vadd.f32 %v3999, %v4011
    %v4013 = vpop.f32.mrf.mxu0
    %4014 = vdwg.mxu0
    %4015 = vmatpush.bf16.msra.mxu0 %v2530
    %4016 = vmatpush.bf16.msra.mxu0 %v2522
    %4017 = vmatpush.bf16.msra.mxu0 %v2514
    %4018 = vmatpush.bf16.msra.mxu0 %v2506
    %4019 = vmatpush.bf16.msra.mxu0 %v2498
    %4020 = vmatpush.bf16.msra.mxu0 %v2490
    %4021 = vmatpush.bf16.msra.mxu0 %v2482
    %4022 = vmatpush.bf16.msra.mxu0 %v2474
    %4023 = vmatmul.bf16.gmra.mxu0 %v159
    %v4024 = vpop.f32.mrf.mxu0
    %v4025 = vadd.f32 %v4012, %v4024
    %v4026 = vpop.f32.mrf.mxu0
    %4027 = vdwg.mxu0
    %4028 = vmatpush.bf16.msra.mxu0 %v2594
    %4029 = vmatpush.bf16.msra.mxu0 %v2586
    %4030 = vmatpush.bf16.msra.mxu0 %v2578
    %4031 = vmatpush.bf16.msra.mxu0 %v2570
    %4032 = vmatpush.bf16.msra.mxu0 %v2562
    %4033 = vmatpush.bf16.msra.mxu0 %v2554
    %4034 = vmatpush.bf16.msra.mxu0 %v2546
    %4035 = vmatpush.bf16.msra.mxu0 %v2538
    %4036 = vmatmul.bf16.gmra.mxu0 %v160
    %v4037 = vpop.f32.mrf.mxu0
    %v4038 = vadd.f32 %v4025, %v4037
    %v4039 = vpop.f32.mrf.mxu0
    %4040 = vdwg.mxu0
    %4041 = vmatpush.bf16.msra.mxu0 %v2658
    %4042 = vmatpush.bf16.msra.mxu0 %v2650
    %4043 = vmatpush.bf16.msra.mxu0 %v2642
    %4044 = vmatpush.bf16.msra.mxu0 %v2634
    %4045 = vmatpush.bf16.msra.mxu0 %v2626
    %4046 = vmatpush.bf16.msra.mxu0 %v2618
    %4047 = vmatpush.bf16.msra.mxu0 %v2610
    %4048 = vmatpush.bf16.msra.mxu0 %v2602
    %4049 = vmatmul.bf16.gmra.mxu0 %v161
    %v4050 = vpop.f32.mrf.mxu0
    %v4051 = vadd.f32 %v4038, %v4050
    %v4052 = vpop.f32.mrf.mxu0
    %4053 = vdwg.mxu0
    %4054 = vmatpush.bf16.msra.mxu0 %v2722
    %4055 = vmatpush.bf16.msra.mxu0 %v2714
    %4056 = vmatpush.bf16.msra.mxu0 %v2706
    %4057 = vmatpush.bf16.msra.mxu0 %v2698
    %4058 = vmatpush.bf16.msra.mxu0 %v2690
    %4059 = vmatpush.bf16.msra.mxu0 %v2682
    %4060 = vmatpush.bf16.msra.mxu0 %v2674
    %4061 = vmatpush.bf16.msra.mxu0 %v2666
    %4062 = vmatmul.bf16.gmra.mxu0 %v162
    %v4063 = vpop.f32.mrf.mxu0
    %v4064 = vadd.f32 %v4051, %v4063
    %v4065 = vpop.f32.mrf.mxu0
    %4066 = vdwg.mxu0
    %vm4067 = vcmp.ge.f32.partialorder %v3336, 0.0
    %vm4068 = vcmp.ge.f32.partialorder %v3440, 0.0
    %vm4069 = vcmp.ge.f32.partialorder %v3544, 0.0
    %vm4070 = vcmp.ge.f32.partialorder %v3648, 0.0
    %vm4071 = vcmp.ge.f32.partialorder %v3752, 0.0
    %vm4072 = vcmp.ge.f32.partialorder %v3856, 0.0
    %vm4073 = vcmp.ge.f32.partialorder %v3960, 0.0
    %vm4074 = vcmp.ge.f32.partialorder %v4064, 0.0
    %v4075 = vmul.f32 %v3336, 0.01
    %v4076 = vmul.f32 %v3440, 0.01
    %v4077 = vmul.f32 %v3544, 0.01
    %v4078 = vmul.f32 %v3648, 0.01
    %v4079 = vmul.f32 %v3752, 0.01
    %v4080 = vmul.f32 %v3856, 0.01
    %v4081 = vmul.f32 %v3960, 0.01
    %v4082 = vmul.f32 %v4064, 0.01
    %v4083 = vsel %vm4067, %v3336, %v4075
    %v4084 = vsel %vm4068, %v3440, %v4076
    %v4085 = vsel %vm4069, %v3544, %v4077
    %v4086 = vsel %vm4070, %v3648, %v4078
    %v4087 = vsel %vm4071, %v3752, %v4079
    %v4088 = vsel %vm4072, %v3856, %v4080
    %v4089 = vsel %vm4073, %v3960, %v4081
    %v4090 = vsel %vm4074, %v4064, %v4082
    %v4091 = vpack.c.bf16 %v4083, %v4083
    %v4092 = vpack.c.bf16 %v4084, %v4084
    %v4093 = vpack.c.bf16 %v4085, %v4085
    %v4094 = vpack.c.bf16 %v4086, %v4086
    %v4095 = vpack.c.bf16 %v4087, %v4087
    %v4096 = vpack.c.bf16 %v4088, %v4088
    %v4097 = vpack.c.bf16 %v4089, %v4089
    %v4098 = vpack.c.bf16 %v4090, %v4090
    %v4099 = vld [vmem:[#allocation7] sm:$0xff]
    %v4100 = vld [vmem:[#allocation7 + $0x8] sm:$0xff]
    %v4101 = vld [vmem:[#allocation7 + $0x10] sm:$0xff]
    %v4102 = vld [vmem:[#allocation7 + $0x18] sm:$0xff]
    %v4103 = vld [vmem:[#allocation7 + $0x20] sm:$0xff]
    %v4104 = vld [vmem:[#allocation7 + $0x28] sm:$0xff]
    %v4105 = vld [vmem:[#allocation7 + $0x30] sm:$0xff]
    %v4106 = vld [vmem:[#allocation7 + $0x38] sm:$0xff]
    %v4107 = vld [vmem:[#allocation7 + $0x40] sm:$0xff]
    %v4108 = vld [vmem:[#allocation7 + $0x48] sm:$0xff]
    %v4109 = vld [vmem:[#allocation7 + $0x50] sm:$0xff]
    %v4110 = vld [vmem:[#allocation7 + $0x58] sm:$0xff]
    %v4111 = vld [vmem:[#allocation7 + $0x60] sm:$0xff]
    %v4112 = vld [vmem:[#allocation7 + $0x68] sm:$0xff]
    %v4113 = vld [vmem:[#allocation7 + $0x70] sm:$0xff]
    %v4114 = vld [vmem:[#allocation7 + $0x78] sm:$0xff]
    %v4115 = vld [vmem:[#allocation7 + $0x80] sm:$0xff]
    %v4116 = vld [vmem:[#allocation7 + $0x88] sm:$0xff]
    %v4117 = vld [vmem:[#allocation7 + $0x90] sm:$0xff]
    %v4118 = vld [vmem:[#allocation7 + $0x98] sm:$0xff]
    %v4119 = vld [vmem:[#allocation7 + $0xa0] sm:$0xff]
    %v4120 = vld [vmem:[#allocation7 + $0xa8] sm:$0xff]
    %v4121 = vld [vmem:[#allocation7 + $0xb0] sm:$0xff]
    %v4122 = vld [vmem:[#allocation7 + $0xb8] sm:$0xff]
    %v4123 = vld [vmem:[#allocation7 + $0xc0] sm:$0xff]
    %v4124 = vld [vmem:[#allocation7 + $0xc8] sm:$0xff]
    %v4125 = vld [vmem:[#allocation7 + $0xd0] sm:$0xff]
    %v4126 = vld [vmem:[#allocation7 + $0xd8] sm:$0xff]
    %v4127 = vld [vmem:[#allocation7 + $0xe0] sm:$0xff]
    %v4128 = vld [vmem:[#allocation7 + $0xe8] sm:$0xff]
    %v4129 = vld [vmem:[#allocation7 + $0xf0] sm:$0xff]
    %v4130 = vld [vmem:[#allocation7 + $0xf8] sm:$0xff]
    %v4131 = vld [vmem:[#allocation7 + $0x100] sm:$0xff]
    %v4132 = vld [vmem:[#allocation7 + $0x108] sm:$0xff]
    %v4133 = vld [vmem:[#allocation7 + $0x110] sm:$0xff]
    %v4134 = vld [vmem:[#allocation7 + $0x118] sm:$0xff]
    %v4135 = vld [vmem:[#allocation7 + $0x120] sm:$0xff]
    %v4136 = vld [vmem:[#allocation7 + $0x128] sm:$0xff]
    %v4137 = vld [vmem:[#allocation7 + $0x130] sm:$0xff]
    %v4138 = vld [vmem:[#allocation7 + $0x138] sm:$0xff]
    %v4139 = vld [vmem:[#allocation7 + $0x140] sm:$0xff]
    %v4140 = vld [vmem:[#allocation7 + $0x148] sm:$0xff]
    %v4141 = vld [vmem:[#allocation7 + $0x150] sm:$0xff]
    %v4142 = vld [vmem:[#allocation7 + $0x158] sm:$0xff]
    %v4143 = vld [vmem:[#allocation7 + $0x160] sm:$0xff]
    %v4144 = vld [vmem:[#allocation7 + $0x168] sm:$0xff]
    %v4145 = vld [vmem:[#allocation7 + $0x170] sm:$0xff]
    %v4146 = vld [vmem:[#allocation7 + $0x178] sm:$0xff]
    %v4147 = vld [vmem:[#allocation7 + $0x180] sm:$0xff]
    %v4148 = vld [vmem:[#allocation7 + $0x188] sm:$0xff]
    %v4149 = vld [vmem:[#allocation7 + $0x190] sm:$0xff]
    %v4150 = vld [vmem:[#allocation7 + $0x198] sm:$0xff]
    %v4151 = vld [vmem:[#allocation7 + $0x1a0] sm:$0xff]
    %v4152 = vld [vmem:[#allocation7 + $0x1a8] sm:$0xff]
    %v4153 = vld [vmem:[#allocation7 + $0x1b0] sm:$0xff]
    %v4154 = vld [vmem:[#allocation7 + $0x1b8] sm:$0xff]
    %v4155 = vld [vmem:[#allocation7 + $0x1c0] sm:$0xff]
    %v4156 = vld [vmem:[#allocation7 + $0x1c8] sm:$0xff]
    %v4157 = vld [vmem:[#allocation7 + $0x1d0] sm:$0xff]
    %v4158 = vld [vmem:[#allocation7 + $0x1d8] sm:$0xff]
    %v4159 = vld [vmem:[#allocation7 + $0x1e0] sm:$0xff]
    %v4160 = vld [vmem:[#allocation7 + $0x1e8] sm:$0xff]
    %v4161 = vld [vmem:[#allocation7 + $0x1f0] sm:$0xff]
    %v4162 = vld [vmem:[#allocation7 + $0x1f8] sm:$0xff]
    %v4163 = vld [vmem:[#allocation7 + $0x200] sm:$0xff]
    %v4164 = vld [vmem:[#allocation7 + $0x208] sm:$0xff]
    %v4165 = vld [vmem:[#allocation7 + $0x210] sm:$0xff]
    %v4166 = vld [vmem:[#allocation7 + $0x218] sm:$0xff]
    %v4167 = vld [vmem:[#allocation7 + $0x220] sm:$0xff]
    %v4168 = vld [vmem:[#allocation7 + $0x228] sm:$0xff]
    %v4169 = vld [vmem:[#allocation7 + $0x230] sm:$0xff]
    %v4170 = vld [vmem:[#allocation7 + $0x238] sm:$0xff]
    %v4171 = vld [vmem:[#allocation7 + $0x240] sm:$0xff]
    %v4172 = vld [vmem:[#allocation7 + $0x248] sm:$0xff]
    %v4173 = vld [vmem:[#allocation7 + $0x250] sm:$0xff]
    %v4174 = vld [vmem:[#allocation7 + $0x258] sm:$0xff]
    %v4175 = vld [vmem:[#allocation7 + $0x260] sm:$0xff]
    %v4176 = vld [vmem:[#allocation7 + $0x268] sm:$0xff]
    %v4177 = vld [vmem:[#allocation7 + $0x270] sm:$0xff]
    %v4178 = vld [vmem:[#allocation7 + $0x278] sm:$0xff]
    %v4179 = vld [vmem:[#allocation7 + $0x280] sm:$0xff]
    %v4180 = vld [vmem:[#allocation7 + $0x288] sm:$0xff]
    %v4181 = vld [vmem:[#allocation7 + $0x290] sm:$0xff]
    %v4182 = vld [vmem:[#allocation7 + $0x298] sm:$0xff]
    %v4183 = vld [vmem:[#allocation7 + $0x2a0] sm:$0xff]
    %v4184 = vld [vmem:[#allocation7 + $0x2a8] sm:$0xff]
    %v4185 = vld [vmem:[#allocation7 + $0x2b0] sm:$0xff]
    %v4186 = vld [vmem:[#allocation7 + $0x2b8] sm:$0xff]
    %v4187 = vld [vmem:[#allocation7 + $0x2c0] sm:$0xff]
    %v4188 = vld [vmem:[#allocation7 + $0x2c8] sm:$0xff]
    %v4189 = vld [vmem:[#allocation7 + $0x2d0] sm:$0xff]
    %v4190 = vld [vmem:[#allocation7 + $0x2d8] sm:$0xff]
    %v4191 = vld [vmem:[#allocation7 + $0x2e0] sm:$0xff]
    %v4192 = vld [vmem:[#allocation7 + $0x2e8] sm:$0xff]
    %v4193 = vld [vmem:[#allocation7 + $0x2f0] sm:$0xff]
    %v4194 = vld [vmem:[#allocation7 + $0x2f8] sm:$0xff]
    %v4195 = vld [vmem:[#allocation7 + $0x300] sm:$0xff]
    %v4196 = vld [vmem:[#allocation7 + $0x308] sm:$0xff]
    %v4197 = vld [vmem:[#allocation7 + $0x310] sm:$0xff]
    %v4198 = vld [vmem:[#allocation7 + $0x318] sm:$0xff]
    %v4199 = vld [vmem:[#allocation7 + $0x320] sm:$0xff]
    %v4200 = vld [vmem:[#allocation7 + $0x328] sm:$0xff]
    %v4201 = vld [vmem:[#allocation7 + $0x330] sm:$0xff]
    %v4202 = vld [vmem:[#allocation7 + $0x338] sm:$0xff]
    %v4203 = vld [vmem:[#allocation7 + $0x340] sm:$0xff]
    %v4204 = vld [vmem:[#allocation7 + $0x348] sm:$0xff]
    %v4205 = vld [vmem:[#allocation7 + $0x350] sm:$0xff]
    %v4206 = vld [vmem:[#allocation7 + $0x358] sm:$0xff]
    %v4207 = vld [vmem:[#allocation7 + $0x360] sm:$0xff]
    %v4208 = vld [vmem:[#allocation7 + $0x368] sm:$0xff]
    %v4209 = vld [vmem:[#allocation7 + $0x370] sm:$0xff]
    %v4210 = vld [vmem:[#allocation7 + $0x378] sm:$0xff]
    %v4211 = vld [vmem:[#allocation7 + $0x380] sm:$0xff]
    %v4212 = vld [vmem:[#allocation7 + $0x388] sm:$0xff]
    %v4213 = vld [vmem:[#allocation7 + $0x390] sm:$0xff]
    %v4214 = vld [vmem:[#allocation7 + $0x398] sm:$0xff]
    %v4215 = vld [vmem:[#allocation7 + $0x3a0] sm:$0xff]
    %v4216 = vld [vmem:[#allocation7 + $0x3a8] sm:$0xff]
    %v4217 = vld [vmem:[#allocation7 + $0x3b0] sm:$0xff]
    %v4218 = vld [vmem:[#allocation7 + $0x3b8] sm:$0xff]
    %v4219 = vld [vmem:[#allocation7 + $0x3c0] sm:$0xff]
    %v4220 = vld [vmem:[#allocation7 + $0x3c8] sm:$0xff]
    %v4221 = vld [vmem:[#allocation7 + $0x3d0] sm:$0xff]
    %v4222 = vld [vmem:[#allocation7 + $0x3d8] sm:$0xff]
    %v4223 = vld [vmem:[#allocation7 + $0x3e0] sm:$0xff]
    %v4224 = vld [vmem:[#allocation7 + $0x3e8] sm:$0xff]
    %v4225 = vld [vmem:[#allocation7 + $0x3f0] sm:$0xff]
    %v4226 = vld [vmem:[#allocation7 + $0x3f8] sm:$0xff]
    %v4227 = vld [vmem:[#allocation7 + $0x400] sm:$0xff]
    %v4228 = vld [vmem:[#allocation7 + $0x408] sm:$0xff]
    %v4229 = vld [vmem:[#allocation7 + $0x410] sm:$0xff]
    %v4230 = vld [vmem:[#allocation7 + $0x418] sm:$0xff]
    %v4231 = vld [vmem:[#allocation7 + $0x420] sm:$0xff]
    %v4232 = vld [vmem:[#allocation7 + $0x428] sm:$0xff]
    %v4233 = vld [vmem:[#allocation7 + $0x430] sm:$0xff]
    %v4234 = vld [vmem:[#allocation7 + $0x438] sm:$0xff]
    %v4235 = vld [vmem:[#allocation7 + $0x440] sm:$0xff]
    %v4236 = vld [vmem:[#allocation7 + $0x448] sm:$0xff]
    %v4237 = vld [vmem:[#allocation7 + $0x450] sm:$0xff]
    %v4238 = vld [vmem:[#allocation7 + $0x458] sm:$0xff]
    %v4239 = vld [vmem:[#allocation7 + $0x460] sm:$0xff]
    %v4240 = vld [vmem:[#allocation7 + $0x468] sm:$0xff]
    %v4241 = vld [vmem:[#allocation7 + $0x470] sm:$0xff]
    %v4242 = vld [vmem:[#allocation7 + $0x478] sm:$0xff]
    %v4243 = vld [vmem:[#allocation7 + $0x480] sm:$0xff]
    %v4244 = vld [vmem:[#allocation7 + $0x488] sm:$0xff]
    %v4245 = vld [vmem:[#allocation7 + $0x490] sm:$0xff]
    %v4246 = vld [vmem:[#allocation7 + $0x498] sm:$0xff]
    %v4247 = vld [vmem:[#allocation7 + $0x4a0] sm:$0xff]
    %v4248 = vld [vmem:[#allocation7 + $0x4a8] sm:$0xff]
    %v4249 = vld [vmem:[#allocation7 + $0x4b0] sm:$0xff]
    %v4250 = vld [vmem:[#allocation7 + $0x4b8] sm:$0xff]
    %v4251 = vld [vmem:[#allocation7 + $0x4c0] sm:$0xff]
    %v4252 = vld [vmem:[#allocation7 + $0x4c8] sm:$0xff]
    %v4253 = vld [vmem:[#allocation7 + $0x4d0] sm:$0xff]
    %v4254 = vld [vmem:[#allocation7 + $0x4d8] sm:$0xff]
    %v4255 = vld [vmem:[#allocation7 + $0x4e0] sm:$0xff]
    %v4256 = vld [vmem:[#allocation7 + $0x4e8] sm:$0xff]
    %v4257 = vld [vmem:[#allocation7 + $0x4f0] sm:$0xff]
    %v4258 = vld [vmem:[#allocation7 + $0x4f8] sm:$0xff]
    %v4259 = vld [vmem:[#allocation7 + $0x500] sm:$0xff]
    %v4260 = vld [vmem:[#allocation7 + $0x508] sm:$0xff]
    %v4261 = vld [vmem:[#allocation7 + $0x510] sm:$0xff]
    %v4262 = vld [vmem:[#allocation7 + $0x518] sm:$0xff]
    %v4263 = vld [vmem:[#allocation7 + $0x520] sm:$0xff]
    %v4264 = vld [vmem:[#allocation7 + $0x528] sm:$0xff]
    %v4265 = vld [vmem:[#allocation7 + $0x530] sm:$0xff]
    %v4266 = vld [vmem:[#allocation7 + $0x538] sm:$0xff]
    %v4267 = vld [vmem:[#allocation7 + $0x540] sm:$0xff]
    %v4268 = vld [vmem:[#allocation7 + $0x548] sm:$0xff]
    %v4269 = vld [vmem:[#allocation7 + $0x550] sm:$0xff]
    %v4270 = vld [vmem:[#allocation7 + $0x558] sm:$0xff]
    %v4271 = vld [vmem:[#allocation7 + $0x560] sm:$0xff]
    %v4272 = vld [vmem:[#allocation7 + $0x568] sm:$0xff]
    %v4273 = vld [vmem:[#allocation7 + $0x570] sm:$0xff]
    %v4274 = vld [vmem:[#allocation7 + $0x578] sm:$0xff]
    %v4275 = vld [vmem:[#allocation7 + $0x580] sm:$0xff]
    %v4276 = vld [vmem:[#allocation7 + $0x588] sm:$0xff]
    %v4277 = vld [vmem:[#allocation7 + $0x590] sm:$0xff]
    %v4278 = vld [vmem:[#allocation7 + $0x598] sm:$0xff]
    %v4279 = vld [vmem:[#allocation7 + $0x5a0] sm:$0xff]
    %v4280 = vld [vmem:[#allocation7 + $0x5a8] sm:$0xff]
    %v4281 = vld [vmem:[#allocation7 + $0x5b0] sm:$0xff]
    %v4282 = vld [vmem:[#allocation7 + $0x5b8] sm:$0xff]
    %v4283 = vld [vmem:[#allocation7 + $0x5c0] sm:$0xff]
    %v4284 = vld [vmem:[#allocation7 + $0x5c8] sm:$0xff]
    %v4285 = vld [vmem:[#allocation7 + $0x5d0] sm:$0xff]
    %v4286 = vld [vmem:[#allocation7 + $0x5d8] sm:$0xff]
    %v4287 = vld [vmem:[#allocation7 + $0x5e0] sm:$0xff]
    %v4288 = vld [vmem:[#allocation7 + $0x5e8] sm:$0xff]
    %v4289 = vld [vmem:[#allocation7 + $0x5f0] sm:$0xff]
    %v4290 = vld [vmem:[#allocation7 + $0x5f8] sm:$0xff]
    %v4291 = vld [vmem:[#allocation7 + $0x600] sm:$0xff]
    %v4292 = vld [vmem:[#allocation7 + $0x608] sm:$0xff]
    %v4293 = vld [vmem:[#allocation7 + $0x610] sm:$0xff]
    %v4294 = vld [vmem:[#allocation7 + $0x618] sm:$0xff]
    %v4295 = vld [vmem:[#allocation7 + $0x620] sm:$0xff]
    %v4296 = vld [vmem:[#allocation7 + $0x628] sm:$0xff]
    %v4297 = vld [vmem:[#allocation7 + $0x630] sm:$0xff]
    %v4298 = vld [vmem:[#allocation7 + $0x638] sm:$0xff]
    %v4299 = vld [vmem:[#allocation7 + $0x640] sm:$0xff]
    %v4300 = vld [vmem:[#allocation7 + $0x648] sm:$0xff]
    %v4301 = vld [vmem:[#allocation7 + $0x650] sm:$0xff]
    %v4302 = vld [vmem:[#allocation7 + $0x658] sm:$0xff]
    %v4303 = vld [vmem:[#allocation7 + $0x660] sm:$0xff]
    %v4304 = vld [vmem:[#allocation7 + $0x668] sm:$0xff]
    %v4305 = vld [vmem:[#allocation7 + $0x670] sm:$0xff]
    %v4306 = vld [vmem:[#allocation7 + $0x678] sm:$0xff]
    %v4307 = vld [vmem:[#allocation7 + $0x680] sm:$0xff]
    %v4308 = vld [vmem:[#allocation7 + $0x688] sm:$0xff]
    %v4309 = vld [vmem:[#allocation7 + $0x690] sm:$0xff]
    %v4310 = vld [vmem:[#allocation7 + $0x698] sm:$0xff]
    %v4311 = vld [vmem:[#allocation7 + $0x6a0] sm:$0xff]
    %v4312 = vld [vmem:[#allocation7 + $0x6a8] sm:$0xff]
    %v4313 = vld [vmem:[#allocation7 + $0x6b0] sm:$0xff]
    %v4314 = vld [vmem:[#allocation7 + $0x6b8] sm:$0xff]
    %v4315 = vld [vmem:[#allocation7 + $0x6c0] sm:$0xff]
    %v4316 = vld [vmem:[#allocation7 + $0x6c8] sm:$0xff]
    %v4317 = vld [vmem:[#allocation7 + $0x6d0] sm:$0xff]
    %v4318 = vld [vmem:[#allocation7 + $0x6d8] sm:$0xff]
    %v4319 = vld [vmem:[#allocation7 + $0x6e0] sm:$0xff]
    %v4320 = vld [vmem:[#allocation7 + $0x6e8] sm:$0xff]
    %v4321 = vld [vmem:[#allocation7 + $0x6f0] sm:$0xff]
    %v4322 = vld [vmem:[#allocation7 + $0x6f8] sm:$0xff]
    %v4323 = vld [vmem:[#allocation7 + $0x700] sm:$0xff]
    %v4324 = vld [vmem:[#allocation7 + $0x708] sm:$0xff]
    %v4325 = vld [vmem:[#allocation7 + $0x710] sm:$0xff]
    %v4326 = vld [vmem:[#allocation7 + $0x718] sm:$0xff]
    %v4327 = vld [vmem:[#allocation7 + $0x720] sm:$0xff]
    %v4328 = vld [vmem:[#allocation7 + $0x728] sm:$0xff]
    %v4329 = vld [vmem:[#allocation7 + $0x730] sm:$0xff]
    %v4330 = vld [vmem:[#allocation7 + $0x738] sm:$0xff]
    %v4331 = vld [vmem:[#allocation7 + $0x740] sm:$0xff]
    %v4332 = vld [vmem:[#allocation7 + $0x748] sm:$0xff]
    %v4333 = vld [vmem:[#allocation7 + $0x750] sm:$0xff]
    %v4334 = vld [vmem:[#allocation7 + $0x758] sm:$0xff]
    %v4335 = vld [vmem:[#allocation7 + $0x760] sm:$0xff]
    %v4336 = vld [vmem:[#allocation7 + $0x768] sm:$0xff]
    %v4337 = vld [vmem:[#allocation7 + $0x770] sm:$0xff]
    %v4338 = vld [vmem:[#allocation7 + $0x778] sm:$0xff]
    %v4339 = vld [vmem:[#allocation7 + $0x780] sm:$0xff]
    %v4340 = vld [vmem:[#allocation7 + $0x788] sm:$0xff]
    %v4341 = vld [vmem:[#allocation7 + $0x790] sm:$0xff]
    %v4342 = vld [vmem:[#allocation7 + $0x798] sm:$0xff]
    %v4343 = vld [vmem:[#allocation7 + $0x7a0] sm:$0xff]
    %v4344 = vld [vmem:[#allocation7 + $0x7a8] sm:$0xff]
    %v4345 = vld [vmem:[#allocation7 + $0x7b0] sm:$0xff]
    %v4346 = vld [vmem:[#allocation7 + $0x7b8] sm:$0xff]
    %v4347 = vld [vmem:[#allocation7 + $0x7c0] sm:$0xff]
    %v4348 = vld [vmem:[#allocation7 + $0x7c8] sm:$0xff]
    %v4349 = vld [vmem:[#allocation7 + $0x7d0] sm:$0xff]
    %v4350 = vld [vmem:[#allocation7 + $0x7d8] sm:$0xff]
    %v4351 = vld [vmem:[#allocation7 + $0x7e0] sm:$0xff]
    %v4352 = vld [vmem:[#allocation7 + $0x7e8] sm:$0xff]
    %v4353 = vld [vmem:[#allocation7 + $0x7f0] sm:$0xff]
    %v4354 = vld [vmem:[#allocation7 + $0x7f8] sm:$0xff]
    %v4611 = vunpack.c.l.b16 %v4099
    %v4612 = vunpack.c.h.b16 %v4099
    %v4613 = vunpack.c.l.b16 %v4100
    %v4614 = vunpack.c.h.b16 %v4100
    %v4615 = vunpack.c.l.b16 %v4101
    %v4616 = vunpack.c.h.b16 %v4101
    %v4617 = vunpack.c.l.b16 %v4102
    %v4618 = vunpack.c.h.b16 %v4102
    %v4619 = vunpack.c.l.b16 %v4103
    %v4620 = vunpack.c.h.b16 %v4103
    %v4621 = vunpack.c.l.b16 %v4104
    %v4622 = vunpack.c.h.b16 %v4104
    %v4623 = vunpack.c.l.b16 %v4105
    %v4624 = vunpack.c.h.b16 %v4105
    %v4625 = vunpack.c.l.b16 %v4106
    %v4626 = vunpack.c.h.b16 %v4106
    %v4627 = vunpack.c.l.b16 %v4107
    %v4628 = vunpack.c.h.b16 %v4107
    %v4629 = vunpack.c.l.b16 %v4108
    %v4630 = vunpack.c.h.b16 %v4108
    %v4631 = vunpack.c.l.b16 %v4109
    %v4632 = vunpack.c.h.b16 %v4109
    %v4633 = vunpack.c.l.b16 %v4110
    %v4634 = vunpack.c.h.b16 %v4110
    %v4635 = vunpack.c.l.b16 %v4111
    %v4636 = vunpack.c.h.b16 %v4111
    %v4637 = vunpack.c.l.b16 %v4112
    %v4638 = vunpack.c.h.b16 %v4112
    %v4639 = vunpack.c.l.b16 %v4113
    %v4640 = vunpack.c.h.b16 %v4113
    %v4641 = vunpack.c.l.b16 %v4114
    %v4642 = vunpack.c.h.b16 %v4114
    %v4643 = vunpack.c.l.b16 %v4115
    %v4644 = vunpack.c.h.b16 %v4115
    %v4645 = vunpack.c.l.b16 %v4116
    %v4646 = vunpack.c.h.b16 %v4116
    %v4647 = vunpack.c.l.b16 %v4117
    %v4648 = vunpack.c.h.b16 %v4117
    %v4649 = vunpack.c.l.b16 %v4118
    %v4650 = vunpack.c.h.b16 %v4118
    %v4651 = vunpack.c.l.b16 %v4119
    %v4652 = vunpack.c.h.b16 %v4119
    %v4653 = vunpack.c.l.b16 %v4120
    %v4654 = vunpack.c.h.b16 %v4120
    %v4655 = vunpack.c.l.b16 %v4121
    %v4656 = vunpack.c.h.b16 %v4121
    %v4657 = vunpack.c.l.b16 %v4122
    %v4658 = vunpack.c.h.b16 %v4122
    %v4659 = vunpack.c.l.b16 %v4123
    %v4660 = vunpack.c.h.b16 %v4123
    %v4661 = vunpack.c.l.b16 %v4124
    %v4662 = vunpack.c.h.b16 %v4124
    %v4663 = vunpack.c.l.b16 %v4125
    %v4664 = vunpack.c.h.b16 %v4125
    %v4665 = vunpack.c.l.b16 %v4126
    %v4666 = vunpack.c.h.b16 %v4126
    %v4667 = vunpack.c.l.b16 %v4127
    %v4668 = vunpack.c.h.b16 %v4127
    %v4669 = vunpack.c.l.b16 %v4128
    %v4670 = vunpack.c.h.b16 %v4128
    %v4671 = vunpack.c.l.b16 %v4129
    %v4672 = vunpack.c.h.b16 %v4129
    %v4673 = vunpack.c.l.b16 %v4130
    %v4674 = vunpack.c.h.b16 %v4130
    %v4675 = vunpack.c.l.b16 %v4131
    %v4676 = vunpack.c.h.b16 %v4131
    %v4677 = vunpack.c.l.b16 %v4132
    %v4678 = vunpack.c.h.b16 %v4132
    %v4679 = vunpack.c.l.b16 %v4133
    %v4680 = vunpack.c.h.b16 %v4133
    %v4681 = vunpack.c.l.b16 %v4134
    %v4682 = vunpack.c.h.b16 %v4134
    %v4683 = vunpack.c.l.b16 %v4135
    %v4684 = vunpack.c.h.b16 %v4135
    %v4685 = vunpack.c.l.b16 %v4136
    %v4686 = vunpack.c.h.b16 %v4136
    %v4687 = vunpack.c.l.b16 %v4137
    %v4688 = vunpack.c.h.b16 %v4137
    %v4689 = vunpack.c.l.b16 %v4138
    %v4690 = vunpack.c.h.b16 %v4138
    %v4691 = vunpack.c.l.b16 %v4139
    %v4692 = vunpack.c.h.b16 %v4139
    %v4693 = vunpack.c.l.b16 %v4140
    %v4694 = vunpack.c.h.b16 %v4140
    %v4695 = vunpack.c.l.b16 %v4141
    %v4696 = vunpack.c.h.b16 %v4141
    %v4697 = vunpack.c.l.b16 %v4142
    %v4698 = vunpack.c.h.b16 %v4142
    %v4699 = vunpack.c.l.b16 %v4143
    %v4700 = vunpack.c.h.b16 %v4143
    %v4701 = vunpack.c.l.b16 %v4144
    %v4702 = vunpack.c.h.b16 %v4144
    %v4703 = vunpack.c.l.b16 %v4145
    %v4704 = vunpack.c.h.b16 %v4145
    %v4705 = vunpack.c.l.b16 %v4146
    %v4706 = vunpack.c.h.b16 %v4146
    %v4707 = vunpack.c.l.b16 %v4147
    %v4708 = vunpack.c.h.b16 %v4147
    %v4709 = vunpack.c.l.b16 %v4148
    %v4710 = vunpack.c.h.b16 %v4148
    %v4711 = vunpack.c.l.b16 %v4149
    %v4712 = vunpack.c.h.b16 %v4149
    %v4713 = vunpack.c.l.b16 %v4150
    %v4714 = vunpack.c.h.b16 %v4150
    %v4715 = vunpack.c.l.b16 %v4151
    %v4716 = vunpack.c.h.b16 %v4151
    %v4717 = vunpack.c.l.b16 %v4152
    %v4718 = vunpack.c.h.b16 %v4152
    %v4719 = vunpack.c.l.b16 %v4153
    %v4720 = vunpack.c.h.b16 %v4153
    %v4721 = vunpack.c.l.b16 %v4154
    %v4722 = vunpack.c.h.b16 %v4154
    %v4723 = vunpack.c.l.b16 %v4155
    %v4724 = vunpack.c.h.b16 %v4155
    %v4725 = vunpack.c.l.b16 %v4156
    %v4726 = vunpack.c.h.b16 %v4156
    %v4727 = vunpack.c.l.b16 %v4157
    %v4728 = vunpack.c.h.b16 %v4157
    %v4729 = vunpack.c.l.b16 %v4158
    %v4730 = vunpack.c.h.b16 %v4158
    %v4731 = vunpack.c.l.b16 %v4159
    %v4732 = vunpack.c.h.b16 %v4159
    %v4733 = vunpack.c.l.b16 %v4160
    %v4734 = vunpack.c.h.b16 %v4160
    %v4735 = vunpack.c.l.b16 %v4161
    %v4736 = vunpack.c.h.b16 %v4161
    %v4737 = vunpack.c.l.b16 %v4162
    %v4738 = vunpack.c.h.b16 %v4162
    %v4739 = vunpack.c.l.b16 %v4163
    %v4740 = vunpack.c.h.b16 %v4163
    %v4741 = vunpack.c.l.b16 %v4164
    %v4742 = vunpack.c.h.b16 %v4164
    %v4743 = vunpack.c.l.b16 %v4165
    %v4744 = vunpack.c.h.b16 %v4165
    %v4745 = vunpack.c.l.b16 %v4166
    %v4746 = vunpack.c.h.b16 %v4166
    %v4747 = vunpack.c.l.b16 %v4167
    %v4748 = vunpack.c.h.b16 %v4167
    %v4749 = vunpack.c.l.b16 %v4168
    %v4750 = vunpack.c.h.b16 %v4168
    %v4751 = vunpack.c.l.b16 %v4169
    %v4752 = vunpack.c.h.b16 %v4169
    %v4753 = vunpack.c.l.b16 %v4170
    %v4754 = vunpack.c.h.b16 %v4170
    %v4755 = vunpack.c.l.b16 %v4171
    %v4756 = vunpack.c.h.b16 %v4171
    %v4757 = vunpack.c.l.b16 %v4172
    %v4758 = vunpack.c.h.b16 %v4172
    %v4759 = vunpack.c.l.b16 %v4173
    %v4760 = vunpack.c.h.b16 %v4173
    %v4761 = vunpack.c.l.b16 %v4174
    %v4762 = vunpack.c.h.b16 %v4174
    %v4763 = vunpack.c.l.b16 %v4175
    %v4764 = vunpack.c.h.b16 %v4175
    %v4765 = vunpack.c.l.b16 %v4176
    %v4766 = vunpack.c.h.b16 %v4176
    %v4767 = vunpack.c.l.b16 %v4177
    %v4768 = vunpack.c.h.b16 %v4177
    %v4769 = vunpack.c.l.b16 %v4178
    %v4770 = vunpack.c.h.b16 %v4178
    %v4771 = vunpack.c.l.b16 %v4179
    %v4772 = vunpack.c.h.b16 %v4179
    %v4773 = vunpack.c.l.b16 %v4180
    %v4774 = vunpack.c.h.b16 %v4180
    %v4775 = vunpack.c.l.b16 %v4181
    %v4776 = vunpack.c.h.b16 %v4181
    %v4777 = vunpack.c.l.b16 %v4182
    %v4778 = vunpack.c.h.b16 %v4182
    %v4779 = vunpack.c.l.b16 %v4183
    %v4780 = vunpack.c.h.b16 %v4183
    %v4781 = vunpack.c.l.b16 %v4184
    %v4782 = vunpack.c.h.b16 %v4184
    %v4783 = vunpack.c.l.b16 %v4185
    %v4784 = vunpack.c.h.b16 %v4185
    %v4785 = vunpack.c.l.b16 %v4186
    %v4786 = vunpack.c.h.b16 %v4186
    %v4787 = vunpack.c.l.b16 %v4187
    %v4788 = vunpack.c.h.b16 %v4187
    %v4789 = vunpack.c.l.b16 %v4188
    %v4790 = vunpack.c.h.b16 %v4188
    %v4791 = vunpack.c.l.b16 %v4189
    %v4792 = vunpack.c.h.b16 %v4189
    %v4793 = vunpack.c.l.b16 %v4190
    %v4794 = vunpack.c.h.b16 %v4190
    %v4795 = vunpack.c.l.b16 %v4191
    %v4796 = vunpack.c.h.b16 %v4191
    %v4797 = vunpack.c.l.b16 %v4192
    %v4798 = vunpack.c.h.b16 %v4192
    %v4799 = vunpack.c.l.b16 %v4193
    %v4800 = vunpack.c.h.b16 %v4193
    %v4801 = vunpack.c.l.b16 %v4194
    %v4802 = vunpack.c.h.b16 %v4194
    %v4803 = vunpack.c.l.b16 %v4195
    %v4804 = vunpack.c.h.b16 %v4195
    %v4805 = vunpack.c.l.b16 %v4196
    %v4806 = vunpack.c.h.b16 %v4196
    %v4807 = vunpack.c.l.b16 %v4197
    %v4808 = vunpack.c.h.b16 %v4197
    %v4809 = vunpack.c.l.b16 %v4198
    %v4810 = vunpack.c.h.b16 %v4198
    %v4811 = vunpack.c.l.b16 %v4199
    %v4812 = vunpack.c.h.b16 %v4199
    %v4813 = vunpack.c.l.b16 %v4200
    %v4814 = vunpack.c.h.b16 %v4200
    %v4815 = vunpack.c.l.b16 %v4201
    %v4816 = vunpack.c.h.b16 %v4201
    %v4817 = vunpack.c.l.b16 %v4202
    %v4818 = vunpack.c.h.b16 %v4202
    %v4819 = vunpack.c.l.b16 %v4203
    %v4820 = vunpack.c.h.b16 %v4203
    %v4821 = vunpack.c.l.b16 %v4204
    %v4822 = vunpack.c.h.b16 %v4204
    %v4823 = vunpack.c.l.b16 %v4205
    %v4824 = vunpack.c.h.b16 %v4205
    %v4825 = vunpack.c.l.b16 %v4206
    %v4826 = vunpack.c.h.b16 %v4206
    %v4827 = vunpack.c.l.b16 %v4207
    %v4828 = vunpack.c.h.b16 %v4207
    %v4829 = vunpack.c.l.b16 %v4208
    %v4830 = vunpack.c.h.b16 %v4208
    %v4831 = vunpack.c.l.b16 %v4209
    %v4832 = vunpack.c.h.b16 %v4209
    %v4833 = vunpack.c.l.b16 %v4210
    %v4834 = vunpack.c.h.b16 %v4210
    %v4835 = vunpack.c.l.b16 %v4211
    %v4836 = vunpack.c.h.b16 %v4211
    %v4837 = vunpack.c.l.b16 %v4212
    %v4838 = vunpack.c.h.b16 %v4212
    %v4839 = vunpack.c.l.b16 %v4213
    %v4840 = vunpack.c.h.b16 %v4213
    %v4841 = vunpack.c.l.b16 %v4214
    %v4842 = vunpack.c.h.b16 %v4214
    %v4843 = vunpack.c.l.b16 %v4215
    %v4844 = vunpack.c.h.b16 %v4215
    %v4845 = vunpack.c.l.b16 %v4216
    %v4846 = vunpack.c.h.b16 %v4216
    %v4847 = vunpack.c.l.b16 %v4217
    %v4848 = vunpack.c.h.b16 %v4217
    %v4849 = vunpack.c.l.b16 %v4218
    %v4850 = vunpack.c.h.b16 %v4218
    %v4851 = vunpack.c.l.b16 %v4219
    %v4852 = vunpack.c.h.b16 %v4219
    %v4853 = vunpack.c.l.b16 %v4220
    %v4854 = vunpack.c.h.b16 %v4220
    %v4855 = vunpack.c.l.b16 %v4221
    %v4856 = vunpack.c.h.b16 %v4221
    %v4857 = vunpack.c.l.b16 %v4222
    %v4858 = vunpack.c.h.b16 %v4222
    %v4859 = vunpack.c.l.b16 %v4223
    %v4860 = vunpack.c.h.b16 %v4223
    %v4861 = vunpack.c.l.b16 %v4224
    %v4862 = vunpack.c.h.b16 %v4224
    %v4863 = vunpack.c.l.b16 %v4225
    %v4864 = vunpack.c.h.b16 %v4225
    %v4865 = vunpack.c.l.b16 %v4226
    %v4866 = vunpack.c.h.b16 %v4226
    %v4867 = vunpack.c.l.b16 %v4227
    %v4868 = vunpack.c.h.b16 %v4227
    %v4869 = vunpack.c.l.b16 %v4228
    %v4870 = vunpack.c.h.b16 %v4228
    %v4871 = vunpack.c.l.b16 %v4229
    %v4872 = vunpack.c.h.b16 %v4229
    %v4873 = vunpack.c.l.b16 %v4230
    %v4874 = vunpack.c.h.b16 %v4230
    %v4875 = vunpack.c.l.b16 %v4231
    %v4876 = vunpack.c.h.b16 %v4231
    %v4877 = vunpack.c.l.b16 %v4232
    %v4878 = vunpack.c.h.b16 %v4232
    %v4879 = vunpack.c.l.b16 %v4233
    %v4880 = vunpack.c.h.b16 %v4233
    %v4881 = vunpack.c.l.b16 %v4234
    %v4882 = vunpack.c.h.b16 %v4234
    %v4883 = vunpack.c.l.b16 %v4235
    %v4884 = vunpack.c.h.b16 %v4235
    %v4885 = vunpack.c.l.b16 %v4236
    %v4886 = vunpack.c.h.b16 %v4236
    %v4887 = vunpack.c.l.b16 %v4237
    %v4888 = vunpack.c.h.b16 %v4237
    %v4889 = vunpack.c.l.b16 %v4238
    %v4890 = vunpack.c.h.b16 %v4238
    %v4891 = vunpack.c.l.b16 %v4239
    %v4892 = vunpack.c.h.b16 %v4239
    %v4893 = vunpack.c.l.b16 %v4240
    %v4894 = vunpack.c.h.b16 %v4240
    %v4895 = vunpack.c.l.b16 %v4241
    %v4896 = vunpack.c.h.b16 %v4241
    %v4897 = vunpack.c.l.b16 %v4242
    %v4898 = vunpack.c.h.b16 %v4242
    %v4899 = vunpack.c.l.b16 %v4243
    %v4900 = vunpack.c.h.b16 %v4243
    %v4901 = vunpack.c.l.b16 %v4244
    %v4902 = vunpack.c.h.b16 %v4244
    %v4903 = vunpack.c.l.b16 %v4245
    %v4904 = vunpack.c.h.b16 %v4245
    %v4905 = vunpack.c.l.b16 %v4246
    %v4906 = vunpack.c.h.b16 %v4246
    %v4907 = vunpack.c.l.b16 %v4247
    %v4908 = vunpack.c.h.b16 %v4247
    %v4909 = vunpack.c.l.b16 %v4248
    %v4910 = vunpack.c.h.b16 %v4248
    %v4911 = vunpack.c.l.b16 %v4249
    %v4912 = vunpack.c.h.b16 %v4249
    %v4913 = vunpack.c.l.b16 %v4250
    %v4914 = vunpack.c.h.b16 %v4250
    %v4915 = vunpack.c.l.b16 %v4251
    %v4916 = vunpack.c.h.b16 %v4251
    %v4917 = vunpack.c.l.b16 %v4252
    %v4918 = vunpack.c.h.b16 %v4252
    %v4919 = vunpack.c.l.b16 %v4253
    %v4920 = vunpack.c.h.b16 %v4253
    %v4921 = vunpack.c.l.b16 %v4254
    %v4922 = vunpack.c.h.b16 %v4254
    %v4923 = vunpack.c.l.b16 %v4255
    %v4924 = vunpack.c.h.b16 %v4255
    %v4925 = vunpack.c.l.b16 %v4256
    %v4926 = vunpack.c.h.b16 %v4256
    %v4927 = vunpack.c.l.b16 %v4257
    %v4928 = vunpack.c.h.b16 %v4257
    %v4929 = vunpack.c.l.b16 %v4258
    %v4930 = vunpack.c.h.b16 %v4258
    %v4931 = vunpack.c.l.b16 %v4259
    %v4932 = vunpack.c.h.b16 %v4259
    %v4933 = vunpack.c.l.b16 %v4260
    %v4934 = vunpack.c.h.b16 %v4260
    %v4935 = vunpack.c.l.b16 %v4261
    %v4936 = vunpack.c.h.b16 %v4261
    %v4937 = vunpack.c.l.b16 %v4262
    %v4938 = vunpack.c.h.b16 %v4262
    %v4939 = vunpack.c.l.b16 %v4263
    %v4940 = vunpack.c.h.b16 %v4263
    %v4941 = vunpack.c.l.b16 %v4264
    %v4942 = vunpack.c.h.b16 %v4264
    %v4943 = vunpack.c.l.b16 %v4265
    %v4944 = vunpack.c.h.b16 %v4265
    %v4945 = vunpack.c.l.b16 %v4266
    %v4946 = vunpack.c.h.b16 %v4266
    %v4947 = vunpack.c.l.b16 %v4267
    %v4948 = vunpack.c.h.b16 %v4267
    %v4949 = vunpack.c.l.b16 %v4268
    %v4950 = vunpack.c.h.b16 %v4268
    %v4951 = vunpack.c.l.b16 %v4269
    %v4952 = vunpack.c.h.b16 %v4269
    %v4953 = vunpack.c.l.b16 %v4270
    %v4954 = vunpack.c.h.b16 %v4270
    %v4955 = vunpack.c.l.b16 %v4271
    %v4956 = vunpack.c.h.b16 %v4271
    %v4957 = vunpack.c.l.b16 %v4272
    %v4958 = vunpack.c.h.b16 %v4272
    %v4959 = vunpack.c.l.b16 %v4273
    %v4960 = vunpack.c.h.b16 %v4273
    %v4961 = vunpack.c.l.b16 %v4274
    %v4962 = vunpack.c.h.b16 %v4274
    %v4963 = vunpack.c.l.b16 %v4275
    %v4964 = vunpack.c.h.b16 %v4275
    %v4965 = vunpack.c.l.b16 %v4276
    %v4966 = vunpack.c.h.b16 %v4276
    %v4967 = vunpack.c.l.b16 %v4277
    %v4968 = vunpack.c.h.b16 %v4277
    %v4969 = vunpack.c.l.b16 %v4278
    %v4970 = vunpack.c.h.b16 %v4278
    %v4971 = vunpack.c.l.b16 %v4279
    %v4972 = vunpack.c.h.b16 %v4279
    %v4973 = vunpack.c.l.b16 %v4280
    %v4974 = vunpack.c.h.b16 %v4280
    %v4975 = vunpack.c.l.b16 %v4281
    %v4976 = vunpack.c.h.b16 %v4281
    %v4977 = vunpack.c.l.b16 %v4282
    %v4978 = vunpack.c.h.b16 %v4282
    %v4979 = vunpack.c.l.b16 %v4283
    %v4980 = vunpack.c.h.b16 %v4283
    %v4981 = vunpack.c.l.b16 %v4284
    %v4982 = vunpack.c.h.b16 %v4284
    %v4983 = vunpack.c.l.b16 %v4285
    %v4984 = vunpack.c.h.b16 %v4285
    %v4985 = vunpack.c.l.b16 %v4286
    %v4986 = vunpack.c.h.b16 %v4286
    %v4987 = vunpack.c.l.b16 %v4287
    %v4988 = vunpack.c.h.b16 %v4287
    %v4989 = vunpack.c.l.b16 %v4288
    %v4990 = vunpack.c.h.b16 %v4288
    %v4991 = vunpack.c.l.b16 %v4289
    %v4992 = vunpack.c.h.b16 %v4289
    %v4993 = vunpack.c.l.b16 %v4290
    %v4994 = vunpack.c.h.b16 %v4290
    %v4995 = vunpack.c.l.b16 %v4291
    %v4996 = vunpack.c.h.b16 %v4291
    %v4997 = vunpack.c.l.b16 %v4292
    %v4998 = vunpack.c.h.b16 %v4292
    %v4999 = vunpack.c.l.b16 %v4293
    %v5000 = vunpack.c.h.b16 %v4293
    %v5001 = vunpack.c.l.b16 %v4294
    %v5002 = vunpack.c.h.b16 %v4294
    %v5003 = vunpack.c.l.b16 %v4295
    %v5004 = vunpack.c.h.b16 %v4295
    %v5005 = vunpack.c.l.b16 %v4296
    %v5006 = vunpack.c.h.b16 %v4296
    %v5007 = vunpack.c.l.b16 %v4297
    %v5008 = vunpack.c.h.b16 %v4297
    %v5009 = vunpack.c.l.b16 %v4298
    %v5010 = vunpack.c.h.b16 %v4298
    %v5011 = vunpack.c.l.b16 %v4299
    %v5012 = vunpack.c.h.b16 %v4299
    %v5013 = vunpack.c.l.b16 %v4300
    %v5014 = vunpack.c.h.b16 %v4300
    %v5015 = vunpack.c.l.b16 %v4301
    %v5016 = vunpack.c.h.b16 %v4301
    %v5017 = vunpack.c.l.b16 %v4302
    %v5018 = vunpack.c.h.b16 %v4302
    %v5019 = vunpack.c.l.b16 %v4303
    %v5020 = vunpack.c.h.b16 %v4303
    %v5021 = vunpack.c.l.b16 %v4304
    %v5022 = vunpack.c.h.b16 %v4304
    %v5023 = vunpack.c.l.b16 %v4305
    %v5024 = vunpack.c.h.b16 %v4305
    %v5025 = vunpack.c.l.b16 %v4306
    %v5026 = vunpack.c.h.b16 %v4306
    %v5027 = vunpack.c.l.b16 %v4307
    %v5028 = vunpack.c.h.b16 %v4307
    %v5029 = vunpack.c.l.b16 %v4308
    %v5030 = vunpack.c.h.b16 %v4308
    %v5031 = vunpack.c.l.b16 %v4309
    %v5032 = vunpack.c.h.b16 %v4309
    %v5033 = vunpack.c.l.b16 %v4310
    %v5034 = vunpack.c.h.b16 %v4310
    %v5035 = vunpack.c.l.b16 %v4311
    %v5036 = vunpack.c.h.b16 %v4311
    %v5037 = vunpack.c.l.b16 %v4312
    %v5038 = vunpack.c.h.b16 %v4312
    %v5039 = vunpack.c.l.b16 %v4313
    %v5040 = vunpack.c.h.b16 %v4313
    %v5041 = vunpack.c.l.b16 %v4314
    %v5042 = vunpack.c.h.b16 %v4314
    %v5043 = vunpack.c.l.b16 %v4315
    %v5044 = vunpack.c.h.b16 %v4315
    %v5045 = vunpack.c.l.b16 %v4316
    %v5046 = vunpack.c.h.b16 %v4316
    %v5047 = vunpack.c.l.b16 %v4317
    %v5048 = vunpack.c.h.b16 %v4317
    %v5049 = vunpack.c.l.b16 %v4318
    %v5050 = vunpack.c.h.b16 %v4318
    %v5051 = vunpack.c.l.b16 %v4319
    %v5052 = vunpack.c.h.b16 %v4319
    %v5053 = vunpack.c.l.b16 %v4320
    %v5054 = vunpack.c.h.b16 %v4320
    %v5055 = vunpack.c.l.b16 %v4321
    %v5056 = vunpack.c.h.b16 %v4321
    %v5057 = vunpack.c.l.b16 %v4322
    %v5058 = vunpack.c.h.b16 %v4322
    %v5059 = vunpack.c.l.b16 %v4323
    %v5060 = vunpack.c.h.b16 %v4323
    %v5061 = vunpack.c.l.b16 %v4324
    %v5062 = vunpack.c.h.b16 %v4324
    %v5063 = vunpack.c.l.b16 %v4325
    %v5064 = vunpack.c.h.b16 %v4325
    %v5065 = vunpack.c.l.b16 %v4326
    %v5066 = vunpack.c.h.b16 %v4326
    %v5067 = vunpack.c.l.b16 %v4327
    %v5068 = vunpack.c.h.b16 %v4327
    %v5069 = vunpack.c.l.b16 %v4328
    %v5070 = vunpack.c.h.b16 %v4328
    %v5071 = vunpack.c.l.b16 %v4329
    %v5072 = vunpack.c.h.b16 %v4329
    %v5073 = vunpack.c.l.b16 %v4330
    %v5074 = vunpack.c.h.b16 %v4330
    %v5075 = vunpack.c.l.b16 %v4331
    %v5076 = vunpack.c.h.b16 %v4331
    %v5077 = vunpack.c.l.b16 %v4332
    %v5078 = vunpack.c.h.b16 %v4332
    %v5079 = vunpack.c.l.b16 %v4333
    %v5080 = vunpack.c.h.b16 %v4333
    %v5081 = vunpack.c.l.b16 %v4334
    %v5082 = vunpack.c.h.b16 %v4334
    %v5083 = vunpack.c.l.b16 %v4335
    %v5084 = vunpack.c.h.b16 %v4335
    %v5085 = vunpack.c.l.b16 %v4336
    %v5086 = vunpack.c.h.b16 %v4336
    %v5087 = vunpack.c.l.b16 %v4337
    %v5088 = vunpack.c.h.b16 %v4337
    %v5089 = vunpack.c.l.b16 %v4338
    %v5090 = vunpack.c.h.b16 %v4338
    %v5091 = vunpack.c.l.b16 %v4339
    %v5092 = vunpack.c.h.b16 %v4339
    %v5093 = vunpack.c.l.b16 %v4340
    %v5094 = vunpack.c.h.b16 %v4340
    %v5095 = vunpack.c.l.b16 %v4341
    %v5096 = vunpack.c.h.b16 %v4341
    %v5097 = vunpack.c.l.b16 %v4342
    %v5098 = vunpack.c.h.b16 %v4342
    %v5099 = vunpack.c.l.b16 %v4343
    %v5100 = vunpack.c.h.b16 %v4343
    %v5101 = vunpack.c.l.b16 %v4344
    %v5102 = vunpack.c.h.b16 %v4344
    %v5103 = vunpack.c.l.b16 %v4345
    %v5104 = vunpack.c.h.b16 %v4345
    %v5105 = vunpack.c.l.b16 %v4346
    %v5106 = vunpack.c.h.b16 %v4346
    %v5107 = vunpack.c.l.b16 %v4347
    %v5108 = vunpack.c.h.b16 %v4347
    %v5109 = vunpack.c.l.b16 %v4348
    %v5110 = vunpack.c.h.b16 %v4348
    %v5111 = vunpack.c.l.b16 %v4349
    %v5112 = vunpack.c.h.b16 %v4349
    %v5113 = vunpack.c.l.b16 %v4350
    %v5114 = vunpack.c.h.b16 %v4350
    %v5115 = vunpack.c.l.b16 %v4351
    %v5116 = vunpack.c.h.b16 %v4351
    %v5117 = vunpack.c.l.b16 %v4352
    %v5118 = vunpack.c.h.b16 %v4352
    %v5119 = vunpack.c.l.b16 %v4353
    %v5120 = vunpack.c.h.b16 %v4353
    %v5121 = vunpack.c.l.b16 %v4354
    %v5122 = vunpack.c.h.b16 %v4354
    %v5123 = vpack.c.b16 %v4615, %v4611
    %v5124 = vpack.c.b16 %v4616, %v4612
    %v5125 = vpack.c.b16 %v4617, %v4613
    %v5126 = vpack.c.b16 %v4618, %v4614
    %v5127 = vpack.c.b16 %v4623, %v4619
    %v5128 = vpack.c.b16 %v4624, %v4620
    %v5129 = vpack.c.b16 %v4625, %v4621
    %v5130 = vpack.c.b16 %v4626, %v4622
    %v5131 = vpack.c.b16 %v4631, %v4627
    %v5132 = vpack.c.b16 %v4632, %v4628
    %v5133 = vpack.c.b16 %v4633, %v4629
    %v5134 = vpack.c.b16 %v4634, %v4630
    %v5135 = vpack.c.b16 %v4639, %v4635
    %v5136 = vpack.c.b16 %v4640, %v4636
    %v5137 = vpack.c.b16 %v4641, %v4637
    %v5138 = vpack.c.b16 %v4642, %v4638
    %v5139 = vpack.c.b16 %v4647, %v4643
    %v5140 = vpack.c.b16 %v4648, %v4644
    %v5141 = vpack.c.b16 %v4649, %v4645
    %v5142 = vpack.c.b16 %v4650, %v4646
    %v5143 = vpack.c.b16 %v4655, %v4651
    %v5144 = vpack.c.b16 %v4656, %v4652
    %v5145 = vpack.c.b16 %v4657, %v4653
    %v5146 = vpack.c.b16 %v4658, %v4654
    %v5147 = vpack.c.b16 %v4663, %v4659
    %v5148 = vpack.c.b16 %v4664, %v4660
    %v5149 = vpack.c.b16 %v4665, %v4661
    %v5150 = vpack.c.b16 %v4666, %v4662
    %v5151 = vpack.c.b16 %v4671, %v4667
    %v5152 = vpack.c.b16 %v4672, %v4668
    %v5153 = vpack.c.b16 %v4673, %v4669
    %v5154 = vpack.c.b16 %v4674, %v4670
    %v5155 = vpack.c.b16 %v4679, %v4675
    %v5156 = vpack.c.b16 %v4680, %v4676
    %v5157 = vpack.c.b16 %v4681, %v4677
    %v5158 = vpack.c.b16 %v4682, %v4678
    %v5159 = vpack.c.b16 %v4687, %v4683
    %v5160 = vpack.c.b16 %v4688, %v4684
    %v5161 = vpack.c.b16 %v4689, %v4685
    %v5162 = vpack.c.b16 %v4690, %v4686
    %v5163 = vpack.c.b16 %v4695, %v4691
    %v5164 = vpack.c.b16 %v4696, %v4692
    %v5165 = vpack.c.b16 %v4697, %v4693
    %v5166 = vpack.c.b16 %v4698, %v4694
    %v5167 = vpack.c.b16 %v4703, %v4699
    %v5168 = vpack.c.b16 %v4704, %v4700
    %v5169 = vpack.c.b16 %v4705, %v4701
    %v5170 = vpack.c.b16 %v4706, %v4702
    %v5171 = vpack.c.b16 %v4711, %v4707
    %v5172 = vpack.c.b16 %v4712, %v4708
    %v5173 = vpack.c.b16 %v4713, %v4709
    %v5174 = vpack.c.b16 %v4714, %v4710
    %v5175 = vpack.c.b16 %v4719, %v4715
    %v5176 = vpack.c.b16 %v4720, %v4716
    %v5177 = vpack.c.b16 %v4721, %v4717
    %v5178 = vpack.c.b16 %v4722, %v4718
    %v5179 = vpack.c.b16 %v4727, %v4723
    %v5180 = vpack.c.b16 %v4728, %v4724
    %v5181 = vpack.c.b16 %v4729, %v4725
    %v5182 = vpack.c.b16 %v4730, %v4726
    %v5183 = vpack.c.b16 %v4735, %v4731
    %v5184 = vpack.c.b16 %v4736, %v4732
    %v5185 = vpack.c.b16 %v4737, %v4733
    %v5186 = vpack.c.b16 %v4738, %v4734
    %v5187 = vpack.c.b16 %v4743, %v4739
    %v5188 = vpack.c.b16 %v4744, %v4740
    %v5189 = vpack.c.b16 %v4745, %v4741
    %v5190 = vpack.c.b16 %v4746, %v4742
    %v5191 = vpack.c.b16 %v4751, %v4747
    %v5192 = vpack.c.b16 %v4752, %v4748
    %v5193 = vpack.c.b16 %v4753, %v4749
    %v5194 = vpack.c.b16 %v4754, %v4750
    %v5195 = vpack.c.b16 %v4759, %v4755
    %v5196 = vpack.c.b16 %v4760, %v4756
    %v5197 = vpack.c.b16 %v4761, %v4757
    %v5198 = vpack.c.b16 %v4762, %v4758
    %v5199 = vpack.c.b16 %v4767, %v4763
    %v5200 = vpack.c.b16 %v4768, %v4764
    %v5201 = vpack.c.b16 %v4769, %v4765
    %v5202 = vpack.c.b16 %v4770, %v4766
    %v5203 = vpack.c.b16 %v4775, %v4771
    %v5204 = vpack.c.b16 %v4776, %v4772
    %v5205 = vpack.c.b16 %v4777, %v4773
    %v5206 = vpack.c.b16 %v4778, %v4774
    %v5207 = vpack.c.b16 %v4783, %v4779
    %v5208 = vpack.c.b16 %v4784, %v4780
    %v5209 = vpack.c.b16 %v4785, %v4781
    %v5210 = vpack.c.b16 %v4786, %v4782
    %v5211 = vpack.c.b16 %v4791, %v4787
    %v5212 = vpack.c.b16 %v4792, %v4788
    %v5213 = vpack.c.b16 %v4793, %v4789
    %v5214 = vpack.c.b16 %v4794, %v4790
    %v5215 = vpack.c.b16 %v4799, %v4795
    %v5216 = vpack.c.b16 %v4800, %v4796
    %v5217 = vpack.c.b16 %v4801, %v4797
    %v5218 = vpack.c.b16 %v4802, %v4798
    %v5219 = vpack.c.b16 %v4807, %v4803
    %v5220 = vpack.c.b16 %v4808, %v4804
    %v5221 = vpack.c.b16 %v4809, %v4805
    %v5222 = vpack.c.b16 %v4810, %v4806
    %v5223 = vpack.c.b16 %v4815, %v4811
    %v5224 = vpack.c.b16 %v4816, %v4812
    %v5225 = vpack.c.b16 %v4817, %v4813
    %v5226 = vpack.c.b16 %v4818, %v4814
    %v5227 = vpack.c.b16 %v4823, %v4819
    %v5228 = vpack.c.b16 %v4824, %v4820
    %v5229 = vpack.c.b16 %v4825, %v4821
    %v5230 = vpack.c.b16 %v4826, %v4822
    %v5231 = vpack.c.b16 %v4831, %v4827
    %v5232 = vpack.c.b16 %v4832, %v4828
    %v5233 = vpack.c.b16 %v4833, %v4829
    %v5234 = vpack.c.b16 %v4834, %v4830
    %v5235 = vpack.c.b16 %v4839, %v4835
    %v5236 = vpack.c.b16 %v4840, %v4836
    %v5237 = vpack.c.b16 %v4841, %v4837
    %v5238 = vpack.c.b16 %v4842, %v4838
    %v5239 = vpack.c.b16 %v4847, %v4843
    %v5240 = vpack.c.b16 %v4848, %v4844
    %v5241 = vpack.c.b16 %v4849, %v4845
    %v5242 = vpack.c.b16 %v4850, %v4846
    %v5243 = vpack.c.b16 %v4855, %v4851
    %v5244 = vpack.c.b16 %v4856, %v4852
    %v5245 = vpack.c.b16 %v4857, %v4853
    %v5246 = vpack.c.b16 %v4858, %v4854
    %v5247 = vpack.c.b16 %v4863, %v4859
    %v5248 = vpack.c.b16 %v4864, %v4860
    %v5249 = vpack.c.b16 %v4865, %v4861
    %v5250 = vpack.c.b16 %v4866, %v4862
    %v5251 = vpack.c.b16 %v4871, %v4867
    %v5252 = vpack.c.b16 %v4872, %v4868
    %v5253 = vpack.c.b16 %v4873, %v4869
    %v5254 = vpack.c.b16 %v4874, %v4870
    %v5255 = vpack.c.b16 %v4879, %v4875
    %v5256 = vpack.c.b16 %v4880, %v4876
    %v5257 = vpack.c.b16 %v4881, %v4877
    %v5258 = vpack.c.b16 %v4882, %v4878
    %v5259 = vpack.c.b16 %v4887, %v4883
    %v5260 = vpack.c.b16 %v4888, %v4884
    %v5261 = vpack.c.b16 %v4889, %v4885
    %v5262 = vpack.c.b16 %v4890, %v4886
    %v5263 = vpack.c.b16 %v4895, %v4891
    %v5264 = vpack.c.b16 %v4896, %v4892
    %v5265 = vpack.c.b16 %v4897, %v4893
    %v5266 = vpack.c.b16 %v4898, %v4894
    %v5267 = vpack.c.b16 %v4903, %v4899
    %v5268 = vpack.c.b16 %v4904, %v4900
    %v5269 = vpack.c.b16 %v4905, %v4901
    %v5270 = vpack.c.b16 %v4906, %v4902
    %v5271 = vpack.c.b16 %v4911, %v4907
    %v5272 = vpack.c.b16 %v4912, %v4908
    %v5273 = vpack.c.b16 %v4913, %v4909
    %v5274 = vpack.c.b16 %v4914, %v4910
    %v5275 = vpack.c.b16 %v4919, %v4915
    %v5276 = vpack.c.b16 %v4920, %v4916
    %v5277 = vpack.c.b16 %v4921, %v4917
    %v5278 = vpack.c.b16 %v4922, %v4918
    %v5279 = vpack.c.b16 %v4927, %v4923
    %v5280 = vpack.c.b16 %v4928, %v4924
    %v5281 = vpack.c.b16 %v4929, %v4925
    %v5282 = vpack.c.b16 %v4930, %v4926
    %v5283 = vpack.c.b16 %v4935, %v4931
    %v5284 = vpack.c.b16 %v4936, %v4932
    %v5285 = vpack.c.b16 %v4937, %v4933
    %v5286 = vpack.c.b16 %v4938, %v4934
    %v5287 = vpack.c.b16 %v4943, %v4939
    %v5288 = vpack.c.b16 %v4944, %v4940
    %v5289 = vpack.c.b16 %v4945, %v4941
    %v5290 = vpack.c.b16 %v4946, %v4942
    %v5291 = vpack.c.b16 %v4951, %v4947
    %v5292 = vpack.c.b16 %v4952, %v4948
    %v5293 = vpack.c.b16 %v4953, %v4949
    %v5294 = vpack.c.b16 %v4954, %v4950
    %v5295 = vpack.c.b16 %v4959, %v4955
    %v5296 = vpack.c.b16 %v4960, %v4956
    %v5297 = vpack.c.b16 %v4961, %v4957
    %v5298 = vpack.c.b16 %v4962, %v4958
    %v5299 = vpack.c.b16 %v4967, %v4963
    %v5300 = vpack.c.b16 %v4968, %v4964
    %v5301 = vpack.c.b16 %v4969, %v4965
    %v5302 = vpack.c.b16 %v4970, %v4966
    %v5303 = vpack.c.b16 %v4975, %v4971
    %v5304 = vpack.c.b16 %v4976, %v4972
    %v5305 = vpack.c.b16 %v4977, %v4973
    %v5306 = vpack.c.b16 %v4978, %v4974
    %v5307 = vpack.c.b16 %v4983, %v4979
    %v5308 = vpack.c.b16 %v4984, %v4980
    %v5309 = vpack.c.b16 %v4985, %v4981
    %v5310 = vpack.c.b16 %v4986, %v4982
    %v5311 = vpack.c.b16 %v4991, %v4987
    %v5312 = vpack.c.b16 %v4992, %v4988
    %v5313 = vpack.c.b16 %v4993, %v4989
    %v5314 = vpack.c.b16 %v4994, %v4990
    %v5315 = vpack.c.b16 %v4999, %v4995
    %v5316 = vpack.c.b16 %v5000, %v4996
    %v5317 = vpack.c.b16 %v5001, %v4997
    %v5318 = vpack.c.b16 %v5002, %v4998
    %v5319 = vpack.c.b16 %v5007, %v5003
    %v5320 = vpack.c.b16 %v5008, %v5004
    %v5321 = vpack.c.b16 %v5009, %v5005
    %v5322 = vpack.c.b16 %v5010, %v5006
    %v5323 = vpack.c.b16 %v5015, %v5011
    %v5324 = vpack.c.b16 %v5016, %v5012
    %v5325 = vpack.c.b16 %v5017, %v5013
    %v5326 = vpack.c.b16 %v5018, %v5014
    %v5327 = vpack.c.b16 %v5023, %v5019
    %v5328 = vpack.c.b16 %v5024, %v5020
    %v5329 = vpack.c.b16 %v5025, %v5021
    %v5330 = vpack.c.b16 %v5026, %v5022
    %v5331 = vpack.c.b16 %v5031, %v5027
    %v5332 = vpack.c.b16 %v5032, %v5028
    %v5333 = vpack.c.b16 %v5033, %v5029
    %v5334 = vpack.c.b16 %v5034, %v5030
    %v5335 = vpack.c.b16 %v5039, %v5035
    %v5336 = vpack.c.b16 %v5040, %v5036
    %v5337 = vpack.c.b16 %v5041, %v5037
    %v5338 = vpack.c.b16 %v5042, %v5038
    %v5339 = vpack.c.b16 %v5047, %v5043
    %v5340 = vpack.c.b16 %v5048, %v5044
    %v5341 = vpack.c.b16 %v5049, %v5045
    %v5342 = vpack.c.b16 %v5050, %v5046
    %v5343 = vpack.c.b16 %v5055, %v5051
    %v5344 = vpack.c.b16 %v5056, %v5052
    %v5345 = vpack.c.b16 %v5057, %v5053
    %v5346 = vpack.c.b16 %v5058, %v5054
    %v5347 = vpack.c.b16 %v5063, %v5059
    %v5348 = vpack.c.b16 %v5064, %v5060
    %v5349 = vpack.c.b16 %v5065, %v5061
    %v5350 = vpack.c.b16 %v5066, %v5062
    %v5351 = vpack.c.b16 %v5071, %v5067
    %v5352 = vpack.c.b16 %v5072, %v5068
    %v5353 = vpack.c.b16 %v5073, %v5069
    %v5354 = vpack.c.b16 %v5074, %v5070
    %v5355 = vpack.c.b16 %v5079, %v5075
    %v5356 = vpack.c.b16 %v5080, %v5076
    %v5357 = vpack.c.b16 %v5081, %v5077
    %v5358 = vpack.c.b16 %v5082, %v5078
    %v5359 = vpack.c.b16 %v5087, %v5083
    %v5360 = vpack.c.b16 %v5088, %v5084
    %v5361 = vpack.c.b16 %v5089, %v5085
    %v5362 = vpack.c.b16 %v5090, %v5086
    %v5363 = vpack.c.b16 %v5095, %v5091
    %v5364 = vpack.c.b16 %v5096, %v5092
    %v5365 = vpack.c.b16 %v5097, %v5093
    %v5366 = vpack.c.b16 %v5098, %v5094
    %v5367 = vpack.c.b16 %v5103, %v5099
    %v5368 = vpack.c.b16 %v5104, %v5100
    %v5369 = vpack.c.b16 %v5105, %v5101
    %v5370 = vpack.c.b16 %v5106, %v5102
    %v5371 = vpack.c.b16 %v5111, %v5107
    %v5372 = vpack.c.b16 %v5112, %v5108
    %v5373 = vpack.c.b16 %v5113, %v5109
    %v5374 = vpack.c.b16 %v5114, %v5110
    %v5375 = vpack.c.b16 %v5119, %v5115
    %v5376 = vpack.c.b16 %v5120, %v5116
    %v5377 = vpack.c.b16 %v5121, %v5117
    %v5378 = vpack.c.b16 %v5122, %v5118
    %5635 = vmatpush.bf16.msra.mxu0 %v5151
    %5636 = vmatpush.bf16.msra.mxu0 %v5147
    %5637 = vmatpush.bf16.msra.mxu0 %v5143
    %5638 = vmatpush.bf16.msra.mxu0 %v5139
    %5639 = vmatpush.bf16.msra.mxu0 %v5135
    %5640 = vmatpush.bf16.msra.mxu0 %v5131
    %5641 = vmatpush.bf16.msra.mxu0 %v5127
    %5642 = vmatpush.bf16.msra.mxu0 %v5123
    %5643 = vmatmul.bf16.gmra.mxu0 %v4091
    %v5644 = vpop.f32.mrf.mxu0
    %v5645 = vadd.f32 0.0, %v5644
    %v5646 = vpop.f32.mrf.mxu0
    %5647 = vdwg.mxu0
    %5648 = vmatpush.bf16.msra.mxu0 %v5183
    %5649 = vmatpush.bf16.msra.mxu0 %v5179
    %5650 = vmatpush.bf16.msra.mxu0 %v5175
    %5651 = vmatpush.bf16.msra.mxu0 %v5171
    %5652 = vmatpush.bf16.msra.mxu0 %v5167
    %5653 = vmatpush.bf16.msra.mxu0 %v5163
    %5654 = vmatpush.bf16.msra.mxu0 %v5159
    %5655 = vmatpush.bf16.msra.mxu0 %v5155
    %5656 = vmatmul.bf16.gmra.mxu0 %v4092
    %v5657 = vpop.f32.mrf.mxu0
    %v5658 = vadd.f32 %v5645, %v5657
    %v5659 = vpop.f32.mrf.mxu0
    %5660 = vdwg.mxu0
    %5661 = vmatpush.bf16.msra.mxu0 %v5215
    %5662 = vmatpush.bf16.msra.mxu0 %v5211
    %5663 = vmatpush.bf16.msra.mxu0 %v5207
    %5664 = vmatpush.bf16.msra.mxu0 %v5203
    %5665 = vmatpush.bf16.msra.mxu0 %v5199
    %5666 = vmatpush.bf16.msra.mxu0 %v5195
    %5667 = vmatpush.bf16.msra.mxu0 %v5191
    %5668 = vmatpush.bf16.msra.mxu0 %v5187
    %5669 = vmatmul.bf16.gmra.mxu0 %v4093
    %v5670 = vpop.f32.mrf.mxu0
    %v5671 = vadd.f32 %v5658, %v5670
    %v5672 = vpop.f32.mrf.mxu0
    %5673 = vdwg.mxu0
    %5674 = vmatpush.bf16.msra.mxu0 %v5247
    %5675 = vmatpush.bf16.msra.mxu0 %v5243
    %5676 = vmatpush.bf16.msra.mxu0 %v5239
    %5677 = vmatpush.bf16.msra.mxu0 %v5235
    %5678 = vmatpush.bf16.msra.mxu0 %v5231
    %5679 = vmatpush.bf16.msra.mxu0 %v5227
    %5680 = vmatpush.bf16.msra.mxu0 %v5223
    %5681 = vmatpush.bf16.msra.mxu0 %v5219
    %5682 = vmatmul.bf16.gmra.mxu0 %v4094
    %v5683 = vpop.f32.mrf.mxu0
    %v5684 = vadd.f32 %v5671, %v5683
    %v5685 = vpop.f32.mrf.mxu0
    %5686 = vdwg.mxu0
    %5687 = vmatpush.bf16.msra.mxu0 %v5279
    %5688 = vmatpush.bf16.msra.mxu0 %v5275
    %5689 = vmatpush.bf16.msra.mxu0 %v5271
    %5690 = vmatpush.bf16.msra.mxu0 %v5267
    %5691 = vmatpush.bf16.msra.mxu0 %v5263
    %5692 = vmatpush.bf16.msra.mxu0 %v5259
    %5693 = vmatpush.bf16.msra.mxu0 %v5255
    %5694 = vmatpush.bf16.msra.mxu0 %v5251
    %5695 = vmatmul.bf16.gmra.mxu0 %v4095
    %v5696 = vpop.f32.mrf.mxu0
    %v5697 = vadd.f32 %v5684, %v5696
    %v5698 = vpop.f32.mrf.mxu0
    %5699 = vdwg.mxu0
    %5700 = vmatpush.bf16.msra.mxu0 %v5311
    %5701 = vmatpush.bf16.msra.mxu0 %v5307
    %5702 = vmatpush.bf16.msra.mxu0 %v5303
    %5703 = vmatpush.bf16.msra.mxu0 %v5299
    %5704 = vmatpush.bf16.msra.mxu0 %v5295
    %5705 = vmatpush.bf16.msra.mxu0 %v5291
    %5706 = vmatpush.bf16.msra.mxu0 %v5287
    %5707 = vmatpush.bf16.msra.mxu0 %v5283
    %5708 = vmatmul.bf16.gmra.mxu0 %v4096
    %v5709 = vpop.f32.mrf.mxu0
    %v5710 = vadd.f32 %v5697, %v5709
    %v5711 = vpop.f32.mrf.mxu0
    %5712 = vdwg.mxu0
    %5713 = vmatpush.bf16.msra.mxu0 %v5343
    %5714 = vmatpush.bf16.msra.mxu0 %v5339
    %5715 = vmatpush.bf16.msra.mxu0 %v5335
    %5716 = vmatpush.bf16.msra.mxu0 %v5331
    %5717 = vmatpush.bf16.msra.mxu0 %v5327
    %5718 = vmatpush.bf16.msra.mxu0 %v5323
    %5719 = vmatpush.bf16.msra.mxu0 %v5319
    %5720 = vmatpush.bf16.msra.mxu0 %v5315
    %5721 = vmatmul.bf16.gmra.mxu0 %v4097
    %v5722 = vpop.f32.mrf.mxu0
    %v5723 = vadd.f32 %v5710, %v5722
    %v5724 = vpop.f32.mrf.mxu0
    %5725 = vdwg.mxu0
    %5726 = vmatpush.bf16.msra.mxu0 %v5375
    %5727 = vmatpush.bf16.msra.mxu0 %v5371
    %5728 = vmatpush.bf16.msra.mxu0 %v5367
    %5729 = vmatpush.bf16.msra.mxu0 %v5363
    %5730 = vmatpush.bf16.msra.mxu0 %v5359
    %5731 = vmatpush.bf16.msra.mxu0 %v5355
    %5732 = vmatpush.bf16.msra.mxu0 %v5351
    %5733 = vmatpush.bf16.msra.mxu0 %v5347
    %5734 = vmatmul.bf16.gmra.mxu0 %v4098
    %v5735 = vpop.f32.mrf.mxu0
    %v5736 = vadd.f32 %v5723, %v5735
    %v5737 = vpop.f32.mrf.mxu0
    %5738 = vdwg.mxu0
    %5739 = vmatpush.bf16.msra.mxu0 %v5152
    %5740 = vmatpush.bf16.msra.mxu0 %v5148
    %5741 = vmatpush.bf16.msra.mxu0 %v5144
    %5742 = vmatpush.bf16.msra.mxu0 %v5140
    %5743 = vmatpush.bf16.msra.mxu0 %v5136
    %5744 = vmatpush.bf16.msra.mxu0 %v5132
    %5745 = vmatpush.bf16.msra.mxu0 %v5128
    %5746 = vmatpush.bf16.msra.mxu0 %v5124
    %5747 = vmatmul.bf16.gmra.mxu0 %v4091
    %v5748 = vpop.f32.mrf.mxu0
    %v5749 = vadd.f32 0.0, %v5748
    %v5750 = vpop.f32.mrf.mxu0
    %5751 = vdwg.mxu0
    %5752 = vmatpush.bf16.msra.mxu0 %v5184
    %5753 = vmatpush.bf16.msra.mxu0 %v5180
    %5754 = vmatpush.bf16.msra.mxu0 %v5176
    %5755 = vmatpush.bf16.msra.mxu0 %v5172
    %5756 = vmatpush.bf16.msra.mxu0 %v5168
    %5757 = vmatpush.bf16.msra.mxu0 %v5164
    %5758 = vmatpush.bf16.msra.mxu0 %v5160
    %5759 = vmatpush.bf16.msra.mxu0 %v5156
    %5760 = vmatmul.bf16.gmra.mxu0 %v4092
    %v5761 = vpop.f32.mrf.mxu0
    %v5762 = vadd.f32 %v5749, %v5761
    %v5763 = vpop.f32.mrf.mxu0
    %5764 = vdwg.mxu0
    %5765 = vmatpush.bf16.msra.mxu0 %v5216
    %5766 = vmatpush.bf16.msra.mxu0 %v5212
    %5767 = vmatpush.bf16.msra.mxu0 %v5208
    %5768 = vmatpush.bf16.msra.mxu0 %v5204
    %5769 = vmatpush.bf16.msra.mxu0 %v5200
    %5770 = vmatpush.bf16.msra.mxu0 %v5196
    %5771 = vmatpush.bf16.msra.mxu0 %v5192
    %5772 = vmatpush.bf16.msra.mxu0 %v5188
    %5773 = vmatmul.bf16.gmra.mxu0 %v4093
    %v5774 = vpop.f32.mrf.mxu0
    %v5775 = vadd.f32 %v5762, %v5774
    %v5776 = vpop.f32.mrf.mxu0
    %5777 = vdwg.mxu0
    %5778 = vmatpush.bf16.msra.mxu0 %v5248
    %5779 = vmatpush.bf16.msra.mxu0 %v5244
    %5780 = vmatpush.bf16.msra.mxu0 %v5240
    %5781 = vmatpush.bf16.msra.mxu0 %v5236
    %5782 = vmatpush.bf16.msra.mxu0 %v5232
    %5783 = vmatpush.bf16.msra.mxu0 %v5228
    %5784 = vmatpush.bf16.msra.mxu0 %v5224
    %5785 = vmatpush.bf16.msra.mxu0 %v5220
    %5786 = vmatmul.bf16.gmra.mxu0 %v4094
    %v5787 = vpop.f32.mrf.mxu0
    %v5788 = vadd.f32 %v5775, %v5787
    %v5789 = vpop.f32.mrf.mxu0
    %5790 = vdwg.mxu0
    %5791 = vmatpush.bf16.msra.mxu0 %v5280
    %5792 = vmatpush.bf16.msra.mxu0 %v5276
    %5793 = vmatpush.bf16.msra.mxu0 %v5272
    %5794 = vmatpush.bf16.msra.mxu0 %v5268
    %5795 = vmatpush.bf16.msra.mxu0 %v5264
    %5796 = vmatpush.bf16.msra.mxu0 %v5260
    %5797 = vmatpush.bf16.msra.mxu0 %v5256
    %5798 = vmatpush.bf16.msra.mxu0 %v5252
    %5799 = vmatmul.bf16.gmra.mxu0 %v4095
    %v5800 = vpop.f32.mrf.mxu0
    %v5801 = vadd.f32 %v5788, %v5800
    %v5802 = vpop.f32.mrf.mxu0
    %5803 = vdwg.mxu0
    %5804 = vmatpush.bf16.msra.mxu0 %v5312
    %5805 = vmatpush.bf16.msra.mxu0 %v5308
    %5806 = vmatpush.bf16.msra.mxu0 %v5304
    %5807 = vmatpush.bf16.msra.mxu0 %v5300
    %5808 = vmatpush.bf16.msra.mxu0 %v5296
    %5809 = vmatpush.bf16.msra.mxu0 %v5292
    %5810 = vmatpush.bf16.msra.mxu0 %v5288
    %5811 = vmatpush.bf16.msra.mxu0 %v5284
    %5812 = vmatmul.bf16.gmra.mxu0 %v4096
    %v5813 = vpop.f32.mrf.mxu0
    %v5814 = vadd.f32 %v5801, %v5813
    %v5815 = vpop.f32.mrf.mxu0
    %5816 = vdwg.mxu0
    %5817 = vmatpush.bf16.msra.mxu0 %v5344
    %5818 = vmatpush.bf16.msra.mxu0 %v5340
    %5819 = vmatpush.bf16.msra.mxu0 %v5336
    %5820 = vmatpush.bf16.msra.mxu0 %v5332
    %5821 = vmatpush.bf16.msra.mxu0 %v5328
    %5822 = vmatpush.bf16.msra.mxu0 %v5324
    %5823 = vmatpush.bf16.msra.mxu0 %v5320
    %5824 = vmatpush.bf16.msra.mxu0 %v5316
    %5825 = vmatmul.bf16.gmra.mxu0 %v4097
    %v5826 = vpop.f32.mrf.mxu0
    %v5827 = vadd.f32 %v5814, %v5826
    %v5828 = vpop.f32.mrf.mxu0
    %5829 = vdwg.mxu0
    %5830 = vmatpush.bf16.msra.mxu0 %v5376
    %5831 = vmatpush.bf16.msra.mxu0 %v5372
    %5832 = vmatpush.bf16.msra.mxu0 %v5368
    %5833 = vmatpush.bf16.msra.mxu0 %v5364
    %5834 = vmatpush.bf16.msra.mxu0 %v5360
    %5835 = vmatpush.bf16.msra.mxu0 %v5356
    %5836 = vmatpush.bf16.msra.mxu0 %v5352
    %5837 = vmatpush.bf16.msra.mxu0 %v5348
    %5838 = vmatmul.bf16.gmra.mxu0 %v4098
    %v5839 = vpop.f32.mrf.mxu0
    %v5840 = vadd.f32 %v5827, %v5839
    %v5841 = vpop.f32.mrf.mxu0
    %5842 = vdwg.mxu0
    %5843 = vmatpush.bf16.msra.mxu0 %v5153
    %5844 = vmatpush.bf16.msra.mxu0 %v5149
    %5845 = vmatpush.bf16.msra.mxu0 %v5145
    %5846 = vmatpush.bf16.msra.mxu0 %v5141
    %5847 = vmatpush.bf16.msra.mxu0 %v5137
    %5848 = vmatpush.bf16.msra.mxu0 %v5133
    %5849 = vmatpush.bf16.msra.mxu0 %v5129
    %5850 = vmatpush.bf16.msra.mxu0 %v5125
    %5851 = vmatmul.bf16.gmra.mxu0 %v4091
    %v5852 = vpop.f32.mrf.mxu0
    %v5853 = vadd.f32 0.0, %v5852
    %v5854 = vpop.f32.mrf.mxu0
    %5855 = vdwg.mxu0
    %5856 = vmatpush.bf16.msra.mxu0 %v5185
    %5857 = vmatpush.bf16.msra.mxu0 %v5181
    %5858 = vmatpush.bf16.msra.mxu0 %v5177
    %5859 = vmatpush.bf16.msra.mxu0 %v5173
    %5860 = vmatpush.bf16.msra.mxu0 %v5169
    %5861 = vmatpush.bf16.msra.mxu0 %v5165
    %5862 = vmatpush.bf16.msra.mxu0 %v5161
    %5863 = vmatpush.bf16.msra.mxu0 %v5157
    %5864 = vmatmul.bf16.gmra.mxu0 %v4092
    %v5865 = vpop.f32.mrf.mxu0
    %v5866 = vadd.f32 %v5853, %v5865
    %v5867 = vpop.f32.mrf.mxu0
    %5868 = vdwg.mxu0
    %5869 = vmatpush.bf16.msra.mxu0 %v5217
    %5870 = vmatpush.bf16.msra.mxu0 %v5213
    %5871 = vmatpush.bf16.msra.mxu0 %v5209
    %5872 = vmatpush.bf16.msra.mxu0 %v5205
    %5873 = vmatpush.bf16.msra.mxu0 %v5201
    %5874 = vmatpush.bf16.msra.mxu0 %v5197
    %5875 = vmatpush.bf16.msra.mxu0 %v5193
    %5876 = vmatpush.bf16.msra.mxu0 %v5189
    %5877 = vmatmul.bf16.gmra.mxu0 %v4093
    %v5878 = vpop.f32.mrf.mxu0
    %v5879 = vadd.f32 %v5866, %v5878
    %v5880 = vpop.f32.mrf.mxu0
    %5881 = vdwg.mxu0
    %5882 = vmatpush.bf16.msra.mxu0 %v5249
    %5883 = vmatpush.bf16.msra.mxu0 %v5245
    %5884 = vmatpush.bf16.msra.mxu0 %v5241
    %5885 = vmatpush.bf16.msra.mxu0 %v5237
    %5886 = vmatpush.bf16.msra.mxu0 %v5233
    %5887 = vmatpush.bf16.msra.mxu0 %v5229
    %5888 = vmatpush.bf16.msra.mxu0 %v5225
    %5889 = vmatpush.bf16.msra.mxu0 %v5221
    %5890 = vmatmul.bf16.gmra.mxu0 %v4094
    %v5891 = vpop.f32.mrf.mxu0
    %v5892 = vadd.f32 %v5879, %v5891
    %v5893 = vpop.f32.mrf.mxu0
    %5894 = vdwg.mxu0
    %5895 = vmatpush.bf16.msra.mxu0 %v5281
    %5896 = vmatpush.bf16.msra.mxu0 %v5277
    %5897 = vmatpush.bf16.msra.mxu0 %v5273
    %5898 = vmatpush.bf16.msra.mxu0 %v5269
    %5899 = vmatpush.bf16.msra.mxu0 %v5265
    %5900 = vmatpush.bf16.msra.mxu0 %v5261
    %5901 = vmatpush.bf16.msra.mxu0 %v5257
    %5902 = vmatpush.bf16.msra.mxu0 %v5253
    %5903 = vmatmul.bf16.gmra.mxu0 %v4095
    %v5904 = vpop.f32.mrf.mxu0
    %v5905 = vadd.f32 %v5892, %v5904
    %v5906 = vpop.f32.mrf.mxu0
    %5907 = vdwg.mxu0
    %5908 = vmatpush.bf16.msra.mxu0 %v5313
    %5909 = vmatpush.bf16.msra.mxu0 %v5309
    %5910 = vmatpush.bf16.msra.mxu0 %v5305
    %5911 = vmatpush.bf16.msra.mxu0 %v5301
    %5912 = vmatpush.bf16.msra.mxu0 %v5297
    %5913 = vmatpush.bf16.msra.mxu0 %v5293
    %5914 = vmatpush.bf16.msra.mxu0 %v5289
    %5915 = vmatpush.bf16.msra.mxu0 %v5285
    %5916 = vmatmul.bf16.gmra.mxu0 %v4096
    %v5917 = vpop.f32.mrf.mxu0
    %v5918 = vadd.f32 %v5905, %v5917
    %v5919 = vpop.f32.mrf.mxu0
    %5920 = vdwg.mxu0
    %5921 = vmatpush.bf16.msra.mxu0 %v5345
    %5922 = vmatpush.bf16.msra.mxu0 %v5341
    %5923 = vmatpush.bf16.msra.mxu0 %v5337
    %5924 = vmatpush.bf16.msra.mxu0 %v5333
    %5925 = vmatpush.bf16.msra.mxu0 %v5329
    %5926 = vmatpush.bf16.msra.mxu0 %v5325
    %5927 = vmatpush.bf16.msra.mxu0 %v5321
    %5928 = vmatpush.bf16.msra.mxu0 %v5317
    %5929 = vmatmul.bf16.gmra.mxu0 %v4097
    %v5930 = vpop.f32.mrf.mxu0
    %v5931 = vadd.f32 %v5918, %v5930
    %v5932 = vpop.f32.mrf.mxu0
    %5933 = vdwg.mxu0
    %5934 = vmatpush.bf16.msra.mxu0 %v5377
    %5935 = vmatpush.bf16.msra.mxu0 %v5373
    %5936 = vmatpush.bf16.msra.mxu0 %v5369
    %5937 = vmatpush.bf16.msra.mxu0 %v5365
    %5938 = vmatpush.bf16.msra.mxu0 %v5361
    %5939 = vmatpush.bf16.msra.mxu0 %v5357
    %5940 = vmatpush.bf16.msra.mxu0 %v5353
    %5941 = vmatpush.bf16.msra.mxu0 %v5349
    %5942 = vmatmul.bf16.gmra.mxu0 %v4098
    %v5943 = vpop.f32.mrf.mxu0
    %v5944 = vadd.f32 %v5931, %v5943
    %v5945 = vpop.f32.mrf.mxu0
    %5946 = vdwg.mxu0
    %5947 = vmatpush.bf16.msra.mxu0 %v5154
    %5948 = vmatpush.bf16.msra.mxu0 %v5150
    %5949 = vmatpush.bf16.msra.mxu0 %v5146
    %5950 = vmatpush.bf16.msra.mxu0 %v5142
    %5951 = vmatpush.bf16.msra.mxu0 %v5138
    %5952 = vmatpush.bf16.msra.mxu0 %v5134
    %5953 = vmatpush.bf16.msra.mxu0 %v5130
    %5954 = vmatpush.bf16.msra.mxu0 %v5126
    %5955 = vmatmul.bf16.gmra.mxu0 %v4091
    %v5956 = vpop.f32.mrf.mxu0
    %v5957 = vadd.f32 0.0, %v5956
    %v5958 = vpop.f32.mrf.mxu0
    %5959 = vdwg.mxu0
    %5960 = vmatpush.bf16.msra.mxu0 %v5186
    %5961 = vmatpush.bf16.msra.mxu0 %v5182
    %5962 = vmatpush.bf16.msra.mxu0 %v5178
    %5963 = vmatpush.bf16.msra.mxu0 %v5174
    %5964 = vmatpush.bf16.msra.mxu0 %v5170
    %5965 = vmatpush.bf16.msra.mxu0 %v5166
    %5966 = vmatpush.bf16.msra.mxu0 %v5162
    %5967 = vmatpush.bf16.msra.mxu0 %v5158
    %5968 = vmatmul.bf16.gmra.mxu0 %v4092
    %v5969 = vpop.f32.mrf.mxu0
    %v5970 = vadd.f32 %v5957, %v5969
    %v5971 = vpop.f32.mrf.mxu0
    %5972 = vdwg.mxu0
    %5973 = vmatpush.bf16.msra.mxu0 %v5218
    %5974 = vmatpush.bf16.msra.mxu0 %v5214
    %5975 = vmatpush.bf16.msra.mxu0 %v5210
    %5976 = vmatpush.bf16.msra.mxu0 %v5206
    %5977 = vmatpush.bf16.msra.mxu0 %v5202
    %5978 = vmatpush.bf16.msra.mxu0 %v5198
    %5979 = vmatpush.bf16.msra.mxu0 %v5194
    %5980 = vmatpush.bf16.msra.mxu0 %v5190
    %5981 = vmatmul.bf16.gmra.mxu0 %v4093
    %v5982 = vpop.f32.mrf.mxu0
    %v5983 = vadd.f32 %v5970, %v5982
    %v5984 = vpop.f32.mrf.mxu0
    %5985 = vdwg.mxu0
    %5986 = vmatpush.bf16.msra.mxu0 %v5250
    %5987 = vmatpush.bf16.msra.mxu0 %v5246
    %5988 = vmatpush.bf16.msra.mxu0 %v5242
    %5989 = vmatpush.bf16.msra.mxu0 %v5238
    %5990 = vmatpush.bf16.msra.mxu0 %v5234
    %5991 = vmatpush.bf16.msra.mxu0 %v5230
    %5992 = vmatpush.bf16.msra.mxu0 %v5226
    %5993 = vmatpush.bf16.msra.mxu0 %v5222
    %5994 = vmatmul.bf16.gmra.mxu0 %v4094
    %v5995 = vpop.f32.mrf.mxu0
    %v5996 = vadd.f32 %v5983, %v5995
    %v5997 = vpop.f32.mrf.mxu0
    %5998 = vdwg.mxu0
    %5999 = vmatpush.bf16.msra.mxu0 %v5282
    %6000 = vmatpush.bf16.msra.mxu0 %v5278
    %6001 = vmatpush.bf16.msra.mxu0 %v5274
    %6002 = vmatpush.bf16.msra.mxu0 %v5270
    %6003 = vmatpush.bf16.msra.mxu0 %v5266
    %6004 = vmatpush.bf16.msra.mxu0 %v5262
    %6005 = vmatpush.bf16.msra.mxu0 %v5258
    %6006 = vmatpush.bf16.msra.mxu0 %v5254
    %6007 = vmatmul.bf16.gmra.mxu0 %v4095
    %v6008 = vpop.f32.mrf.mxu0
    %v6009 = vadd.f32 %v5996, %v6008
    %v6010 = vpop.f32.mrf.mxu0
    %6011 = vdwg.mxu0
    %6012 = vmatpush.bf16.msra.mxu0 %v5314
    %6013 = vmatpush.bf16.msra.mxu0 %v5310
    %6014 = vmatpush.bf16.msra.mxu0 %v5306
    %6015 = vmatpush.bf16.msra.mxu0 %v5302
    %6016 = vmatpush.bf16.msra.mxu0 %v5298
    %6017 = vmatpush.bf16.msra.mxu0 %v5294
    %6018 = vmatpush.bf16.msra.mxu0 %v5290
    %6019 = vmatpush.bf16.msra.mxu0 %v5286
    %6020 = vmatmul.bf16.gmra.mxu0 %v4096
    %v6021 = vpop.f32.mrf.mxu0
    %v6022 = vadd.f32 %v6009, %v6021
    %v6023 = vpop.f32.mrf.mxu0
    %6024 = vdwg.mxu0
    %6025 = vmatpush.bf16.msra.mxu0 %v5346
    %6026 = vmatpush.bf16.msra.mxu0 %v5342
    %6027 = vmatpush.bf16.msra.mxu0 %v5338
    %6028 = vmatpush.bf16.msra.mxu0 %v5334
    %6029 = vmatpush.bf16.msra.mxu0 %v5330
    %6030 = vmatpush.bf16.msra.mxu0 %v5326
    %6031 = vmatpush.bf16.msra.mxu0 %v5322
    %6032 = vmatpush.bf16.msra.mxu0 %v5318
    %6033 = vmatmul.bf16.gmra.mxu0 %v4097
    %v6034 = vpop.f32.mrf.mxu0
    %v6035 = vadd.f32 %v6022, %v6034
    %v6036 = vpop.f32.mrf.mxu0
    %6037 = vdwg.mxu0
    %6038 = vmatpush.bf16.msra.mxu0 %v5378
    %6039 = vmatpush.bf16.msra.mxu0 %v5374
    %6040 = vmatpush.bf16.msra.mxu0 %v5370
    %6041 = vmatpush.bf16.msra.mxu0 %v5366
    %6042 = vmatpush.bf16.msra.mxu0 %v5362
    %6043 = vmatpush.bf16.msra.mxu0 %v5358
    %6044 = vmatpush.bf16.msra.mxu0 %v5354
    %6045 = vmatpush.bf16.msra.mxu0 %v5350
    %6046 = vmatmul.bf16.gmra.mxu0 %v4098
    %v6047 = vpop.f32.mrf.mxu0
    %v6048 = vadd.f32 %v6035, %v6047
    %v6049 = vpop.f32.mrf.mxu0
    %6050 = vdwg.mxu0
    %vm6051 = vcmp.ge.f32.partialorder %v5736, 0.0
    %vm6052 = vcmp.ge.f32.partialorder %v5840, 0.0
    %vm6053 = vcmp.ge.f32.partialorder %v5944, 0.0
    %vm6054 = vcmp.ge.f32.partialorder %v6048, 0.0
    %v6055 = vmul.f32 %v5736, 0.01
    %v6056 = vmul.f32 %v5840, 0.01
    %v6057 = vmul.f32 %v5944, 0.01
    %v6058 = vmul.f32 %v6048, 0.01
    %v6059 = vsel %vm6051, %v5736, %v6055
    %v6060 = vsel %vm6052, %v5840, %v6056
    %v6061 = vsel %vm6053, %v5944, %v6057
    %v6062 = vsel %vm6054, %v6048, %v6058
    %v6063 = vpack.c.bf16 %v6059, %v6059
    %v6064 = vpack.c.bf16 %v6060, %v6060
    %v6065 = vpack.c.bf16 %v6061, %v6061
    %v6066 = vpack.c.bf16 %v6062, %v6062
    %v6067 = vld [vmem:[#allocation8] sm:$0xff]
    %v6068 = vld [vmem:[#allocation8 + $0x8] sm:$0xff]
    %v6069 = vld [vmem:[#allocation8 + $0x10] sm:$0xff]
    %v6070 = vld [vmem:[#allocation8 + $0x18] sm:$0xff]
    %v6071 = vld [vmem:[#allocation8 + $0x20] sm:$0xff]
    %v6072 = vld [vmem:[#allocation8 + $0x28] sm:$0xff]
    %v6073 = vld [vmem:[#allocation8 + $0x30] sm:$0xff]
    %v6074 = vld [vmem:[#allocation8 + $0x38] sm:$0xff]
    %v6075 = vld [vmem:[#allocation8 + $0x40] sm:$0xff]
    %v6076 = vld [vmem:[#allocation8 + $0x48] sm:$0xff]
    %v6077 = vld [vmem:[#allocation8 + $0x50] sm:$0xff]
    %v6078 = vld [vmem:[#allocation8 + $0x58] sm:$0xff]
    %v6079 = vld [vmem:[#allocation8 + $0x60] sm:$0xff]
    %v6080 = vld [vmem:[#allocation8 + $0x68] sm:$0xff]
    %v6081 = vld [vmem:[#allocation8 + $0x70] sm:$0xff]
    %v6082 = vld [vmem:[#allocation8 + $0x78] sm:$0xff]
    %v6083 = vld [vmem:[#allocation8 + $0x80] sm:$0xff]
    %v6084 = vld [vmem:[#allocation8 + $0x88] sm:$0xff]
    %v6085 = vld [vmem:[#allocation8 + $0x90] sm:$0xff]
    %v6086 = vld [vmem:[#allocation8 + $0x98] sm:$0xff]
    %v6087 = vld [vmem:[#allocation8 + $0xa0] sm:$0xff]
    %v6088 = vld [vmem:[#allocation8 + $0xa8] sm:$0xff]
    %v6089 = vld [vmem:[#allocation8 + $0xb0] sm:$0xff]
    %v6090 = vld [vmem:[#allocation8 + $0xb8] sm:$0xff]
    %v6091 = vld [vmem:[#allocation8 + $0xc0] sm:$0xff]
    %v6092 = vld [vmem:[#allocation8 + $0xc8] sm:$0xff]
    %v6093 = vld [vmem:[#allocation8 + $0xd0] sm:$0xff]
    %v6094 = vld [vmem:[#allocation8 + $0xd8] sm:$0xff]
    %v6095 = vld [vmem:[#allocation8 + $0xe0] sm:$0xff]
    %v6096 = vld [vmem:[#allocation8 + $0xe8] sm:$0xff]
    %v6097 = vld [vmem:[#allocation8 + $0xf0] sm:$0xff]
    %v6098 = vld [vmem:[#allocation8 + $0xf8] sm:$0xff]
    %v6099 = vld [vmem:[#allocation8 + $0x100] sm:$0xff]
    %v6100 = vld [vmem:[#allocation8 + $0x108] sm:$0xff]
    %v6101 = vld [vmem:[#allocation8 + $0x110] sm:$0xff]
    %v6102 = vld [vmem:[#allocation8 + $0x118] sm:$0xff]
    %v6103 = vld [vmem:[#allocation8 + $0x120] sm:$0xff]
    %v6104 = vld [vmem:[#allocation8 + $0x128] sm:$0xff]
    %v6105 = vld [vmem:[#allocation8 + $0x130] sm:$0xff]
    %v6106 = vld [vmem:[#allocation8 + $0x138] sm:$0xff]
    %v6107 = vld [vmem:[#allocation8 + $0x140] sm:$0xff]
    %v6108 = vld [vmem:[#allocation8 + $0x148] sm:$0xff]
    %v6109 = vld [vmem:[#allocation8 + $0x150] sm:$0xff]
    %v6110 = vld [vmem:[#allocation8 + $0x158] sm:$0xff]
    %v6111 = vld [vmem:[#allocation8 + $0x160] sm:$0xff]
    %v6112 = vld [vmem:[#allocation8 + $0x168] sm:$0xff]
    %v6113 = vld [vmem:[#allocation8 + $0x170] sm:$0xff]
    %v6114 = vld [vmem:[#allocation8 + $0x178] sm:$0xff]
    %v6115 = vld [vmem:[#allocation8 + $0x180] sm:$0xff]
    %v6116 = vld [vmem:[#allocation8 + $0x188] sm:$0xff]
    %v6117 = vld [vmem:[#allocation8 + $0x190] sm:$0xff]
    %v6118 = vld [vmem:[#allocation8 + $0x198] sm:$0xff]
    %v6119 = vld [vmem:[#allocation8 + $0x1a0] sm:$0xff]
    %v6120 = vld [vmem:[#allocation8 + $0x1a8] sm:$0xff]
    %v6121 = vld [vmem:[#allocation8 + $0x1b0] sm:$0xff]
    %v6122 = vld [vmem:[#allocation8 + $0x1b8] sm:$0xff]
    %v6123 = vld [vmem:[#allocation8 + $0x1c0] sm:$0xff]
    %v6124 = vld [vmem:[#allocation8 + $0x1c8] sm:$0xff]
    %v6125 = vld [vmem:[#allocation8 + $0x1d0] sm:$0xff]
    %v6126 = vld [vmem:[#allocation8 + $0x1d8] sm:$0xff]
    %v6127 = vld [vmem:[#allocation8 + $0x1e0] sm:$0xff]
    %v6128 = vld [vmem:[#allocation8 + $0x1e8] sm:$0xff]
    %v6129 = vld [vmem:[#allocation8 + $0x1f0] sm:$0xff]
    %v6130 = vld [vmem:[#allocation8 + $0x1f8] sm:$0xff]
    %v6195 = vunpack.c.l.b16 %v6067
    %v6196 = vunpack.c.h.b16 %v6067
    %v6197 = vunpack.c.l.b16 %v6068
    %v6198 = vunpack.c.h.b16 %v6068
    %v6199 = vunpack.c.l.b16 %v6069
    %v6200 = vunpack.c.h.b16 %v6069
    %v6201 = vunpack.c.l.b16 %v6070
    %v6202 = vunpack.c.h.b16 %v6070
    %v6203 = vunpack.c.l.b16 %v6071
    %v6204 = vunpack.c.h.b16 %v6071
    %v6205 = vunpack.c.l.b16 %v6072
    %v6206 = vunpack.c.h.b16 %v6072
    %v6207 = vunpack.c.l.b16 %v6073
    %v6208 = vunpack.c.h.b16 %v6073
    %v6209 = vunpack.c.l.b16 %v6074
    %v6210 = vunpack.c.h.b16 %v6074
    %v6211 = vunpack.c.l.b16 %v6075
    %v6212 = vunpack.c.h.b16 %v6075
    %v6213 = vunpack.c.l.b16 %v6076
    %v6214 = vunpack.c.h.b16 %v6076
    %v6215 = vunpack.c.l.b16 %v6077
    %v6216 = vunpack.c.h.b16 %v6077
    %v6217 = vunpack.c.l.b16 %v6078
    %v6218 = vunpack.c.h.b16 %v6078
    %v6219 = vunpack.c.l.b16 %v6079
    %v6220 = vunpack.c.h.b16 %v6079
    %v6221 = vunpack.c.l.b16 %v6080
    %v6222 = vunpack.c.h.b16 %v6080
    %v6223 = vunpack.c.l.b16 %v6081
    %v6224 = vunpack.c.h.b16 %v6081
    %v6225 = vunpack.c.l.b16 %v6082
    %v6226 = vunpack.c.h.b16 %v6082
    %v6227 = vunpack.c.l.b16 %v6083
    %v6228 = vunpack.c.h.b16 %v6083
    %v6229 = vunpack.c.l.b16 %v6084
    %v6230 = vunpack.c.h.b16 %v6084
    %v6231 = vunpack.c.l.b16 %v6085
    %v6232 = vunpack.c.h.b16 %v6085
    %v6233 = vunpack.c.l.b16 %v6086
    %v6234 = vunpack.c.h.b16 %v6086
    %v6235 = vunpack.c.l.b16 %v6087
    %v6236 = vunpack.c.h.b16 %v6087
    %v6237 = vunpack.c.l.b16 %v6088
    %v6238 = vunpack.c.h.b16 %v6088
    %v6239 = vunpack.c.l.b16 %v6089
    %v6240 = vunpack.c.h.b16 %v6089
    %v6241 = vunpack.c.l.b16 %v6090
    %v6242 = vunpack.c.h.b16 %v6090
    %v6243 = vunpack.c.l.b16 %v6091
    %v6244 = vunpack.c.h.b16 %v6091
    %v6245 = vunpack.c.l.b16 %v6092
    %v6246 = vunpack.c.h.b16 %v6092
    %v6247 = vunpack.c.l.b16 %v6093
    %v6248 = vunpack.c.h.b16 %v6093
    %v6249 = vunpack.c.l.b16 %v6094
    %v6250 = vunpack.c.h.b16 %v6094
    %v6251 = vunpack.c.l.b16 %v6095
    %v6252 = vunpack.c.h.b16 %v6095
    %v6253 = vunpack.c.l.b16 %v6096
    %v6254 = vunpack.c.h.b16 %v6096
    %v6255 = vunpack.c.l.b16 %v6097
    %v6256 = vunpack.c.h.b16 %v6097
    %v6257 = vunpack.c.l.b16 %v6098
    %v6258 = vunpack.c.h.b16 %v6098
    %v6259 = vunpack.c.l.b16 %v6099
    %v6260 = vunpack.c.h.b16 %v6099
    %v6261 = vunpack.c.l.b16 %v6100
    %v6262 = vunpack.c.h.b16 %v6100
    %v6263 = vunpack.c.l.b16 %v6101
    %v6264 = vunpack.c.h.b16 %v6101
    %v6265 = vunpack.c.l.b16 %v6102
    %v6266 = vunpack.c.h.b16 %v6102
    %v6267 = vunpack.c.l.b16 %v6103
    %v6268 = vunpack.c.h.b16 %v6103
    %v6269 = vunpack.c.l.b16 %v6104
    %v6270 = vunpack.c.h.b16 %v6104
    %v6271 = vunpack.c.l.b16 %v6105
    %v6272 = vunpack.c.h.b16 %v6105
    %v6273 = vunpack.c.l.b16 %v6106
    %v6274 = vunpack.c.h.b16 %v6106
    %v6275 = vunpack.c.l.b16 %v6107
    %v6276 = vunpack.c.h.b16 %v6107
    %v6277 = vunpack.c.l.b16 %v6108
    %v6278 = vunpack.c.h.b16 %v6108
    %v6279 = vunpack.c.l.b16 %v6109
    %v6280 = vunpack.c.h.b16 %v6109
    %v6281 = vunpack.c.l.b16 %v6110
    %v6282 = vunpack.c.h.b16 %v6110
    %v6283 = vunpack.c.l.b16 %v6111
    %v6284 = vunpack.c.h.b16 %v6111
    %v6285 = vunpack.c.l.b16 %v6112
    %v6286 = vunpack.c.h.b16 %v6112
    %v6287 = vunpack.c.l.b16 %v6113
    %v6288 = vunpack.c.h.b16 %v6113
    %v6289 = vunpack.c.l.b16 %v6114
    %v6290 = vunpack.c.h.b16 %v6114
    %v6291 = vunpack.c.l.b16 %v6115
    %v6292 = vunpack.c.h.b16 %v6115
    %v6293 = vunpack.c.l.b16 %v6116
    %v6294 = vunpack.c.h.b16 %v6116
    %v6295 = vunpack.c.l.b16 %v6117
    %v6296 = vunpack.c.h.b16 %v6117
    %v6297 = vunpack.c.l.b16 %v6118
    %v6298 = vunpack.c.h.b16 %v6118
    %v6299 = vunpack.c.l.b16 %v6119
    %v6300 = vunpack.c.h.b16 %v6119
    %v6301 = vunpack.c.l.b16 %v6120
    %v6302 = vunpack.c.h.b16 %v6120
    %v6303 = vunpack.c.l.b16 %v6121
    %v6304 = vunpack.c.h.b16 %v6121
    %v6305 = vunpack.c.l.b16 %v6122
    %v6306 = vunpack.c.h.b16 %v6122
    %v6307 = vunpack.c.l.b16 %v6123
    %v6308 = vunpack.c.h.b16 %v6123
    %v6309 = vunpack.c.l.b16 %v6124
    %v6310 = vunpack.c.h.b16 %v6124
    %v6311 = vunpack.c.l.b16 %v6125
    %v6312 = vunpack.c.h.b16 %v6125
    %v6313 = vunpack.c.l.b16 %v6126
    %v6314 = vunpack.c.h.b16 %v6126
    %v6315 = vunpack.c.l.b16 %v6127
    %v6316 = vunpack.c.h.b16 %v6127
    %v6317 = vunpack.c.l.b16 %v6128
    %v6318 = vunpack.c.h.b16 %v6128
    %v6319 = vunpack.c.l.b16 %v6129
    %v6320 = vunpack.c.h.b16 %v6129
    %v6321 = vunpack.c.l.b16 %v6130
    %v6322 = vunpack.c.h.b16 %v6130
    %v6323 = vpack.c.b16 %v6197, %v6195
    %v6324 = vpack.c.b16 %v6198, %v6196
    %v6325 = vpack.c.b16 %v6201, %v6199
    %v6326 = vpack.c.b16 %v6202, %v6200
    %v6327 = vpack.c.b16 %v6205, %v6203
    %v6328 = vpack.c.b16 %v6206, %v6204
    %v6329 = vpack.c.b16 %v6209, %v6207
    %v6330 = vpack.c.b16 %v6210, %v6208
    %v6331 = vpack.c.b16 %v6213, %v6211
    %v6332 = vpack.c.b16 %v6214, %v6212
    %v6333 = vpack.c.b16 %v6217, %v6215
    %v6334 = vpack.c.b16 %v6218, %v6216
    %v6335 = vpack.c.b16 %v6221, %v6219
    %v6336 = vpack.c.b16 %v6222, %v6220
    %v6337 = vpack.c.b16 %v6225, %v6223
    %v6338 = vpack.c.b16 %v6226, %v6224
    %v6339 = vpack.c.b16 %v6229, %v6227
    %v6340 = vpack.c.b16 %v6230, %v6228
    %v6341 = vpack.c.b16 %v6233, %v6231
    %v6342 = vpack.c.b16 %v6234, %v6232
    %v6343 = vpack.c.b16 %v6237, %v6235
    %v6344 = vpack.c.b16 %v6238, %v6236
    %v6345 = vpack.c.b16 %v6241, %v6239
    %v6346 = vpack.c.b16 %v6242, %v6240
    %v6347 = vpack.c.b16 %v6245, %v6243
    %v6348 = vpack.c.b16 %v6246, %v6244
    %v6349 = vpack.c.b16 %v6249, %v6247
    %v6350 = vpack.c.b16 %v6250, %v6248
    %v6351 = vpack.c.b16 %v6253, %v6251
    %v6352 = vpack.c.b16 %v6254, %v6252
    %v6353 = vpack.c.b16 %v6257, %v6255
    %v6354 = vpack.c.b16 %v6258, %v6256
    %v6355 = vpack.c.b16 %v6261, %v6259
    %v6356 = vpack.c.b16 %v6262, %v6260
    %v6357 = vpack.c.b16 %v6265, %v6263
    %v6358 = vpack.c.b16 %v6266, %v6264
    %v6359 = vpack.c.b16 %v6269, %v6267
    %v6360 = vpack.c.b16 %v6270, %v6268
    %v6361 = vpack.c.b16 %v6273, %v6271
    %v6362 = vpack.c.b16 %v6274, %v6272
    %v6363 = vpack.c.b16 %v6277, %v6275
    %v6364 = vpack.c.b16 %v6278, %v6276
    %v6365 = vpack.c.b16 %v6281, %v6279
    %v6366 = vpack.c.b16 %v6282, %v6280
    %v6367 = vpack.c.b16 %v6285, %v6283
    %v6368 = vpack.c.b16 %v6286, %v6284
    %v6369 = vpack.c.b16 %v6289, %v6287
    %v6370 = vpack.c.b16 %v6290, %v6288
    %v6371 = vpack.c.b16 %v6293, %v6291
    %v6372 = vpack.c.b16 %v6294, %v6292
    %v6373 = vpack.c.b16 %v6297, %v6295
    %v6374 = vpack.c.b16 %v6298, %v6296
    %v6375 = vpack.c.b16 %v6301, %v6299
    %v6376 = vpack.c.b16 %v6302, %v6300
    %v6377 = vpack.c.b16 %v6305, %v6303
    %v6378 = vpack.c.b16 %v6306, %v6304
    %v6379 = vpack.c.b16 %v6309, %v6307
    %v6380 = vpack.c.b16 %v6310, %v6308
    %v6381 = vpack.c.b16 %v6313, %v6311
    %v6382 = vpack.c.b16 %v6314, %v6312
    %v6383 = vpack.c.b16 %v6317, %v6315
    %v6384 = vpack.c.b16 %v6318, %v6316
    %v6385 = vpack.c.b16 %v6321, %v6319
    %v6386 = vpack.c.b16 %v6322, %v6320
    %6451 = vmatpush.bf16.msra.mxu0 %v6337
    %6452 = vmatpush.bf16.msra.mxu0 %v6335
    %6453 = vmatpush.bf16.msra.mxu0 %v6333
    %6454 = vmatpush.bf16.msra.mxu0 %v6331
    %6455 = vmatpush.bf16.msra.mxu0 %v6329
    %6456 = vmatpush.bf16.msra.mxu0 %v6327
    %6457 = vmatpush.bf16.msra.mxu0 %v6325
    %6458 = vmatpush.bf16.msra.mxu0 %v6323
    %6459 = vmatmul.bf16.gmra.mxu0 %v6063
    %v6460 = vpop.f32.mrf.mxu0
    %v6461 = vadd.f32 0.0, %v6460
    %v6462 = vpop.f32.mrf.mxu0
    %6463 = vdwg.mxu0
    %6464 = vmatpush.bf16.msra.mxu0 %v6353
    %6465 = vmatpush.bf16.msra.mxu0 %v6351
    %6466 = vmatpush.bf16.msra.mxu0 %v6349
    %6467 = vmatpush.bf16.msra.mxu0 %v6347
    %6468 = vmatpush.bf16.msra.mxu0 %v6345
    %6469 = vmatpush.bf16.msra.mxu0 %v6343
    %6470 = vmatpush.bf16.msra.mxu0 %v6341
    %6471 = vmatpush.bf16.msra.mxu0 %v6339
    %6472 = vmatmul.bf16.gmra.mxu0 %v6064
    %v6473 = vpop.f32.mrf.mxu0
    %v6474 = vadd.f32 %v6461, %v6473
    %v6475 = vpop.f32.mrf.mxu0
    %6476 = vdwg.mxu0
    %6477 = vmatpush.bf16.msra.mxu0 %v6369
    %6478 = vmatpush.bf16.msra.mxu0 %v6367
    %6479 = vmatpush.bf16.msra.mxu0 %v6365
    %6480 = vmatpush.bf16.msra.mxu0 %v6363
    %6481 = vmatpush.bf16.msra.mxu0 %v6361
    %6482 = vmatpush.bf16.msra.mxu0 %v6359
    %6483 = vmatpush.bf16.msra.mxu0 %v6357
    %6484 = vmatpush.bf16.msra.mxu0 %v6355
    %6485 = vmatmul.bf16.gmra.mxu0 %v6065
    %v6486 = vpop.f32.mrf.mxu0
    %v6487 = vadd.f32 %v6474, %v6486
    %v6488 = vpop.f32.mrf.mxu0
    %6489 = vdwg.mxu0
    %6490 = vmatpush.bf16.msra.mxu0 %v6385
    %6491 = vmatpush.bf16.msra.mxu0 %v6383
    %6492 = vmatpush.bf16.msra.mxu0 %v6381
    %6493 = vmatpush.bf16.msra.mxu0 %v6379
    %6494 = vmatpush.bf16.msra.mxu0 %v6377
    %6495 = vmatpush.bf16.msra.mxu0 %v6375
    %6496 = vmatpush.bf16.msra.mxu0 %v6373
    %6497 = vmatpush.bf16.msra.mxu0 %v6371
    %6498 = vmatmul.bf16.gmra.mxu0 %v6066
    %v6499 = vpop.f32.mrf.mxu0
    %v6500 = vadd.f32 %v6487, %v6499
    %v6501 = vpop.f32.mrf.mxu0
    %6502 = vdwg.mxu0
    %6503 = vmatpush.bf16.msra.mxu0 %v6338
    %6504 = vmatpush.bf16.msra.mxu0 %v6336
    %6505 = vmatpush.bf16.msra.mxu0 %v6334
    %6506 = vmatpush.bf16.msra.mxu0 %v6332
    %6507 = vmatpush.bf16.msra.mxu0 %v6330
    %6508 = vmatpush.bf16.msra.mxu0 %v6328
    %6509 = vmatpush.bf16.msra.mxu0 %v6326
    %6510 = vmatpush.bf16.msra.mxu0 %v6324
    %6511 = vmatmul.bf16.gmra.mxu0 %v6063
    %v6512 = vpop.f32.mrf.mxu0
    %v6513 = vadd.f32 0.0, %v6512
    %v6514 = vpop.f32.mrf.mxu0
    %6515 = vdwg.mxu0
    %6516 = vmatpush.bf16.msra.mxu0 %v6354
    %6517 = vmatpush.bf16.msra.mxu0 %v6352
    %6518 = vmatpush.bf16.msra.mxu0 %v6350
    %6519 = vmatpush.bf16.msra.mxu0 %v6348
    %6520 = vmatpush.bf16.msra.mxu0 %v6346
    %6521 = vmatpush.bf16.msra.mxu0 %v6344
    %6522 = vmatpush.bf16.msra.mxu0 %v6342
    %6523 = vmatpush.bf16.msra.mxu0 %v6340
    %6524 = vmatmul.bf16.gmra.mxu0 %v6064
    %v6525 = vpop.f32.mrf.mxu0
    %v6526 = vadd.f32 %v6513, %v6525
    %v6527 = vpop.f32.mrf.mxu0
    %6528 = vdwg.mxu0
    %6529 = vmatpush.bf16.msra.mxu0 %v6370
    %6530 = vmatpush.bf16.msra.mxu0 %v6368
    %6531 = vmatpush.bf16.msra.mxu0 %v6366
    %6532 = vmatpush.bf16.msra.mxu0 %v6364
    %6533 = vmatpush.bf16.msra.mxu0 %v6362
    %6534 = vmatpush.bf16.msra.mxu0 %v6360
    %6535 = vmatpush.bf16.msra.mxu0 %v6358
    %6536 = vmatpush.bf16.msra.mxu0 %v6356
    %6537 = vmatmul.bf16.gmra.mxu0 %v6065
    %v6538 = vpop.f32.mrf.mxu0
    %v6539 = vadd.f32 %v6526, %v6538
    %v6540 = vpop.f32.mrf.mxu0
    %6541 = vdwg.mxu0
    %6542 = vmatpush.bf16.msra.mxu0 %v6386
    %6543 = vmatpush.bf16.msra.mxu0 %v6384
    %6544 = vmatpush.bf16.msra.mxu0 %v6382
    %6545 = vmatpush.bf16.msra.mxu0 %v6380
    %6546 = vmatpush.bf16.msra.mxu0 %v6378
    %6547 = vmatpush.bf16.msra.mxu0 %v6376
    %6548 = vmatpush.bf16.msra.mxu0 %v6374
    %6549 = vmatpush.bf16.msra.mxu0 %v6372
    %6550 = vmatmul.bf16.gmra.mxu0 %v6066
    %v6551 = vpop.f32.mrf.mxu0
    %v6552 = vadd.f32 %v6539, %v6551
    %v6553 = vpop.f32.mrf.mxu0
    %6554 = vdwg.mxu0
    %vm6555 = vcmp.ge.f32.partialorder %v6500, 0.0
    %vm6556 = vcmp.ge.f32.partialorder %v6552, 0.0
    %v6557 = vmul.f32 %v6500, 0.01
    %v6558 = vmul.f32 %v6552, 0.01
    %v6559 = vsel %vm6555, %v6500, %v6557
    %v6560 = vsel %vm6556, %v6552, %v6558
    %v6561 = vpack.c.bf16 %v6559, %v6559
    %v6562 = vpack.c.bf16 %v6560, %v6560
    %v6563 = vld [vmem:[#allocation10] sm:$0xff]
    %v6564 = vld [vmem:[#allocation10 + $0x8] sm:$0xff]
    %v6565 = vld [vmem:[#allocation10 + $0x10] sm:$0xff]
    %v6566 = vld [vmem:[#allocation10 + $0x18] sm:$0xff]
    %v6567 = vld [vmem:[#allocation10 + $0x20] sm:$0xff]
    %v6568 = vld [vmem:[#allocation10 + $0x28] sm:$0xff]
    %v6569 = vld [vmem:[#allocation10 + $0x30] sm:$0xff]
    %v6570 = vld [vmem:[#allocation10 + $0x38] sm:$0xff]
    %v6571 = vld [vmem:[#allocation10 + $0x40] sm:$0xff]
    %v6572 = vld [vmem:[#allocation10 + $0x48] sm:$0xff]
    %v6573 = vld [vmem:[#allocation10 + $0x50] sm:$0xff]
    %v6574 = vld [vmem:[#allocation10 + $0x58] sm:$0xff]
    %v6575 = vld [vmem:[#allocation10 + $0x60] sm:$0xff]
    %v6576 = vld [vmem:[#allocation10 + $0x68] sm:$0xff]
    %v6577 = vld [vmem:[#allocation10 + $0x70] sm:$0xff]
    %v6578 = vld [vmem:[#allocation10 + $0x78] sm:$0xff]
    %v6579 = vld [vmem:[#allocation10 + $0x80] sm:$0xff]
    %v6580 = vld [vmem:[#allocation10 + $0x88] sm:$0xff]
    %v6581 = vld [vmem:[#allocation10 + $0x90] sm:$0xff]
    %v6582 = vld [vmem:[#allocation10 + $0x98] sm:$0xff]
    %v6583 = vld [vmem:[#allocation10 + $0xa0] sm:$0xff]
    %v6584 = vld [vmem:[#allocation10 + $0xa8] sm:$0xff]
    %v6585 = vld [vmem:[#allocation10 + $0xb0] sm:$0xff]
    %v6586 = vld [vmem:[#allocation10 + $0xb8] sm:$0xff]
    %v6587 = vld [vmem:[#allocation10 + $0xc0] sm:$0xff]
    %v6588 = vld [vmem:[#allocation10 + $0xc8] sm:$0xff]
    %v6589 = vld [vmem:[#allocation10 + $0xd0] sm:$0xff]
    %v6590 = vld [vmem:[#allocation10 + $0xd8] sm:$0xff]
    %v6591 = vld [vmem:[#allocation10 + $0xe0] sm:$0xff]
    %v6592 = vld [vmem:[#allocation10 + $0xe8] sm:$0xff]
    %v6593 = vld [vmem:[#allocation10 + $0xf0] sm:$0xff]
    %v6594 = vld [vmem:[#allocation10 + $0xf8] sm:$0xff]
    %v6595 = vld [vmem:[#allocation10 + $0x100] sm:$0xff]
    %v6596 = vld [vmem:[#allocation10 + $0x108] sm:$0xff]
    %v6597 = vld [vmem:[#allocation10 + $0x110] sm:$0xff]
    %v6598 = vld [vmem:[#allocation10 + $0x118] sm:$0xff]
    %v6599 = vld [vmem:[#allocation10 + $0x120] sm:$0xff]
    %v6600 = vld [vmem:[#allocation10 + $0x128] sm:$0xff]
    %v6601 = vld [vmem:[#allocation10 + $0x130] sm:$0xff]
    %v6602 = vld [vmem:[#allocation10 + $0x138] sm:$0xff]
    %v6603 = vld [vmem:[#allocation10 + $0x140] sm:$0xff]
    %v6604 = vld [vmem:[#allocation10 + $0x148] sm:$0xff]
    %v6605 = vld [vmem:[#allocation10 + $0x150] sm:$0xff]
    %v6606 = vld [vmem:[#allocation10 + $0x158] sm:$0xff]
    %v6607 = vld [vmem:[#allocation10 + $0x160] sm:$0xff]
    %v6608 = vld [vmem:[#allocation10 + $0x168] sm:$0xff]
    %v6609 = vld [vmem:[#allocation10 + $0x170] sm:$0xff]
    %v6610 = vld [vmem:[#allocation10 + $0x178] sm:$0xff]
    %v6611 = vld [vmem:[#allocation10 + $0x180] sm:$0xff]
    %v6612 = vld [vmem:[#allocation10 + $0x188] sm:$0xff]
    %v6613 = vld [vmem:[#allocation10 + $0x190] sm:$0xff]
    %v6614 = vld [vmem:[#allocation10 + $0x198] sm:$0xff]
    %v6615 = vld [vmem:[#allocation10 + $0x1a0] sm:$0xff]
    %v6616 = vld [vmem:[#allocation10 + $0x1a8] sm:$0xff]
    %v6617 = vld [vmem:[#allocation10 + $0x1b0] sm:$0xff]
    %v6618 = vld [vmem:[#allocation10 + $0x1b8] sm:$0xff]
    %v6619 = vld [vmem:[#allocation10 + $0x1c0] sm:$0xff]
    %v6620 = vld [vmem:[#allocation10 + $0x1c8] sm:$0xff]
    %v6621 = vld [vmem:[#allocation10 + $0x1d0] sm:$0xff]
    %v6622 = vld [vmem:[#allocation10 + $0x1d8] sm:$0xff]
    %v6623 = vld [vmem:[#allocation10 + $0x1e0] sm:$0xff]
    %v6624 = vld [vmem:[#allocation10 + $0x1e8] sm:$0xff]
    %v6625 = vld [vmem:[#allocation10 + $0x1f0] sm:$0xff]
    %v6626 = vld [vmem:[#allocation10 + $0x1f8] sm:$0xff]
    %v6691 = vunpack.c.l.b16 %v6563
    %v6692 = vunpack.c.h.b16 %v6563
    %v6693 = vunpack.c.l.b16 %v6564
    %v6694 = vunpack.c.h.b16 %v6564
    %v6695 = vunpack.c.l.b16 %v6565
    %v6696 = vunpack.c.h.b16 %v6565
    %v6697 = vunpack.c.l.b16 %v6566
    %v6698 = vunpack.c.h.b16 %v6566
    %v6699 = vunpack.c.l.b16 %v6567
    %v6700 = vunpack.c.h.b16 %v6567
    %v6701 = vunpack.c.l.b16 %v6568
    %v6702 = vunpack.c.h.b16 %v6568
    %v6703 = vunpack.c.l.b16 %v6569
    %v6704 = vunpack.c.h.b16 %v6569
    %v6705 = vunpack.c.l.b16 %v6570
    %v6706 = vunpack.c.h.b16 %v6570
    %v6707 = vunpack.c.l.b16 %v6571
    %v6708 = vunpack.c.h.b16 %v6571
    %v6709 = vunpack.c.l.b16 %v6572
    %v6710 = vunpack.c.h.b16 %v6572
    %v6711 = vunpack.c.l.b16 %v6573
    %v6712 = vunpack.c.h.b16 %v6573
    %v6713 = vunpack.c.l.b16 %v6574
    %v6714 = vunpack.c.h.b16 %v6574
    %v6715 = vunpack.c.l.b16 %v6575
    %v6716 = vunpack.c.h.b16 %v6575
    %v6717 = vunpack.c.l.b16 %v6576
    %v6718 = vunpack.c.h.b16 %v6576
    %v6719 = vunpack.c.l.b16 %v6577
    %v6720 = vunpack.c.h.b16 %v6577
    %v6721 = vunpack.c.l.b16 %v6578
    %v6722 = vunpack.c.h.b16 %v6578
    %v6723 = vunpack.c.l.b16 %v6579
    %v6724 = vunpack.c.h.b16 %v6579
    %v6725 = vunpack.c.l.b16 %v6580
    %v6726 = vunpack.c.h.b16 %v6580
    %v6727 = vunpack.c.l.b16 %v6581
    %v6728 = vunpack.c.h.b16 %v6581
    %v6729 = vunpack.c.l.b16 %v6582
    %v6730 = vunpack.c.h.b16 %v6582
    %v6731 = vunpack.c.l.b16 %v6583
    %v6732 = vunpack.c.h.b16 %v6583
    %v6733 = vunpack.c.l.b16 %v6584
    %v6734 = vunpack.c.h.b16 %v6584
    %v6735 = vunpack.c.l.b16 %v6585
    %v6736 = vunpack.c.h.b16 %v6585
    %v6737 = vunpack.c.l.b16 %v6586
    %v6738 = vunpack.c.h.b16 %v6586
    %v6739 = vunpack.c.l.b16 %v6587
    %v6740 = vunpack.c.h.b16 %v6587
    %v6741 = vunpack.c.l.b16 %v6588
    %v6742 = vunpack.c.h.b16 %v6588
    %v6743 = vunpack.c.l.b16 %v6589
    %v6744 = vunpack.c.h.b16 %v6589
    %v6745 = vunpack.c.l.b16 %v6590
    %v6746 = vunpack.c.h.b16 %v6590
    %v6747 = vunpack.c.l.b16 %v6591
    %v6748 = vunpack.c.h.b16 %v6591
    %v6749 = vunpack.c.l.b16 %v6592
    %v6750 = vunpack.c.h.b16 %v6592
    %v6751 = vunpack.c.l.b16 %v6593
    %v6752 = vunpack.c.h.b16 %v6593
    %v6753 = vunpack.c.l.b16 %v6594
    %v6754 = vunpack.c.h.b16 %v6594
    %v6755 = vunpack.c.l.b16 %v6595
    %v6756 = vunpack.c.h.b16 %v6595
    %v6757 = vunpack.c.l.b16 %v6596
    %v6758 = vunpack.c.h.b16 %v6596
    %v6759 = vunpack.c.l.b16 %v6597
    %v6760 = vunpack.c.h.b16 %v6597
    %v6761 = vunpack.c.l.b16 %v6598
    %v6762 = vunpack.c.h.b16 %v6598
    %v6763 = vunpack.c.l.b16 %v6599
    %v6764 = vunpack.c.h.b16 %v6599
    %v6765 = vunpack.c.l.b16 %v6600
    %v6766 = vunpack.c.h.b16 %v6600
    %v6767 = vunpack.c.l.b16 %v6601
    %v6768 = vunpack.c.h.b16 %v6601
    %v6769 = vunpack.c.l.b16 %v6602
    %v6770 = vunpack.c.h.b16 %v6602
    %v6771 = vunpack.c.l.b16 %v6603
    %v6772 = vunpack.c.h.b16 %v6603
    %v6773 = vunpack.c.l.b16 %v6604
    %v6774 = vunpack.c.h.b16 %v6604
    %v6775 = vunpack.c.l.b16 %v6605
    %v6776 = vunpack.c.h.b16 %v6605
    %v6777 = vunpack.c.l.b16 %v6606
    %v6778 = vunpack.c.h.b16 %v6606
    %v6779 = vunpack.c.l.b16 %v6607
    %v6780 = vunpack.c.h.b16 %v6607
    %v6781 = vunpack.c.l.b16 %v6608
    %v6782 = vunpack.c.h.b16 %v6608
    %v6783 = vunpack.c.l.b16 %v6609
    %v6784 = vunpack.c.h.b16 %v6609
    %v6785 = vunpack.c.l.b16 %v6610
    %v6786 = vunpack.c.h.b16 %v6610
    %v6787 = vunpack.c.l.b16 %v6611
    %v6788 = vunpack.c.h.b16 %v6611
    %v6789 = vunpack.c.l.b16 %v6612
    %v6790 = vunpack.c.h.b16 %v6612
    %v6791 = vunpack.c.l.b16 %v6613
    %v6792 = vunpack.c.h.b16 %v6613
    %v6793 = vunpack.c.l.b16 %v6614
    %v6794 = vunpack.c.h.b16 %v6614
    %v6795 = vunpack.c.l.b16 %v6615
    %v6796 = vunpack.c.h.b16 %v6615
    %v6797 = vunpack.c.l.b16 %v6616
    %v6798 = vunpack.c.h.b16 %v6616
    %v6799 = vunpack.c.l.b16 %v6617
    %v6800 = vunpack.c.h.b16 %v6617
    %v6801 = vunpack.c.l.b16 %v6618
    %v6802 = vunpack.c.h.b16 %v6618
    %v6803 = vunpack.c.l.b16 %v6619
    %v6804 = vunpack.c.h.b16 %v6619
    %v6805 = vunpack.c.l.b16 %v6620
    %v6806 = vunpack.c.h.b16 %v6620
    %v6807 = vunpack.c.l.b16 %v6621
    %v6808 = vunpack.c.h.b16 %v6621
    %v6809 = vunpack.c.l.b16 %v6622
    %v6810 = vunpack.c.h.b16 %v6622
    %v6811 = vunpack.c.l.b16 %v6623
    %v6812 = vunpack.c.h.b16 %v6623
    %v6813 = vunpack.c.l.b16 %v6624
    %v6814 = vunpack.c.h.b16 %v6624
    %v6815 = vunpack.c.l.b16 %v6625
    %v6816 = vunpack.c.h.b16 %v6625
    %v6817 = vunpack.c.l.b16 %v6626
    %v6818 = vunpack.c.h.b16 %v6626
    %v6819 = vpack.c.b16 %v6695, %v6691
    %v6820 = vpack.c.b16 %v6696, %v6692
    %v6821 = vpack.c.b16 %v6697, %v6693
    %v6822 = vpack.c.b16 %v6698, %v6694
    %v6823 = vpack.c.b16 %v6703, %v6699
    %v6824 = vpack.c.b16 %v6704, %v6700
    %v6825 = vpack.c.b16 %v6705, %v6701
    %v6826 = vpack.c.b16 %v6706, %v6702
    %v6827 = vpack.c.b16 %v6711, %v6707
    %v6828 = vpack.c.b16 %v6712, %v6708
    %v6829 = vpack.c.b16 %v6713, %v6709
    %v6830 = vpack.c.b16 %v6714, %v6710
    %v6831 = vpack.c.b16 %v6719, %v6715
    %v6832 = vpack.c.b16 %v6720, %v6716
    %v6833 = vpack.c.b16 %v6721, %v6717
    %v6834 = vpack.c.b16 %v6722, %v6718
    %v6835 = vpack.c.b16 %v6727, %v6723
    %v6836 = vpack.c.b16 %v6728, %v6724
    %v6837 = vpack.c.b16 %v6729, %v6725
    %v6838 = vpack.c.b16 %v6730, %v6726
    %v6839 = vpack.c.b16 %v6735, %v6731
    %v6840 = vpack.c.b16 %v6736, %v6732
    %v6841 = vpack.c.b16 %v6737, %v6733
    %v6842 = vpack.c.b16 %v6738, %v6734
    %v6843 = vpack.c.b16 %v6743, %v6739
    %v6844 = vpack.c.b16 %v6744, %v6740
    %v6845 = vpack.c.b16 %v6745, %v6741
    %v6846 = vpack.c.b16 %v6746, %v6742
    %v6847 = vpack.c.b16 %v6751, %v6747
    %v6848 = vpack.c.b16 %v6752, %v6748
    %v6849 = vpack.c.b16 %v6753, %v6749
    %v6850 = vpack.c.b16 %v6754, %v6750
    %v6851 = vpack.c.b16 %v6759, %v6755
    %v6852 = vpack.c.b16 %v6760, %v6756
    %v6853 = vpack.c.b16 %v6761, %v6757
    %v6854 = vpack.c.b16 %v6762, %v6758
    %v6855 = vpack.c.b16 %v6767, %v6763
    %v6856 = vpack.c.b16 %v6768, %v6764
    %v6857 = vpack.c.b16 %v6769, %v6765
    %v6858 = vpack.c.b16 %v6770, %v6766
    %v6859 = vpack.c.b16 %v6775, %v6771
    %v6860 = vpack.c.b16 %v6776, %v6772
    %v6861 = vpack.c.b16 %v6777, %v6773
    %v6862 = vpack.c.b16 %v6778, %v6774
    %v6863 = vpack.c.b16 %v6783, %v6779
    %v6864 = vpack.c.b16 %v6784, %v6780
    %v6865 = vpack.c.b16 %v6785, %v6781
    %v6866 = vpack.c.b16 %v6786, %v6782
    %v6867 = vpack.c.b16 %v6791, %v6787
    %v6868 = vpack.c.b16 %v6792, %v6788
    %v6869 = vpack.c.b16 %v6793, %v6789
    %v6870 = vpack.c.b16 %v6794, %v6790
    %v6871 = vpack.c.b16 %v6799, %v6795
    %v6872 = vpack.c.b16 %v6800, %v6796
    %v6873 = vpack.c.b16 %v6801, %v6797
    %v6874 = vpack.c.b16 %v6802, %v6798
    %v6875 = vpack.c.b16 %v6807, %v6803
    %v6876 = vpack.c.b16 %v6808, %v6804
    %v6877 = vpack.c.b16 %v6809, %v6805
    %v6878 = vpack.c.b16 %v6810, %v6806
    %v6879 = vpack.c.b16 %v6815, %v6811
    %v6880 = vpack.c.b16 %v6816, %v6812
    %v6881 = vpack.c.b16 %v6817, %v6813
    %v6882 = vpack.c.b16 %v6818, %v6814
    %6947 = vmatpush.bf16.msra.mxu0 %v6847
    %6948 = vmatpush.bf16.msra.mxu0 %v6843
    %6949 = vmatpush.bf16.msra.mxu0 %v6839
    %6950 = vmatpush.bf16.msra.mxu0 %v6835
    %6951 = vmatpush.bf16.msra.mxu0 %v6831
    %6952 = vmatpush.bf16.msra.mxu0 %v6827
    %6953 = vmatpush.bf16.msra.mxu0 %v6823
    %6954 = vmatpush.bf16.msra.mxu0 %v6819
    %6955 = vmatmul.bf16.gmra.mxu0 %v6561
    %v6956 = vpop.f32.mrf.mxu0
    %v6957 = vadd.f32 0.0, %v6956
    %v6958 = vpop.f32.mrf.mxu0
    %6959 = vdwg.mxu0
    %6960 = vmatpush.bf16.msra.mxu0 %v6879
    %6961 = vmatpush.bf16.msra.mxu0 %v6875
    %6962 = vmatpush.bf16.msra.mxu0 %v6871
    %6963 = vmatpush.bf16.msra.mxu0 %v6867
    %6964 = vmatpush.bf16.msra.mxu0 %v6863
    %6965 = vmatpush.bf16.msra.mxu0 %v6859
    %6966 = vmatpush.bf16.msra.mxu0 %v6855
    %6967 = vmatpush.bf16.msra.mxu0 %v6851
    %6968 = vmatmul.bf16.gmra.mxu0 %v6562
    %v6969 = vpop.f32.mrf.mxu0
    %v6970 = vadd.f32 %v6957, %v6969
    %v6971 = vpop.f32.mrf.mxu0
    %6972 = vdwg.mxu0
    %6973 = vmatpush.bf16.msra.mxu0 %v6848
    %6974 = vmatpush.bf16.msra.mxu0 %v6844
    %6975 = vmatpush.bf16.msra.mxu0 %v6840
    %6976 = vmatpush.bf16.msra.mxu0 %v6836
    %6977 = vmatpush.bf16.msra.mxu0 %v6832
    %6978 = vmatpush.bf16.msra.mxu0 %v6828
    %6979 = vmatpush.bf16.msra.mxu0 %v6824
    %6980 = vmatpush.bf16.msra.mxu0 %v6820
    %6981 = vmatmul.bf16.gmra.mxu0 %v6561
    %v6982 = vpop.f32.mrf.mxu0
    %v6983 = vadd.f32 0.0, %v6982
    %v6984 = vpop.f32.mrf.mxu0
    %6985 = vdwg.mxu0
    %6986 = vmatpush.bf16.msra.mxu0 %v6880
    %6987 = vmatpush.bf16.msra.mxu0 %v6876
    %6988 = vmatpush.bf16.msra.mxu0 %v6872
    %6989 = vmatpush.bf16.msra.mxu0 %v6868
    %6990 = vmatpush.bf16.msra.mxu0 %v6864
    %6991 = vmatpush.bf16.msra.mxu0 %v6860
    %6992 = vmatpush.bf16.msra.mxu0 %v6856
    %6993 = vmatpush.bf16.msra.mxu0 %v6852
    %6994 = vmatmul.bf16.gmra.mxu0 %v6562
    %v6995 = vpop.f32.mrf.mxu0
    %v6996 = vadd.f32 %v6983, %v6995
    %v6997 = vpop.f32.mrf.mxu0
    %6998 = vdwg.mxu0
    %6999 = vmatpush.bf16.msra.mxu0 %v6849
    %7000 = vmatpush.bf16.msra.mxu0 %v6845
    %7001 = vmatpush.bf16.msra.mxu0 %v6841
    %7002 = vmatpush.bf16.msra.mxu0 %v6837
    %7003 = vmatpush.bf16.msra.mxu0 %v6833
    %7004 = vmatpush.bf16.msra.mxu0 %v6829
    %7005 = vmatpush.bf16.msra.mxu0 %v6825
    %7006 = vmatpush.bf16.msra.mxu0 %v6821
    %7007 = vmatmul.bf16.gmra.mxu0 %v6561
    %v7008 = vpop.f32.mrf.mxu0
    %v7009 = vadd.f32 0.0, %v7008
    %v7010 = vpop.f32.mrf.mxu0
    %7011 = vdwg.mxu0
    %7012 = vmatpush.bf16.msra.mxu0 %v6881
    %7013 = vmatpush.bf16.msra.mxu0 %v6877
    %7014 = vmatpush.bf16.msra.mxu0 %v6873
    %7015 = vmatpush.bf16.msra.mxu0 %v6869
    %7016 = vmatpush.bf16.msra.mxu0 %v6865
    %7017 = vmatpush.bf16.msra.mxu0 %v6861
    %7018 = vmatpush.bf16.msra.mxu0 %v6857
    %7019 = vmatpush.bf16.msra.mxu0 %v6853
    %7020 = vmatmul.bf16.gmra.mxu0 %v6562
    %v7021 = vpop.f32.mrf.mxu0
    %v7022 = vadd.f32 %v7009, %v7021
    %v7023 = vpop.f32.mrf.mxu0
    %7024 = vdwg.mxu0
    %7025 = vmatpush.bf16.msra.mxu0 %v6850
    %7026 = vmatpush.bf16.msra.mxu0 %v6846
    %7027 = vmatpush.bf16.msra.mxu0 %v6842
    %7028 = vmatpush.bf16.msra.mxu0 %v6838
    %7029 = vmatpush.bf16.msra.mxu0 %v6834
    %7030 = vmatpush.bf16.msra.mxu0 %v6830
    %7031 = vmatpush.bf16.msra.mxu0 %v6826
    %7032 = vmatpush.bf16.msra.mxu0 %v6822
    %7033 = vmatmul.bf16.gmra.mxu0 %v6561
    %v7034 = vpop.f32.mrf.mxu0
    %v7035 = vadd.f32 0.0, %v7034
    %v7036 = vpop.f32.mrf.mxu0
    %7037 = vdwg.mxu0
    %7038 = vmatpush.bf16.msra.mxu0 %v6882
    %7039 = vmatpush.bf16.msra.mxu0 %v6878
    %7040 = vmatpush.bf16.msra.mxu0 %v6874
    %7041 = vmatpush.bf16.msra.mxu0 %v6870
    %7042 = vmatpush.bf16.msra.mxu0 %v6866
    %7043 = vmatpush.bf16.msra.mxu0 %v6862
    %7044 = vmatpush.bf16.msra.mxu0 %v6858
    %7045 = vmatpush.bf16.msra.mxu0 %v6854
    %7046 = vmatmul.bf16.gmra.mxu0 %v6562
    %v7047 = vpop.f32.mrf.mxu0
    %v7048 = vadd.f32 %v7035, %v7047
    %v7049 = vpop.f32.mrf.mxu0
    %7050 = vdwg.mxu0
    %v7051 = vtanh.pop %v6970
    %v7052 = vtanh.pop %v6996
    %v7053 = vtanh.pop %v7022
    %v7054 = vtanh.pop %v7048
    %v7055 = vpack.c.bf16 %v7051, %v7051
    %v7056 = vpack.c.bf16 %v7052, %v7052
    %v7057 = vpack.c.bf16 %v7053, %v7053
    %v7058 = vpack.c.bf16 %v7054, %v7054
    %v7059 = vld [vmem:[#allocation11] sm:$0xf]
    %v7060 = vld [vmem:[#allocation11 + $0x4] sm:$0xf]
    %v7061 = vld [vmem:[#allocation11 + $0x8] sm:$0xf]
    %v7062 = vld [vmem:[#allocation11 + $0xc] sm:$0xf]
    %v7063 = vld [vmem:[#allocation11 + $0x10] sm:$0xf]
    %v7064 = vld [vmem:[#allocation11 + $0x14] sm:$0xf]
    %v7065 = vld [vmem:[#allocation11 + $0x18] sm:$0xf]
    %v7066 = vld [vmem:[#allocation11 + $0x1c] sm:$0xf]
    %v7067 = vld [vmem:[#allocation11 + $0x20] sm:$0xf]
    %v7068 = vld [vmem:[#allocation11 + $0x24] sm:$0xf]
    %v7069 = vld [vmem:[#allocation11 + $0x28] sm:$0xf]
    %v7070 = vld [vmem:[#allocation11 + $0x2c] sm:$0xf]
    %v7071 = vld [vmem:[#allocation11 + $0x30] sm:$0xf]
    %v7072 = vld [vmem:[#allocation11 + $0x34] sm:$0xf]
    %v7073 = vld [vmem:[#allocation11 + $0x38] sm:$0xf]
    %v7074 = vld [vmem:[#allocation11 + $0x3c] sm:$0xf]
    %v7075 = vld [vmem:[#allocation11 + $0x40] sm:$0xf]
    %v7076 = vld [vmem:[#allocation11 + $0x44] sm:$0xf]
    %v7077 = vld [vmem:[#allocation11 + $0x48] sm:$0xf]
    %v7078 = vld [vmem:[#allocation11 + $0x4c] sm:$0xf]
    %v7079 = vld [vmem:[#allocation11 + $0x50] sm:$0xf]
    %v7080 = vld [vmem:[#allocation11 + $0x54] sm:$0xf]
    %v7081 = vld [vmem:[#allocation11 + $0x58] sm:$0xf]
    %v7082 = vld [vmem:[#allocation11 + $0x5c] sm:$0xf]
    %v7083 = vld [vmem:[#allocation11 + $0x60] sm:$0xf]
    %v7084 = vld [vmem:[#allocation11 + $0x64] sm:$0xf]
    %v7085 = vld [vmem:[#allocation11 + $0x68] sm:$0xf]
    %v7086 = vld [vmem:[#allocation11 + $0x6c] sm:$0xf]
    %v7087 = vld [vmem:[#allocation11 + $0x70] sm:$0xf]
    %v7088 = vld [vmem:[#allocation11 + $0x74] sm:$0xf]
    %v7089 = vld [vmem:[#allocation11 + $0x78] sm:$0xf]
    %v7090 = vld [vmem:[#allocation11 + $0x7c] sm:$0xf]
    %v7091 = vld [vmem:[#allocation11 + $0x80] sm:$0xf]
    %v7092 = vld [vmem:[#allocation11 + $0x84] sm:$0xf]
    %v7093 = vld [vmem:[#allocation11 + $0x88] sm:$0xf]
    %v7094 = vld [vmem:[#allocation11 + $0x8c] sm:$0xf]
    %v7095 = vld [vmem:[#allocation11 + $0x90] sm:$0xf]
    %v7096 = vld [vmem:[#allocation11 + $0x94] sm:$0xf]
    %v7097 = vld [vmem:[#allocation11 + $0x98] sm:$0xf]
    %v7098 = vld [vmem:[#allocation11 + $0x9c] sm:$0xf]
    %v7099 = vld [vmem:[#allocation11 + $0xa0] sm:$0xf]
    %v7100 = vld [vmem:[#allocation11 + $0xa4] sm:$0xf]
    %v7101 = vld [vmem:[#allocation11 + $0xa8] sm:$0xf]
    %v7102 = vld [vmem:[#allocation11 + $0xac] sm:$0xf]
    %v7103 = vld [vmem:[#allocation11 + $0xb0] sm:$0xf]
    %v7104 = vld [vmem:[#allocation11 + $0xb4] sm:$0xf]
    %v7105 = vld [vmem:[#allocation11 + $0xb8] sm:$0xf]
    %v7106 = vld [vmem:[#allocation11 + $0xbc] sm:$0xf]
    %v7107 = vld [vmem:[#allocation11 + $0xc0] sm:$0xf]
    %v7108 = vld [vmem:[#allocation11 + $0xc4] sm:$0xf]
    %v7109 = vld [vmem:[#allocation11 + $0xc8] sm:$0xf]
    %v7110 = vld [vmem:[#allocation11 + $0xcc] sm:$0xf]
    %v7111 = vld [vmem:[#allocation11 + $0xd0] sm:$0xf]
    %v7112 = vld [vmem:[#allocation11 + $0xd4] sm:$0xf]
    %v7113 = vld [vmem:[#allocation11 + $0xd8] sm:$0xf]
    %v7114 = vld [vmem:[#allocation11 + $0xdc] sm:$0xf]
    %v7115 = vld [vmem:[#allocation11 + $0xe0] sm:$0xf]
    %v7116 = vld [vmem:[#allocation11 + $0xe4] sm:$0xf]
    %v7117 = vld [vmem:[#allocation11 + $0xe8] sm:$0xf]
    %v7118 = vld [vmem:[#allocation11 + $0xec] sm:$0xf]
    %v7119 = vld [vmem:[#allocation11 + $0xf0] sm:$0xf]
    %v7120 = vld [vmem:[#allocation11 + $0xf4] sm:$0xf]
    %v7121 = vld [vmem:[#allocation11 + $0xf8] sm:$0xf]
    %v7122 = vld [vmem:[#allocation11 + $0xfc] sm:$0xf]
    %v7123 = vld [vmem:[#allocation13] sm:$0x1]
    %v7125 = vperm.slane %v7123, 0
    %v7191 = vunpack.c.l.b16 %v7059
    %v7192 = vunpack.c.l.b16 %v7060
    %v7193 = vunpack.c.l.b16 %v7061
    %v7194 = vunpack.c.l.b16 %v7062
    %v7195 = vunpack.c.l.b16 %v7063
    %v7196 = vunpack.c.l.b16 %v7064
    %v7197 = vunpack.c.l.b16 %v7065
    %v7198 = vunpack.c.l.b16 %v7066
    %v7199 = vunpack.c.l.b16 %v7067
    %v7200 = vunpack.c.l.b16 %v7068
    %v7201 = vunpack.c.l.b16 %v7069
    %v7202 = vunpack.c.l.b16 %v7070
    %v7203 = vunpack.c.l.b16 %v7071
    %v7204 = vunpack.c.l.b16 %v7072
    %v7205 = vunpack.c.l.b16 %v7073
    %v7206 = vunpack.c.l.b16 %v7074
    %v7207 = vunpack.c.l.b16 %v7075
    %v7208 = vunpack.c.l.b16 %v7076
    %v7209 = vunpack.c.l.b16 %v7077
    %v7210 = vunpack.c.l.b16 %v7078
    %v7211 = vunpack.c.l.b16 %v7079
    %v7212 = vunpack.c.l.b16 %v7080
    %v7213 = vunpack.c.l.b16 %v7081
    %v7214 = vunpack.c.l.b16 %v7082
    %v7215 = vunpack.c.l.b16 %v7083
    %v7216 = vunpack.c.l.b16 %v7084
    %v7217 = vunpack.c.l.b16 %v7085
    %v7218 = vunpack.c.l.b16 %v7086
    %v7219 = vunpack.c.l.b16 %v7087
    %v7220 = vunpack.c.l.b16 %v7088
    %v7221 = vunpack.c.l.b16 %v7089
    %v7222 = vunpack.c.l.b16 %v7090
    %v7223 = vunpack.c.l.b16 %v7091
    %v7224 = vunpack.c.l.b16 %v7092
    %v7225 = vunpack.c.l.b16 %v7093
    %v7226 = vunpack.c.l.b16 %v7094
    %v7227 = vunpack.c.l.b16 %v7095
    %v7228 = vunpack.c.l.b16 %v7096
    %v7229 = vunpack.c.l.b16 %v7097
    %v7230 = vunpack.c.l.b16 %v7098
    %v7231 = vunpack.c.l.b16 %v7099
    %v7232 = vunpack.c.l.b16 %v7100
    %v7233 = vunpack.c.l.b16 %v7101
    %v7234 = vunpack.c.l.b16 %v7102
    %v7235 = vunpack.c.l.b16 %v7103
    %v7236 = vunpack.c.l.b16 %v7104
    %v7237 = vunpack.c.l.b16 %v7105
    %v7238 = vunpack.c.l.b16 %v7106
    %v7239 = vunpack.c.l.b16 %v7107
    %v7240 = vunpack.c.l.b16 %v7108
    %v7241 = vunpack.c.l.b16 %v7109
    %v7242 = vunpack.c.l.b16 %v7110
    %v7243 = vunpack.c.l.b16 %v7111
    %v7244 = vunpack.c.l.b16 %v7112
    %v7245 = vunpack.c.l.b16 %v7113
    %v7246 = vunpack.c.l.b16 %v7114
    %v7247 = vunpack.c.l.b16 %v7115
    %v7248 = vunpack.c.l.b16 %v7116
    %v7249 = vunpack.c.l.b16 %v7117
    %v7250 = vunpack.c.l.b16 %v7118
    %v7251 = vunpack.c.l.b16 %v7119
    %v7252 = vunpack.c.l.b16 %v7120
    %v7253 = vunpack.c.l.b16 %v7121
    %v7254 = vunpack.c.l.b16 %v7122
    %v7255 = vpack.c.b16 %v7192, %v7191
    %v7256 = vpack.c.b16 %v7194, %v7193
    %v7257 = vpack.c.b16 %v7196, %v7195
    %v7258 = vpack.c.b16 %v7198, %v7197
    %v7259 = vpack.c.b16 %v7200, %v7199
    %v7260 = vpack.c.b16 %v7202, %v7201
    %v7261 = vpack.c.b16 %v7204, %v7203
    %v7262 = vpack.c.b16 %v7206, %v7205
    %v7263 = vpack.c.b16 %v7208, %v7207
    %v7264 = vpack.c.b16 %v7210, %v7209
    %v7265 = vpack.c.b16 %v7212, %v7211
    %v7266 = vpack.c.b16 %v7214, %v7213
    %v7267 = vpack.c.b16 %v7216, %v7215
    %v7268 = vpack.c.b16 %v7218, %v7217
    %v7269 = vpack.c.b16 %v7220, %v7219
    %v7270 = vpack.c.b16 %v7222, %v7221
    %v7271 = vpack.c.b16 %v7224, %v7223
    %v7272 = vpack.c.b16 %v7226, %v7225
    %v7273 = vpack.c.b16 %v7228, %v7227
    %v7274 = vpack.c.b16 %v7230, %v7229
    %v7275 = vpack.c.b16 %v7232, %v7231
    %v7276 = vpack.c.b16 %v7234, %v7233
    %v7277 = vpack.c.b16 %v7236, %v7235
    %v7278 = vpack.c.b16 %v7238, %v7237
    %v7279 = vpack.c.b16 %v7240, %v7239
    %v7280 = vpack.c.b16 %v7242, %v7241
    %v7281 = vpack.c.b16 %v7244, %v7243
    %v7282 = vpack.c.b16 %v7246, %v7245
    %v7283 = vpack.c.b16 %v7248, %v7247
    %v7284 = vpack.c.b16 %v7250, %v7249
    %v7285 = vpack.c.b16 %v7252, %v7251
    %v7286 = vpack.c.b16 %v7254, %v7253
    %7319 = vmatpush.bf16.msra.mxu0 %v7262
    %7320 = vmatpush.bf16.msra.mxu0 %v7261
    %7321 = vmatpush.bf16.msra.mxu0 %v7260
    %7322 = vmatpush.bf16.msra.mxu0 %v7259
    %7323 = vmatpush.bf16.msra.mxu0 %v7258
    %7324 = vmatpush.bf16.msra.mxu0 %v7257
    %7325 = vmatpush.bf16.msra.mxu0 %v7256
    %7326 = vmatpush.bf16.msra.mxu0 %v7255
    %7327 = vmatmul.bf16.gmra.mxu0 %v7055
    %v7328 = vpop.f32.mrf.mxu0
    %v7329 = vadd.f32 %v7125, %v7328
    %v7330 = vpop.f32.mrf.mxu0
    %7331 = vdwg.mxu0
    %7332 = vmatpush.bf16.msra.mxu0 %v7270
    %7333 = vmatpush.bf16.msra.mxu0 %v7269
    %7334 = vmatpush.bf16.msra.mxu0 %v7268
    %7335 = vmatpush.bf16.msra.mxu0 %v7267
    %7336 = vmatpush.bf16.msra.mxu0 %v7266
    %7337 = vmatpush.bf16.msra.mxu0 %v7265
    %7338 = vmatpush.bf16.msra.mxu0 %v7264
    %7339 = vmatpush.bf16.msra.mxu0 %v7263
    %7340 = vmatmul.bf16.gmra.mxu0 %v7056
    %v7341 = vpop.f32.mrf.mxu0
    %v7342 = vadd.f32 %v7329, %v7341
    %v7343 = vpop.f32.mrf.mxu0
    %7344 = vdwg.mxu0
    %7345 = vmatpush.bf16.msra.mxu0 %v7278
    %7346 = vmatpush.bf16.msra.mxu0 %v7277
    %7347 = vmatpush.bf16.msra.mxu0 %v7276
    %7348 = vmatpush.bf16.msra.mxu0 %v7275
    %7349 = vmatpush.bf16.msra.mxu0 %v7274
    %7350 = vmatpush.bf16.msra.mxu0 %v7273
    %7351 = vmatpush.bf16.msra.mxu0 %v7272
    %7352 = vmatpush.bf16.msra.mxu0 %v7271
    %7353 = vmatmul.bf16.gmra.mxu0 %v7057
    %v7354 = vpop.f32.mrf.mxu0
    %v7355 = vadd.f32 %v7342, %v7354
    %v7356 = vpop.f32.mrf.mxu0
    %7357 = vdwg.mxu0
    %7358 = vmatpush.bf16.msra.mxu0 %v7286
    %7359 = vmatpush.bf16.msra.mxu0 %v7285
    %7360 = vmatpush.bf16.msra.mxu0 %v7284
    %7361 = vmatpush.bf16.msra.mxu0 %v7283
    %7362 = vmatpush.bf16.msra.mxu0 %v7282
    %7363 = vmatpush.bf16.msra.mxu0 %v7281
    %7364 = vmatpush.bf16.msra.mxu0 %v7280
    %7365 = vmatpush.bf16.msra.mxu0 %v7279
    %7366 = vmatmul.bf16.gmra.mxu0 %v7058
    %v7367 = vpop.f32.mrf.mxu0
    %v7368 = vadd.f32 %v7355, %v7367
    %v7369 = vpop.f32.mrf.mxu0
    %7370 = vdwg.mxu0
    %v7371 = vlaneseq
    %v7372 = vand.u32 %v7371, 127
    %v7373 = vsub.f32 0.0, %v7368
    %v7374 = vmul.f32 %v7373, 1.442695
    %v7375 = vpow.pop %v7374
    %v7376 = vadd.f32 %v7375, 1.0
    %v7377 = vrcp.pop %v7376
    %v7378 = vmul.f32 %v7376, %v7377
    %v7379 = vsub.f32 1.0, %v7378
    %v7380 = vmul.f32 %v7377, %v7379
    %v7381 = vadd.f32 %v7377, %v7380
    %vm7382 = vweird.f32 %v7376
    %vm7383 = vweird.f32 %v7377
    %vm7384 = vmor %vm7382, %vm7383
    %v7385 = vsel %vm7384, %v7377, %v7381
    %v7386 = vand.u32 2147483647, %v7376
    %vm7387 = vcmp.eq.f32.partialorder %v7386, 8.507059e+37
    %v7388 = vand.u32 %v7376, 2147483648
    %v7389 = vor.u32 1.1754944e-38, %v7388
    %v7390 = vsel %vm7387, %v7389, %v7385
    %v7391 = vmul.f32 1.0, %v7390
    %vm7392 = vcmp.ge.s32.totalorder %v7372, 1
    %vm7393 = vcmp.lt.s32.totalorder %v7372, 11
    %vm7394 = vmand %vm7392, %vm7393
    %v7395 = vsel %vm7394, %v7368, -1e+30
    %vm7396 = vcmask 1041408
    %v7397 = vsel %vm7396, %v7395, -inf
    %7398 = vmax.xlane.f32.xlu0 %v7397
    %v7399 = vpop.xlane.xlu0 %7398
    %v7400 = vsub.f32 %v7395, %v7399
    %v7401 = vmul.f32 %v7400, 1.442695
    %v7402 = vpow.pop %v7401
    %v7403 = vsel %vm7396, %v7402, 0.0
    %7404 = vadd.xlane.f32.xlu0 %v7403
    %v7405 = vpop.xlane.xlu0 %7404
    %v7406 = vrcp.pop %v7405
    %v7407 = vmul.f32 %v7405, %v7406
    %v7408 = vsub.f32 1.0, %v7407
    %v7409 = vmul.f32 %v7406, %v7408
    %v7410 = vadd.f32 %v7406, %v7409
    %vm7411 = vweird.f32 %v7405
    %vm7412 = vweird.f32 %v7406
    %vm7413 = vmor %vm7411, %vm7412
    %v7414 = vsel %vm7413, %v7406, %v7410
    %v7415 = vand.u32 2147483647, %v7405
    %vm7416 = vcmp.eq.f32.partialorder %v7415, 8.507059e+37
    %v7417 = vand.u32 %v7405, 2147483648
    %v7418 = vor.u32 1.1754944e-38, %v7417
    %v7419 = vsel %vm7416, %v7418, %v7414
    %v7420 = vmul.f32 %v7402, %v7419
    %vm7421 = vcmp.eq.s32.totalorder %v7372, 0
    %v7422 = vsel %vm7421, %v7391, %v7420
    %7423 = vst [vmem:[#allocation14] sm:$0x3] %v7422
    // Predicated region
    $region58: #{tpu_custom_call.1} parent=1 // pred_check
      _
    $region59: #{tpu_custom_call.1} parent=1 // pred_check_branch
      %7425 = sbr.rel (0) target = $region61
    $region60: #{tpu_custom_call.1} parent=1 // pred_region
      %7427 = vsyncadd [#allocation4], 0
      %s7429 = sshll.u32 [#allocation14], 4
      %s7430 = int_to_ptr.vmem [resolvable:$true] %s7429
      %s7431 = sshll.u32 %s7, 4
      %s7432 = int_to_ptr.hbm [resolvable:$true] %s7431
      %7434 = dma.vmem_to_hbm [thread:$0]  %s7430, 32, %s7432, [#allocation4]
    $region61: #{tpu_custom_call.1} parent=1 // pred_fallthru
      _
    // Predicated region
    $region62: #{tpu_custom_call.1} parent=1 // pred_check
      _
    $region63: #{tpu_custom_call.1} parent=1 // pred_check_branch
      %7436 = sbr.rel (0) target = $region65
    $region64: #{tpu_custom_call.1} parent=1 // pred_region
      %7438 = dma.done [#allocation4], 32
    $region65: #{tpu_custom_call.1} parent=1 // pred_fallthru
      _
    %7439 = vsyncpa [#allocation3], 1
    %7440 = vsyncpa [#allocation6], 1
    %7441 = vsyncpa [#allocation9], 1
    %7442 = vsyncpa [#allocation12], 1
    %7443 = vsyncpa [#allocation4], 1

</llo_original>
